<compile_context>
chip_gen: v5e
topology: v5e:2x2
jax: 0.10.0
libtpu: 0.0.40
codegen_flags: <defaults>
</compile_context>

<pallas_src>
import functools

import jax
import jax.numpy as jnp
from jax.experimental import pallas as pl
from jax.experimental.pallas import tpu as pltpu


def _round_up(x, m):
    return (x + m - 1) // m * m


def _pick_time_chunk(T, cap=64):
    """Largest chunk T_c <= cap with T % T_c == 0, preferring multiples of 8."""
    if T <= cap:
        return T
    best_aligned, best_any = 0, 1
    for tc in range(1, cap + 1):
        if T % tc == 0:
            best_any = tc
            if tc % 8 == 0:
                best_aligned = tc
    return best_aligned if best_aligned else best_any


def _pick_n_tile(din, G, dtype_bytes=2, cap_bytes=4 << 20):
    """Tile of the 4*Hp gate axis for the pregate GEMM so the W_ih block stays
    bounded (v7x 64 MiB VMEM).  Always a multiple of 128 that divides G."""
    for tn in (G, G // 2, G // 4):
        if tn >= 128 and G % tn == 0 and din * tn * dtype_bytes <= cap_bytes:
            return tn
    return G // 4


def _wspec(shape, index_map, constant):
    """BlockSpec; constant-index blocks are single-buffered (no VMEM waste)."""
    if constant:
        return pl.BlockSpec(shape, index_map, pipeline_mode=pl.Buffered(1))
    return pl.BlockSpec(shape, index_map)


def _compiler_params(dim_sems, est_bytes):
    # Explicit scoped-VMEM limit sized from actual block footprints, with
    # headroom, capped safely under v7x's 64 MiB physical VMEM.
    limit = int(min(max(2 * est_bytes, 16 << 20), 48 << 20))
    return pltpu.CompilerParams(dimension_semantics=dim_sems,
                                vmem_limit_bytes=limit)


# ---------------------------------------------------------------------------
# Kernel 1a: layer-0 input projection (parallel over time chunks x gate tiles).
#   x (B_pad, T_c, D) batch-first bf16  ->  pre (T_c, B_pad, tn) time-major bf16
# ---------------------------------------------------------------------------
def _pregate_first_kernel(x_ref, wih_ref, bias_ref, pre_ref):
    B_pad, T_c, D = x_ref.shape
    tn = pre_ref.shape[-1]
    x2 = x_ref[...].reshape(B_pad * T_c, D)
    pg = (jnp.dot(x2, wih_ref[...], preferred_element_type=jnp.float32)
          + bias_ref[...])                       # f32, includes b_ih + b_hh
    # Fold batch-first -> time-major with ONE transpose + one full-block store
    # (no per-timestep masked stores / tile-crossing slices).
    pre_ref[...] = jnp.transpose(pg.reshape(B_pad, T_c, tn),
                                 (1, 0, 2)).astype(pre_ref.dtype)


# ---------------------------------------------------------------------------
# Kernel 1b: input projection for time-major inputs (layers > 0, or fallback).
#   h_prev (T_c, B_pad, Din) bf16  ->  pre (T_c, B_pad, tn) bf16
# ---------------------------------------------------------------------------
def _pregate_kernel(h_ref, wih_ref, bias_ref, pre_ref):
    T_c, B_pad, Din = h_ref.shape
    tn = pre_ref.shape[-1]
    h2 = h_ref[...].reshape(T_c * B_pad, Din)
    pg = (jnp.dot(h2, wih_ref[...], preferred_element_type=jnp.float32)
          + bias_ref[...])
    pre_ref[...] = pg.reshape(T_c, B_pad, tn).astype(pre_ref.dtype)


# ---------------------------------------------------------------------------
# Kernel 2: the recurrence.  Grid axis 0 = time chunks (sequential).
# ---------------------------------------------------------------------------
def _lstm_recurrent_kernel(*refs, fuse_head, unroll):
    if fuse_head:
        (pre_ref, h0_ref, c0_ref, whh_ref, wout_ref, bout_ref,
         hn_ref, cn_ref, out_ref, h_sc, c_sc) = refs
        hseq_ref = None
    else:
        (pre_ref, h0_ref, c0_ref, whh_ref,
         hseq_ref, hn_ref, cn_ref, h_sc, c_sc) = refs

    t_chunk = pre_ref.shape[0]
    Hp = h0_ref.shape[-1]
    c_idx = pl.program_id(0)

    @pl.when(c_idx == 0)
    def _():
        h_sc[...] = h0_ref[...]
        c_sc[...] = c0_ref[...]

    whh = whh_ref[...]                           # (Hp, 4*Hp) bf16, once per chunk

    def step(t, carry):
        h, c = carry                             # f32, register (vreg) resident
        # pre-activations already include x@Wih^T + both biases
        gates = pre_ref[t].astype(jnp.float32) + jnp.dot(
            h.astype(whh.dtype), whh, preferred_element_type=jnp.float32)
        # packed gate order (i, f, o, g): one contiguous sigmoid slab + one tanh
        sig = jax.nn.sigmoid(gates[:, 0:3 * Hp])
        i_g = sig[:, 0 * Hp:1 * Hp]
        f_g = sig[:, 1 * Hp:2 * Hp]
        o_g = sig[:, 2 * Hp:3 * Hp]
        g_g = jnp.tanh(gates[:, 3 * Hp:4 * Hp])
        c_new = f_g * c + i_g * g_g
        h_new = o_g * jnp.tanh(c_new)
        if hseq_ref is not None:
            hseq_ref[t] = h_new.astype(hseq_ref.dtype)
        return h_new, c_new

    h_fin, c_fin = jax.lax.fori_loop(0, t_chunk, step,
                                     (h_sc[...], c_sc[...]), unroll=unroll)
    # cross-chunk carry: VMEM touched once per chunk, not per timestep
    h_sc[...] = h_fin
    c_sc[...] = c_fin

    @pl.when(c_idx == pl.num_programs(0) - 1)
    def _():
        hn_ref[...] = h_fin
        cn_ref[...] = c_fin
        if fuse_head:
            # fused Linear(H -> 10) on the last timestep's hidden state
            out_ref[...] = (jnp.dot(h_fin, wout_ref[...],
                                    preferred_element_type=jnp.float32)
                            + bout_ref[...])


# ---------------------------------------------------------------------------
# pallas_call wrappers
# ---------------------------------------------------------------------------
def _input_projection_first(x_p, wih_p, bias_p, t_chunk):
    B_pad, T, D = x_p.shape
    G = wih_p.shape[1]
    tn = _pick_n_tile(D, G)
    n_c, n_n = T // t_chunk, G // tn
    const_w = (n_n == 1)
    est = (2 * B_pad * t_chunk * D * 2 + 2 * D * tn * 2 + tn * 4
           + 2 * t_chunk * B_pad * tn * 2)
    return pl.pallas_call(
        _pregate_first_kernel,
        grid_spec=pltpu.PrefetchScalarGridSpec(
            num_scalar_prefetch=0,
            grid=(n_c, n_n),
            in_specs=[
                pl.BlockSpec((B_pad, t_chunk, D), lambda c, n: (0, c, 0)),
                _wspec((D, tn), lambda c, n: (0, n), const_w),
                _wspec((1, tn), lambda c, n: (0, n), const_w),
            ],
            out_specs=pl.BlockSpec((t_chunk, B_pad, tn), lambda c, n: (c, 0, n)),
        ),
        out_shape=jax.ShapeDtypeStruct((T, B_pad, G), jnp.bfloat16),
        compiler_params=_compiler_params(("parallel", "parallel"), est),
    )(x_p, wih_p, bias_p)


def _input_projection(h_seq, wih_p, bias_p, t_chunk):
    T, B_pad, Din = h_seq.shape
    G = wih_p.shape[1]
    tn = _pick_n_tile(Din, G)
    n_c, n_n = T // t_chunk, G // tn
    const_w = (n_n == 1)
    est = (2 * t_chunk * B_pad * Din * 2 + 2 * Din * tn * 2 + tn * 4
           + 2 * t_chunk * B_pad * tn * 2)
    return pl.pallas_call(
        _pregate_kernel,
        grid_spec=pltpu.PrefetchScalarGridSpec(
            num_scalar_prefetch=0,
            grid=(n_c, n_n),
            in_specs=[
                pl.BlockSpec((t_chunk, B_pad, Din), lambda c, n: (c, 0, 0)),
                _wspec((Din, tn), lambda c, n: (0, n), const_w),
                _wspec((1, tn), lambda c, n: (0, n), const_w),
            ],
            out_specs=pl.BlockSpec((t_chunk, B_pad, tn), lambda c, n: (c, 0, n)),
        ),
        out_shape=jax.ShapeDtypeStruct((T, B_pad, G), jnp.bfloat16),
        compiler_params=_compiler_params(("parallel", "parallel"), est),
    )(h_seq, wih_p, bias_p)


def _lstm_layer(pre, h0_p, c0_p, whh_p, *, t_chunk, head=None):
    """Serial recurrence for one layer.

    pre   : (T, Bp, 4*Hp) bf16 hoisted pre-activations (time-major)
    head  : None -> emit bf16 hidden sequence (for the next layer);
            (wout_p, bout_p) -> top layer, emit fused-classifier logits instead.
    Returns (hseq (T,Bp,Hp) | logits (Bp,Op), h_n (Bp,Hp), c_n (Bp,Hp)).
    """
    T, B_pad, G = pre.shape
    Hp = whh_p.shape[0]
    n_chunks = T // t_chunk
    unroll = min(t_chunk, 8)           # small tuned unroll; avoids huge unrolls
    fuse_head = head is not None

    kernel = functools.partial(_lstm_recurrent_kernel,
                               fuse_head=fuse_head, unroll=unroll)

    in_specs = [
        pl.BlockSpec((t_chunk, B_pad, G), lambda c: (c, 0, 0)),   # pregates chunk
        _wspec((B_pad, Hp), lambda c: (0, 0), True),              # h0 (const idx)
        _wspec((B_pad, Hp), lambda c: (0, 0), True),              # c0 (const idx)
        _wspec((Hp, G), lambda c: (0, 0), True),                  # W_hh^T (const)
    ]
    inputs = [pre, h0_p, c0_p, whh_p]

    est = (2 * t_chunk * B_pad * G * 2          # pregates chunk (bf16, x2 bufs)
           + Hp * G * 2                         # W_hh (bf16, single-buffered)
           + 4 * B_pad * Hp * 4                 # h0/c0 + scratch (f32)
           + 4 * B_pad * Hp * 4)                # hn/cn outputs

    if fuse_head:
        wout_p, bout_p = head
        Op = wout_p.shape[1]
        in_specs += [_wspec((Hp, Op), lambda c: (0, 0), True),
                     _wspec((1, Op), lambda c: (0, 0), True)]
        inputs += [wout_p, bout_p]
        out_specs = [
            pl.BlockSpec((B_pad, Hp), lambda c: (0, 0)),          # h_n
            pl.BlockSpec((B_pad, Hp), lambda c: (0, 0)),          # c_n
            pl.BlockSpec((B_pad, Op), lambda c: (0, 0)),          # logits
        ]
        out_shape = (
            jax.ShapeDtypeStruct((B_pad, Hp), jnp.float32),
            jax.ShapeDtypeStruct((B_pad, Hp), jnp.float32),
            jax.ShapeDtypeStruct((B_pad, Op), jnp.float32),
        )
        est += Hp * Op * 4 + Op * 4 + 2 * B_pad * Op * 4
    else:
        out_specs = [
            pl.BlockSpec((t_chunk, B_pad, Hp), lambda c: (c, 0, 0)),  # h sequence
            pl.BlockSpec((B_pad, Hp), lambda c: (0, 0)),              # h_n
            pl.BlockSpec((B_pad, Hp), lambda c: (0, 0)),              # c_n
        ]
        out_shape = (
            jax.ShapeDtypeStruct((T, B_pad, Hp), jnp.bfloat16),
            jax.ShapeDtypeStruct((B_pad, Hp), jnp.float32),
            jax.ShapeDtypeStruct((B_pad, Hp), jnp.float32),
        )
        est += 2 * t_chunk * B_pad * Hp * 2

    outs = pl.pallas_call(
        kernel,
        grid_spec=pltpu.PrefetchScalarGridSpec(
            num_scalar_prefetch=0,
            grid=(n_chunks,),
            in_specs=in_specs,
            out_specs=out_specs,
            scratch_shapes=[pltpu.VMEM((B_pad, Hp), jnp.float32),
                            pltpu.VMEM((B_pad, Hp), jnp.float32)],
        ),
        out_shape=out_shape,
        compiler_params=_compiler_params(("arbitrary",), est),  # serial in time
    )(*inputs)

    if fuse_head:
        hn, cn, logits = outs
        return logits, hn, cn
    hseq, hn, cn = outs
    return hseq, hn, cn


# ---------------------------------------------------------------------------
# Weight packing (PyTorch layout -> lane/sublane padded, transposed, gate-
# reordered, bf16).  Done ONCE, outside the per-forward jit.
# ---------------------------------------------------------------------------
_GATE_PERM = [0, 1, 3, 2]          # PyTorch (i, f, g, o) -> packed (i, f, o, g)


def _pack_lstm_weights(w_ih, w_hh, b_ih, b_hh, Hp, din_pad):
    H = w_hh.shape[1]
    Din = w_ih.shape[1]

    def pack_w(w, din, dpad):
        w4 = w.reshape(4, H, din)[_GATE_PERM, :, :]   # reorder gates
        w4 = jnp.transpose(w4, (2, 0, 1))             # (din, 4, H)
        w4 = jnp.pad(w4, ((0, dpad - din), (0, 0), (0, Hp - H)))
        return w4.reshape(dpad, 4 * Hp).astype(jnp.bfloat16)

    wih = pack_w(w_ih, Din, din_pad)
    whh = pack_w(w_hh, H, Hp)
    bias = jnp.pad((b_ih + b_hh).reshape(4, H)[_GATE_PERM, :],
                   ((0, 0), (0, Hp - H)))
    bias = bias.reshape(1, 4 * Hp).astype(jnp.float32)
    return wih, whh, bias


def _pack_head(w_out, b_out, Hp, Op):
    O, H = w_out.shape
    w = jnp.pad(jnp.transpose(w_out), ((0, Hp - H), (0, Op - O))).astype(jnp.float32)
    b = jnp.pad(b_out, ((0, Op - O),)).reshape(1, Op).astype(jnp.float32)
    return w, b


def pack_params(params):
    """Pre-pack all weights (call once, outside the per-call jit)."""
    H = params["lstm"][0][1].shape[1]
    D = params["lstm"][0][0].shape[1]
    O = params["out_w"].shape[0]
    Hp = _round_up(H, 128)
    Op = _round_up(O, 128)
    layers = []
    for l, (w_ih, w_hh, b_ih, b_hh) in enumerate(params["lstm"]):
        din_pad = D if l == 0 else Hp
        layers.append(_pack_lstm_weights(w_ih, w_hh, b_ih, b_hh, Hp, din_pad))
    wout_p, bout_p = _pack_head(params["out_w"], params["out_b"], Hp, Op)
    return {"layers": layers, "out_w": wout_p, "out_b": bout_p}


# ---------------------------------------------------------------------------
# Forward pass (mirrors LSTM.forward)
# ---------------------------------------------------------------------------
def lstm_forward(packed, x, h_c, *, out_dim=10):
    """x (B, T, D) batch-first f32, h_c = (h0, c0) each (num_layers, B, H) f32.
    Returns (logits (B, out_dim), (h_n, c_n))."""
    h0, c0 = h_c
    B, T, D = x.shape
    L, _, H = h0.shape
    Hp = packed["layers"][0][1].shape[0]        # whh_p is (Hp, 4*Hp)
    B_pad = _round_up(B, 8)
    t_chunk = _pick_time_chunk(T)
    # layer-0 x block puts t_chunk on the sublane axis -> needs t_chunk%8==0 or ==T
    fold_relayout = (t_chunk % 8 == 0) or (t_chunk == T)

    h0_p = jnp.pad(h0.astype(jnp.float32), ((0, 0), (0, B_pad - B), (0, Hp - H)))
    c0_p = jnp.pad(c0.astype(jnp.float32), ((0, 0), (0, B_pad - B), (0, Hp - H)))

    if fold_relayout:
        # batch pad once -> unmasked full-block stores inside the kernel
        x_in = jnp.pad(x, ((0, B_pad - B), (0, 0), (0, 0))).astype(jnp.bfloat16)
    else:
        # fallback for awkward T: one cheap, parallel XLA relayout to time-major
        x_in = jnp.pad(jnp.transpose(x, (1, 0, 2)),
                       ((0, 0), (0, B_pad - B), (0, 0))).astype(jnp.bfloat16)

    hns, cns = [], []
    layer_in = x_in
    logits_p = None
    for l in range(L):
        wih_p, whh_p, bias_p = packed["layers"][l]

        # 1) hoisted, fully parallel input projection (includes both biases)
        if l == 0 and fold_relayout:
            pre = _input_projection_first(layer_in, wih_p, bias_p, t_chunk)
        else:
            pre = _input_projection(layer_in, wih_p, bias_p, t_chunk)

        # 2) serial recurrence (classifier head fused into the top layer)
        head = (packed["out_w"], packed["out_b"]) if l == L - 1 else None
        out0, hn_p, cn_p = _lstm_layer(pre, h0_p[l], c0_p[l], whh_p,
                                       t_chunk=t_chunk, head=head)
        hns.append(hn_p[:B, :H])
        cns.append(cn_p[:B, :H])
        if l == L - 1:
            logits_p = out0                     # (B_pad, Op)
        else:
            layer_in = out0                     # (T, B_pad, Hp) bf16 time-major

    logits = logits_p[:B, :out_dim]
    return logits, (jnp.stack(hns, axis=0), jnp.stack(cns, axis=0))


# ---------------------------------------------------------------------------
# Pure-JAX reference (PyTorch LSTM semantics) for a correctness check.
# ---------------------------------------------------------------------------
def lstm_reference(params, x, h_c):
    h0, c0 = h_c
    B, T, D = x.shape
    L, _, H = h0.shape
    layer_in = x
    hns, cns = [], []
    for l in range(L):
        w_ih, w_hh, b_ih, b_hh = params["lstm"][l]
        h, c = h0[l], c0[l]
        outs = []
        for t in range(T):
            gates = layer_in[:, t, :] @ w_ih.T + b_ih + h @ w_hh.T + b_hh
            i = jax.nn.sigmoid(gates[:, 0 * H:1 * H])
            f = jax.nn.sigmoid(gates[:, 1 * H:2 * H])
            g = jnp.tanh(gates[:, 2 * H:3 * H])
            o = jax.nn.sigmoid(gates[:, 3 * H:4 * H])
            c = f * c + i * g
            h = o * jnp.tanh(c)
            outs.append(h)
        layer_in = jnp.stack(outs, axis=1)
        hns.append(h)
        cns.append(c)
    logits = layer_in[:, -1, :] @ params["out_w"].T + params["out_b"]
    return logits, (jnp.stack(hns), jnp.stack(cns))


# ---------------------------------------------------------------------------
# Deterministic parameter init (PyTorch-style uniform(-1/sqrt(H), 1/sqrt(H)))
# ---------------------------------------------------------------------------
def init_params(key, input_dim, hidden_size, num_layers, out_dim=10):
    bound = 1.0 / jnp.sqrt(hidden_size)
    params = {"lstm": []}
    for l in range(num_layers):
        d_in = input_dim if l == 0 else hidden_size
        key, k1, k2, k3, k4 = jax.random.split(key, 5)
        w_ih = jax.random.uniform(k1, (4 * hidden_size, d_in), jnp.float32, -bound, bound)
        w_hh = jax.random.uniform(k2, (4 * hidden_size, hidden_size), jnp.float32, -bound, bound)
        b_ih = jax.random.uniform(k3, (4 * hidden_size,), jnp.float32, -bound, bound)
        b_hh = jax.random.uniform(k4, (4 * hidden_size,), jnp.float32, -bound, bound)
        params["lstm"].append((w_ih, w_hh, b_ih, b_hh))
    key, k5, k6 = jax.random.split(key, 3)
    params["out_w"] = jax.random.uniform(k5, (out_dim, hidden_size), jnp.float32, -bound, bound)
    params["out_b"] = jax.random.uniform(k6, (out_dim,), jnp.float32, -bound, bound)
    return params


if __name__ == "__main__":
    B, T, D, H, L = 2, 8, 16, 32, 2

    key = jax.random.PRNGKey(0)
    key, kx, kh, kc = jax.random.split(key, 4)
    x = jax.random.normal(kx, (B, T, D), jnp.float32)
    h0 = jax.random.normal(kh, (L, B, H), jnp.float32)
    c0 = jax.random.normal(kc, (L, B, H), jnp.float32)
    params = init_params(key, D, H, L)

    packed = pack_params(params)                 # one-time weight re-layout
    jax.block_until_ready(packed)

    fwd = jax.jit(lstm_forward)
    logits, (h_n, c_n) = fwd(packed, x, (h0, c0))
    jax.block_until_ready((logits, h_n, c_n))

    assert logits.shape == (B, 10)
    assert h_n.shape == (L, B, H) and c_n.shape == (L, B, H)

    # correctness check vs pure-JAX reference (tol: bf16 MXU operands + TPU f32
    # default matmul precision are both bf16-based)
    ref_logits, (ref_hn, ref_cn) = lstm_reference(params, x, (h0, c0))
    assert jnp.allclose(logits, ref_logits, rtol=5e-2, atol=5e-2)
    assert jnp.allclose(h_n, ref_hn, rtol=5e-2, atol=5e-2)
    assert jnp.allclose(c_n, ref_cn, rtol=5e-2, atol=5e-2)

    print("KERNEL_OK")
</pallas_src>

<mosaic_0001>
module attributes {stable_mosaic.version = 11 : i64} {
  func.func @_pregate_first_kernel(%arg0: i32, %arg1: i32, %arg2: memref<8x8x16xbf16, #tpu.memory_space<vmem>>, %arg3: memref<16x512xbf16, #tpu.memory_space<vmem>>, %arg4: memref<1x512xf32, #tpu.memory_space<vmem>>, %arg5: memref<8x8x512xbf16, #tpu.memory_space<vmem>>) attributes {dimension_semantics = [#tpu.dimension_semantics<parallel>, #tpu.dimension_semantics<parallel>], iteration_bounds = array<i64: 1, 1>, scalar_prefetch = 0 : i64, scratch_operands = 0 : i64, tpu.core_type = #tpu.core_type<tc>, window_params = [{transform_indices = @transform_0, window_bounds = array<i64: 8, 8, 16>}, {pipeline_mode = #tpu.pipeline_mode<synchronous>, transform_indices = @transform_1, window_bounds = array<i64: 16, 512>}, {pipeline_mode = #tpu.pipeline_mode<synchronous>, transform_indices = @transform_2, window_bounds = array<i64: 1, 512>}, {transform_indices = @transform_3, window_bounds = array<i64: 8, 8, 512>}]} {
    %c0 = arith.constant 0 : index
    %c0_0 = arith.constant 0 : index
    %c0_1 = arith.constant 0 : index
    %0 = vector.load %arg2[%c0, %c0_0, %c0_1] : memref<8x8x16xbf16, #tpu.memory_space<vmem>>, vector<8x8x16xbf16>
    %1 = vector.shape_cast %0 : vector<8x8x16xbf16> to vector<64x16xbf16>
    %c0_2 = arith.constant 0 : index
    %c0_3 = arith.constant 0 : index
    %2 = vector.load %arg3[%c0_2, %c0_3] : memref<16x512xbf16, #tpu.memory_space<vmem>>, vector<16x512xbf16>
    %cst = arith.constant dense<0.000000e+00> : vector<64x512xf32>
    %3 = tpu.matmul %1, %2, %cst {dimension_numbers = #tpu.dot_dimension_numbers<[1], [0], [0], [1], [0, 0, 1, 1], [], []>} : vector<64x16xbf16>, vector<16x512xbf16>, vector<64x512xf32> -> vector<64x512xf32>
    %c0_4 = arith.constant 0 : index
    %c0_5 = arith.constant 0 : index
    %4 = vector.load %arg4[%c0_4, %c0_5] : memref<1x512xf32, #tpu.memory_space<vmem>>, vector<1x512xf32>
    %5 = vector.broadcast %4 : vector<1x512xf32> to vector<64x512xf32>
    %6 = arith.addf %3, %5 : vector<64x512xf32>
    %7 = vector.shape_cast %6 : vector<64x512xf32> to vector<8x8x512xf32>
    %8 = tpu.transpose %7, [1, 0, 2] : vector<8x8x512xf32> -> vector<8x8x512xf32>
    %9 = arith.truncf %8 : vector<8x8x512xf32> to vector<8x8x512xbf16>
    %c0_6 = arith.constant 0 : index
    %c0_7 = arith.constant 0 : index
    %c0_8 = arith.constant 0 : index
    %10 = vector.load %arg5[%c0_6, %c0_7, %c0_8] : memref<8x8x512xbf16, #tpu.memory_space<vmem>>, vector<8x8x512xbf16>
    tpu.vector_store %arg5[%c0_6, %c0_7, %c0_8], %9 {strides = array<i32>} : memref<8x8x512xbf16, #tpu.memory_space<vmem>>, vector<8x8x512xbf16>,
    return
  }
  func.func @transform_0(%arg0: i32, %arg1: i32) -> (i32, i32, i32) {
    %c0_i32 = arith.constant 0 : i32
    %c0_i32_0 = arith.constant 0 : i32
    %c0_i32_1 = arith.constant 0 : i32
    return %c0_i32, %arg0, %c0_i32_0 : i32, i32, i32
  }
  func.func @transform_1(%arg0: i32, %arg1: i32) -> (i32, i32) {
    %c0_i32 = arith.constant 0 : i32
    %c0_i32_0 = arith.constant 0 : i32
    return %c0_i32, %arg1 : i32, i32
  }
  func.func @transform_2(%arg0: i32, %arg1: i32) -> (i32, i32) {
    %c0_i32 = arith.constant 0 : i32
    %c0_i32_0 = arith.constant 0 : i32
    return %c0_i32, %arg1 : i32, i32
  }
  func.func @transform_3(%arg0: i32, %arg1: i32) -> (i32, i32, i32) {
    %c0_i32 = arith.constant 0 : i32
    %c0_i32_0 = arith.constant 0 : i32
    return %arg0, %c0_i32, %arg1 : i32, i32, i32
  }
}

module attributes {stable_mosaic.version = 11 : i64} {
  func.func @_pregate_kernel(%arg0: i32, %arg1: i32, %arg2: memref<8x8x128xbf16, #tpu.memory_space<vmem>>, %arg3: memref<128x512xbf16, #tpu.memory_space<vmem>>, %arg4: memref<1x512xf32, #tpu.memory_space<vmem>>, %arg5: memref<8x8x512xbf16, #tpu.memory_space<vmem>>) attributes {dimension_semantics = [#tpu.dimension_semantics<parallel>, #tpu.dimension_semantics<parallel>], iteration_bounds = array<i64: 1, 1>, scalar_prefetch = 0 : i64, scratch_operands = 0 : i64, tpu.core_type = #tpu.core_type<tc>, window_params = [{transform_indices = @transform_0, window_bounds = array<i64: 8, 8, 128>}, {pipeline_mode = #tpu.pipeline_mode<synchronous>, transform_indices = @transform_1, window_bounds = array<i64: 128, 512>}, {pipeline_mode = #tpu.pipeline_mode<synchronous>, transform_indices = @transform_2, window_bounds = array<i64: 1, 512>}, {transform_indices = @transform_3, window_bounds = array<i64: 8, 8, 512>}]} {
    %c0 = arith.constant 0 : index
    %c0_0 = arith.constant 0 : index
    %c0_1 = arith.constant 0 : index
    %0 = vector.load %arg2[%c0, %c0_0, %c0_1] : memref<8x8x128xbf16, #tpu.memory_space<vmem>>, vector<8x8x128xbf16>
    %1 = vector.shape_cast %0 : vector<8x8x128xbf16> to vector<64x128xbf16>
    %c0_2 = arith.constant 0 : index
    %c0_3 = arith.constant 0 : index
    %2 = vector.load %arg3[%c0_2, %c0_3] : memref<128x512xbf16, #tpu.memory_space<vmem>>, vector<128x512xbf16>
    %cst = arith.constant dense<0.000000e+00> : vector<64x512xf32>
    %3 = tpu.matmul %1, %2, %cst {dimension_numbers = #tpu.dot_dimension_numbers<[1], [0], [0], [1], [0, 0, 1, 1], [], []>} : vector<64x128xbf16>, vector<128x512xbf16>, vector<64x512xf32> -> vector<64x512xf32>
    %c0_4 = arith.constant 0 : index
    %c0_5 = arith.constant 0 : index
    %4 = vector.load %arg4[%c0_4, %c0_5] : memref<1x512xf32, #tpu.memory_space<vmem>>, vector<1x512xf32>
    %5 = vector.broadcast %4 : vector<1x512xf32> to vector<64x512xf32>
    %6 = arith.addf %3, %5 : vector<64x512xf32>
    %7 = vector.shape_cast %6 : vector<64x512xf32> to vector<8x8x512xf32>
    %8 = arith.truncf %7 : vector<8x8x512xf32> to vector<8x8x512xbf16>
    %c0_6 = arith.constant 0 : index
    %c0_7 = arith.constant 0 : index
    %c0_8 = arith.constant 0 : index
    %9 = vector.load %arg5[%c0_6, %c0_7, %c0_8] : memref<8x8x512xbf16, #tpu.memory_space<vmem>>, vector<8x8x512xbf16>
    tpu.vector_store %arg5[%c0_6, %c0_7, %c0_8], %8 {strides = array<i32>} : memref<8x8x512xbf16, #tpu.memory_space<vmem>>, vector<8x8x512xbf16>,
    return
  }
  func.func @transform_0(%arg0: i32, %arg1: i32) -> (i32, i32, i32) {
    %c0_i32 = arith.constant 0 : i32
    %c0_i32_0 = arith.constant 0 : i32
    %c0_i32_1 = arith.constant 0 : i32
    return %arg0, %c0_i32, %c0_i32_0 : i32, i32, i32
  }
  func.func @transform_1(%arg0: i32, %arg1: i32) -> (i32, i32) {
    %c0_i32 = arith.constant 0 : i32
    %c0_i32_0 = arith.constant 0 : i32
    return %c0_i32, %arg1 : i32, i32
  }
  func.func @transform_2(%arg0: i32, %arg1: i32) -> (i32, i32) {
    %c0_i32 = arith.constant 0 : i32
    %c0_i32_0 = arith.constant 0 : i32
    return %c0_i32, %arg1 : i32, i32
  }
  func.func @transform_3(%arg0: i32, %arg1: i32) -> (i32, i32, i32) {
    %c0_i32 = arith.constant 0 : i32
    %c0_i32_0 = arith.constant 0 : i32
    return %arg0, %c0_i32, %arg1 : i32, i32, i32
  }
}

module attributes {stable_mosaic.version = 11 : i64} {
  func.func @_lstm_recurrent_kernel(%arg0: i32, %arg1: memref<8x8x512xbf16, #tpu.memory_space<vmem>>, %arg2: memref<8x128xf32, #tpu.memory_space<vmem>>, %arg3: memref<8x128xf32, #tpu.memory_space<vmem>>, %arg4: memref<128x512xbf16, #tpu.memory_space<vmem>>, %arg5: memref<8x8x128xbf16, #tpu.memory_space<vmem>>, %arg6: memref<8x128xf32, #tpu.memory_space<vmem>>, %arg7: memref<8x128xf32, #tpu.memory_space<vmem>>, %arg8: memref<8x128xf32, #tpu.memory_space<vmem>>, %arg9: memref<8x128xf32, #tpu.memory_space<vmem>>) attributes {dimension_semantics = [#tpu.dimension_semantics<arbitrary>], iteration_bounds = array<i64: 1>, scalar_prefetch = 0 : i64, scratch_operands = 2 : i64, tpu.core_type = #tpu.core_type<tc>, window_params = [{transform_indices = @transform_0, window_bounds = array<i64: 8, 8, 512>}, {pipeline_mode = #tpu.pipeline_mode<synchronous>, transform_indices = @transform_1, window_bounds = array<i64: 8, 128>}, {pipeline_mode = #tpu.pipeline_mode<synchronous>, transform_indices = @transform_2, window_bounds = array<i64: 8, 128>}, {pipeline_mode = #tpu.pipeline_mode<synchronous>, transform_indices = @transform_3, window_bounds = array<i64: 128, 512>}, {transform_indices = @transform_4, window_bounds = array<i64: 8, 8, 128>}, {pipeline_mode = #tpu.pipeline_mode<synchronous>, transform_indices = @transform_5, window_bounds = array<i64: 8, 128>}, {pipeline_mode = #tpu.pipeline_mode<synchronous>, transform_indices = @transform_6, window_bounds = array<i64: 8, 128>}]} {
    %c0_i32 = arith.constant 0 : i32
    %0 = arith.cmpi eq, %arg0, %c0_i32 : i32
    %1 = arith.extui %0 : i1 to i32
    %c0_i32_0 = arith.constant 0 : i32
    %2 = arith.cmpi ne, %1, %c0_i32_0 : i32
    scf.if %2 {
      %c0_60 = arith.constant 0 : index
      %c0_61 = arith.constant 0 : index
      %235 = vector.load %arg2[%c0_60, %c0_61] : memref<8x128xf32, #tpu.memory_space<vmem>>, vector<8x128xf32>
      %c0_62 = arith.constant 0 : index
      %c0_63 = arith.constant 0 : index
      %236 = vector.load %arg8[%c0_62, %c0_63] : memref<8x128xf32, #tpu.memory_space<vmem>>, vector<8x128xf32>
      tpu.vector_store %arg8[%c0_62, %c0_63], %235 {strides = array<i32>} : memref<8x128xf32, #tpu.memory_space<vmem>>, vector<8x128xf32>,
      %c0_64 = arith.constant 0 : index
      %c0_65 = arith.constant 0 : index
      %237 = vector.load %arg3[%c0_64, %c0_65] : memref<8x128xf32, #tpu.memory_space<vmem>>, vector<8x128xf32>
      %c0_66 = arith.constant 0 : index
      %c0_67 = arith.constant 0 : index
      %238 = vector.load %arg9[%c0_66, %c0_67] : memref<8x128xf32, #tpu.memory_space<vmem>>, vector<8x128xf32>
      tpu.vector_store %arg9[%c0_66, %c0_67], %237 {strides = array<i32>} : memref<8x128xf32, #tpu.memory_space<vmem>>, vector<8x128xf32>,
    } else {
    }
    %c0 = arith.constant 0 : index
    %c0_1 = arith.constant 0 : index
    %3 = vector.load %arg4[%c0, %c0_1] : memref<128x512xbf16, #tpu.memory_space<vmem>>, vector<128x512xbf16>
    %c0_2 = arith.constant 0 : index
    %c0_3 = arith.constant 0 : index
    %4 = vector.load %arg8[%c0_2, %c0_3] : memref<8x128xf32, #tpu.memory_space<vmem>>, vector<8x128xf32>
    %c0_4 = arith.constant 0 : index
    %c0_5 = arith.constant 0 : index
    %5 = vector.load %arg9[%c0_4, %c0_5] : memref<8x128xf32, #tpu.memory_space<vmem>>, vector<8x128xf32>
    %c0_i32_6 = arith.constant 0 : i32
    %6 = arith.index_cast %c0_i32_6 : i32 to index
    %c0_7 = arith.constant 0 : index
    %c0_8 = arith.constant 0 : index
    %7 = vector.load %arg1[%6, %c0_7, %c0_8] : memref<8x8x512xbf16, #tpu.memory_space<vmem>>, vector<1x8x512xbf16>
    %8 = vector.shape_cast %7 : vector<1x8x512xbf16> to vector<8x512xbf16>
    %9 = arith.extf %8 : vector<8x512xbf16> to vector<8x512xf32>
    %10 = arith.truncf %4 : vector<8x128xf32> to vector<8x128xbf16>
    %cst = arith.constant dense<0.000000e+00> : vector<8x512xf32>
    %11 = tpu.matmul %10, %3, %cst {dimension_numbers = #tpu.dot_dimension_numbers<[1], [0], [0], [1], [0, 0, 1, 1], [], []>} : vector<8x128xbf16>, vector<128x512xbf16>, vector<8x512xf32> -> vector<8x512xf32>
    %12 = arith.addf %9, %11 : vector<8x512xf32>
    %13 = vector.extract_strided_slice %12 {offsets = [0, 0], sizes = [8, 384], strides = [1, 1]} : vector<8x512xf32> to vector<8x384xf32>
    %14 = arith.negf %13 : vector<8x384xf32>
    %15 = math.exp %14 : vector<8x384xf32>
    %cst_9 = arith.constant 1.000000e+00 : f32
    %16 = vector.broadcast %cst_9 : f32 to vector<8x384xf32>
    %17 = arith.addf %16, %15 : vector<8x384xf32>
    %18 = arith.divf %16, %17 : vector<8x384xf32>
    %19 = vector.extract_strided_slice %18 {offsets = [0, 0], sizes = [8, 128], strides = [1, 1]} : vector<8x384xf32> to vector<8x128xf32>
    %20 = vector.extract_strided_slice %18 {offsets = [0, 128], sizes = [8, 128], strides = [1, 1]} : vector<8x384xf32> to vector<8x128xf32>
    %21 = vector.extract_strided_slice %18 {offsets = [0, 256], sizes = [8, 128], strides = [1, 1]} : vector<8x384xf32> to vector<8x128xf32>
    %22 = vector.extract_strided_slice %12 {offsets = [0, 384], sizes = [8, 128], strides = [1, 1]} : vector<8x512xf32> to vector<8x128xf32>
    %23 = math.tanh %22 : vector<8x128xf32>
    %24 = arith.mulf %20, %5 : vector<8x128xf32>
    %25 = arith.mulf %19, %23 : vector<8x128xf32>
    %26 = arith.addf %24, %25 : vector<8x128xf32>
    %27 = math.tanh %26 : vector<8x128xf32>
    %28 = arith.mulf %21, %27 : vector<8x128xf32>
    %29 = arith.truncf %28 : vector<8x128xf32> to vector<8x128xbf16>
    %30 = arith.index_cast %c0_i32_6 : i32 to index
    %c0_10 = arith.constant 0 : index
    %c0_11 = arith.constant 0 : index
    %31 = vector.load %arg5[%30, %c0_10, %c0_11] : memref<8x8x128xbf16, #tpu.memory_space<vmem>>, vector<1x8x128xbf16>
    %32 = vector.shape_cast %31 : vector<1x8x128xbf16> to vector<8x128xbf16>
    %33 = vector.shape_cast %29 : vector<8x128xbf16> to vector<1x8x128xbf16>
    tpu.vector_store %arg5[%30, %c0_10, %c0_11], %33 {strides = array<i32>} : memref<8x8x128xbf16, #tpu.memory_space<vmem>>, vector<1x8x128xbf16>,
    %c1_i32 = arith.constant 1 : i32
    %34 = arith.index_cast %c1_i32 : i32 to index
    %c0_12 = arith.constant 0 : index
    %c0_13 = arith.constant 0 : index
    %35 = vector.load %arg1[%34, %c0_12, %c0_13] : memref<8x8x512xbf16, #tpu.memory_space<vmem>>, vector<1x8x512xbf16>
    %36 = vector.shape_cast %35 : vector<1x8x512xbf16> to vector<8x512xbf16>
    %37 = arith.extf %36 : vector<8x512xbf16> to vector<8x512xf32>
    %38 = arith.truncf %28 : vector<8x128xf32> to vector<8x128xbf16>
    %cst_14 = arith.constant dense<0.000000e+00> : vector<8x512xf32>
    %39 = tpu.matmul %38, %3, %cst_14 {dimension_numbers = #tpu.dot_dimension_numbers<[1], [0], [0], [1], [0, 0, 1, 1], [], []>} : vector<8x128xbf16>, vector<128x512xbf16>, vector<8x512xf32> -> vector<8x512xf32>
    %40 = arith.addf %37, %39 : vector<8x512xf32>
    %41 = vector.extract_strided_slice %40 {offsets = [0, 0], sizes = [8, 384], strides = [1, 1]} : vector<8x512xf32> to vector<8x384xf32>
    %42 = arith.negf %41 : vector<8x384xf32>
    %43 = math.exp %42 : vector<8x384xf32>
    %cst_15 = arith.constant 1.000000e+00 : f32
    %44 = vector.broadcast %cst_15 : f32 to vector<8x384xf32>
    %45 = arith.addf %44, %43 : vector<8x384xf32>
    %46 = arith.divf %44, %45 : vector<8x384xf32>
    %47 = vector.extract_strided_slice %46 {offsets = [0, 0], sizes = [8, 128], strides = [1, 1]} : vector<8x384xf32> to vector<8x128xf32>
    %48 = vector.extract_strided_slice %46 {offsets = [0, 128], sizes = [8, 128], strides = [1, 1]} : vector<8x384xf32> to vector<8x128xf32>
    %49 = vector.extract_strided_slice %46 {offsets = [0, 256], sizes = [8, 128], strides = [1, 1]} : vector<8x384xf32> to vector<8x128xf32>
    %50 = vector.extract_strided_slice %40 {offsets = [0, 384], sizes = [8, 128], strides = [1, 1]} : vector<8x512xf32> to vector<8x128xf32>
    %51 = math.tanh %50 : vector<8x128xf32>
    %52 = arith.mulf %48, %26 : vector<8x128xf32>
    %53 = arith.mulf %47, %51 : vector<8x128xf32>
    %54 = arith.addf %52, %53 : vector<8x128xf32>
    %55 = math.tanh %54 : vector<8x128xf32>
    %56 = arith.mulf %49, %55 : vector<8x128xf32>
    %57 = arith.truncf %56 : vector<8x128xf32> to vector<8x128xbf16>
    %58 = arith.index_cast %c1_i32 : i32 to index
    %c0_16 = arith.constant 0 : index
    %c0_17 = arith.constant 0 : index
    %59 = vector.load %arg5[%58, %c0_16, %c0_17] : memref<8x8x128xbf16, #tpu.memory_space<vmem>>, vector<1x8x128xbf16>
    %60 = vector.shape_cast %59 : vector<1x8x128xbf16> to vector<8x128xbf16>
    %61 = vector.shape_cast %57 : vector<8x128xbf16> to vector<1x8x128xbf16>
    tpu.vector_store %arg5[%58, %c0_16, %c0_17], %61 {strides = array<i32>} : memref<8x8x128xbf16, #tpu.memory_space<vmem>>, vector<1x8x128xbf16>,
    %c2_i32 = arith.constant 2 : i32
    %62 = arith.index_cast %c2_i32 : i32 to index
    %c0_18 = arith.constant 0 : index
    %c0_19 = arith.constant 0 : index
    %63 = vector.load %arg1[%62, %c0_18, %c0_19] : memref<8x8x512xbf16, #tpu.memory_space<vmem>>, vector<1x8x512xbf16>
    %64 = vector.shape_cast %63 : vector<1x8x512xbf16> to vector<8x512xbf16>
    %65 = arith.extf %64 : vector<8x512xbf16> to vector<8x512xf32>
    %66 = arith.truncf %56 : vector<8x128xf32> to vector<8x128xbf16>
    %cst_20 = arith.constant dense<0.000000e+00> : vector<8x512xf32>
    %67 = tpu.matmul %66, %3, %cst_20 {dimension_numbers = #tpu.dot_dimension_numbers<[1], [0], [0], [1], [0, 0, 1, 1], [], []>} : vector<8x128xbf16>, vector<128x512xbf16>, vector<8x512xf32> -> vector<8x512xf32>
    %68 = arith.addf %65, %67 : vector<8x512xf32>
    %69 = vector.extract_strided_slice %68 {offsets = [0, 0], sizes = [8, 384], strides = [1, 1]} : vector<8x512xf32> to vector<8x384xf32>
    %70 = arith.negf %69 : vector<8x384xf32>
    %71 = math.exp %70 : vector<8x384xf32>
    %cst_21 = arith.constant 1.000000e+00 : f32
    %72 = vector.broadcast %cst_21 : f32 to vector<8x384xf32>
    %73 = arith.addf %72, %71 : vector<8x384xf32>
    %74 = arith.divf %72, %73 : vector<8x384xf32>
    %75 = vector.extract_strided_slice %74 {offsets = [0, 0], sizes = [8, 128], strides = [1, 1]} : vector<8x384xf32> to vector<8x128xf32>
    %76 = vector.extract_strided_slice %74 {offsets = [0, 128], sizes = [8, 128], strides = [1, 1]} : vector<8x384xf32> to vector<8x128xf32>
    %77 = vector.extract_strided_slice %74 {offsets = [0, 256], sizes = [8, 128], strides = [1, 1]} : vector<8x384xf32> to vector<8x128xf32>
    %78 = vector.extract_strided_slice %68 {offsets = [0, 384], sizes = [8, 128], strides = [1, 1]} : vector<8x512xf32> to vector<8x128xf32>
    %79 = math.tanh %78 : vector<8x128xf32>
    %80 = arith.mulf %76, %54 : vector<8x128xf32>
    %81 = arith.mulf %75, %79 : vector<8x128xf32>
    %82 = arith.addf %80, %81 : vector<8x128xf32>
    %83 = math.tanh %82 : vector<8x128xf32>
    %84 = arith.mulf %77, %83 : vector<8x128xf32>
    %85 = arith.truncf %84 : vector<8x128xf32> to vector<8x128xbf16>
    %86 = arith.index_cast %c2_i32 : i32 to index
    %c0_22 = arith.constant 0 : index
    %c0_23 = arith.constant 0 : index
    %87 = vector.load %arg5[%86, %c0_22, %c0_23] : memref<8x8x128xbf16, #tpu.memory_space<vmem>>, vector<1x8x128xbf16>
    %88 = vector.shape_cast %87 : vector<1x8x128xbf16> to vector<8x128xbf16>
    %89 = vector.shape_cast %85 : vector<8x128xbf16> to vector<1x8x128xbf16>
    tpu.vector_store %arg5[%86, %c0_22, %c0_23], %89 {strides = array<i32>} : memref<8x8x128xbf16, #tpu.memory_space<vmem>>, vector<1x8x128xbf16>,
    %c3_i32 = arith.constant 3 : i32
    %90 = arith.index_cast %c3_i32 : i32 to index
    %c0_24 = arith.constant 0 : index
    %c0_25 = arith.constant 0 : index
    %91 = vector.load %arg1[%90, %c0_24, %c0_25] : memref<8x8x512xbf16, #tpu.memory_space<vmem>>, vector<1x8x512xbf16>
    %92 = vector.shape_cast %91 : vector<1x8x512xbf16> to vector<8x512xbf16>
    %93 = arith.extf %92 : vector<8x512xbf16> to vector<8x512xf32>
    %94 = arith.truncf %84 : vector<8x128xf32> to vector<8x128xbf16>
    %cst_26 = arith.constant dense<0.000000e+00> : vector<8x512xf32>
    %95 = tpu.matmul %94, %3, %cst_26 {dimension_numbers = #tpu.dot_dimension_numbers<[1], [0], [0], [1], [0, 0, 1, 1], [], []>} : vector<8x128xbf16>, vector<128x512xbf16>, vector<8x512xf32> -> vector<8x512xf32>
    %96 = arith.addf %93, %95 : vector<8x512xf32>
    %97 = vector.extract_strided_slice %96 {offsets = [0, 0], sizes = [8, 384], strides = [1, 1]} : vector<8x512xf32> to vector<8x384xf32>
    %98 = arith.negf %97 : vector<8x384xf32>
    %99 = math.exp %98 : vector<8x384xf32>
    %cst_27 = arith.constant 1.000000e+00 : f32
    %100 = vector.broadcast %cst_27 : f32 to vector<8x384xf32>
    %101 = arith.addf %100, %99 : vector<8x384xf32>
    %102 = arith.divf %100, %101 : vector<8x384xf32>
    %103 = vector.extract_strided_slice %102 {offsets = [0, 0], sizes = [8, 128], strides = [1, 1]} : vector<8x384xf32> to vector<8x128xf32>
    %104 = vector.extract_strided_slice %102 {offsets = [0, 128], sizes = [8, 128], strides = [1, 1]} : vector<8x384xf32> to vector<8x128xf32>
    %105 = vector.extract_strided_slice %102 {offsets = [0, 256], sizes = [8, 128], strides = [1, 1]} : vector<8x384xf32> to vector<8x128xf32>
    %106 = vector.extract_strided_slice %96 {offsets = [0, 384], sizes = [8, 128], strides = [1, 1]} : vector<8x512xf32> to vector<8x128xf32>
    %107 = math.tanh %106 : vector<8x128xf32>
    %108 = arith.mulf %104, %82 : vector<8x128xf32>
    %109 = arith.mulf %103, %107 : vector<8x128xf32>
    %110 = arith.addf %108, %109 : vector<8x128xf32>
    %111 = math.tanh %110 : vector<8x128xf32>
    %112 = arith.mulf %105, %111 : vector<8x128xf32>
    %113 = arith.truncf %112 : vector<8x128xf32> to vector<8x128xbf16>
    %114 = arith.index_cast %c3_i32 : i32 to index
    %c0_28 = arith.constant 0 : index
    %c0_29 = arith.constant 0 : index
    %115 = vector.load %arg5[%114, %c0_28, %c0_29] : memref<8x8x128xbf16, #tpu.memory_space<vmem>>, vector<1x8x128xbf16>
    %116 = vector.shape_cast %115 : vector<1x8x128xbf16> to vector<8x128xbf16>
    %117 = vector.shape_cast %113 : vector<8x128xbf16> to vector<1x8x128xbf16>
    tpu.vector_store %arg5[%114, %c0_28, %c0_29], %117 {strides = array<i32>} : memref<8x8x128xbf16, #tpu.memory_space<vmem>>, vector<1x8x128xbf16>,
    %c4_i32 = arith.constant 4 : i32
    %118 = arith.index_cast %c4_i32 : i32 to index
    %c0_30 = arith.constant 0 : index
    %c0_31 = arith.constant 0 : index
    %119 = vector.load %arg1[%118, %c0_30, %c0_31] : memref<8x8x512xbf16, #tpu.memory_space<vmem>>, vector<1x8x512xbf16>
    %120 = vector.shape_cast %119 : vector<1x8x512xbf16> to vector<8x512xbf16>
    %121 = arith.extf %120 : vector<8x512xbf16> to vector<8x512xf32>
    %122 = arith.truncf %112 : vector<8x128xf32> to vector<8x128xbf16>
    %cst_32 = arith.constant dense<0.000000e+00> : vector<8x512xf32>
    %123 = tpu.matmul %122, %3, %cst_32 {dimension_numbers = #tpu.dot_dimension_numbers<[1], [0], [0], [1], [0, 0, 1, 1], [], []>} : vector<8x128xbf16>, vector<128x512xbf16>, vector<8x512xf32> -> vector<8x512xf32>
    %124 = arith.addf %121, %123 : vector<8x512xf32>
    %125 = vector.extract_strided_slice %124 {offsets = [0, 0], sizes = [8, 384], strides = [1, 1]} : vector<8x512xf32> to vector<8x384xf32>
    %126 = arith.negf %125 : vector<8x384xf32>
    %127 = math.exp %126 : vector<8x384xf32>
    %cst_33 = arith.constant 1.000000e+00 : f32
    %128 = vector.broadcast %cst_33 : f32 to vector<8x384xf32>
    %129 = arith.addf %128, %127 : vector<8x384xf32>
    %130 = arith.divf %128, %129 : vector<8x384xf32>
    %131 = vector.extract_strided_slice %130 {offsets = [0, 0], sizes = [8, 128], strides = [1, 1]} : vector<8x384xf32> to vector<8x128xf32>
    %132 = vector.extract_strided_slice %130 {offsets = [0, 128], sizes = [8, 128], strides = [1, 1]} : vector<8x384xf32> to vector<8x128xf32>
    %133 = vector.extract_strided_slice %130 {offsets = [0, 256], sizes = [8, 128], strides = [1, 1]} : vector<8x384xf32> to vector<8x128xf32>
    %134 = vector.extract_strided_slice %124 {offsets = [0, 384], sizes = [8, 128], strides = [1, 1]} : vector<8x512xf32> to vector<8x128xf32>
    %135 = math.tanh %134 : vector<8x128xf32>
    %136 = arith.mulf %132, %110 : vector<8x128xf32>
    %137 = arith.mulf %131, %135 : vector<8x128xf32>
    %138 = arith.addf %136, %137 : vector<8x128xf32>
    %139 = math.tanh %138 : vector<8x128xf32>
    %140 = arith.mulf %133, %139 : vector<8x128xf32>
    %141 = arith.truncf %140 : vector<8x128xf32> to vector<8x128xbf16>
    %142 = arith.index_cast %c4_i32 : i32 to index
    %c0_34 = arith.constant 0 : index
    %c0_35 = arith.constant 0 : index
    %143 = vector.load %arg5[%142, %c0_34, %c0_35] : memref<8x8x128xbf16, #tpu.memory_space<vmem>>, vector<1x8x128xbf16>
    %144 = vector.shape_cast %143 : vector<1x8x128xbf16> to vector<8x128xbf16>
    %145 = vector.shape_cast %141 : vector<8x128xbf16> to vector<1x8x128xbf16>
    tpu.vector_store %arg5[%142, %c0_34, %c0_35], %145 {strides = array<i32>} : memref<8x8x128xbf16, #tpu.memory_space<vmem>>, vector<1x8x128xbf16>,
    %c5_i32 = arith.constant 5 : i32
    %146 = arith.index_cast %c5_i32 : i32 to index
    %c0_36 = arith.constant 0 : index
    %c0_37 = arith.constant 0 : index
    %147 = vector.load %arg1[%146, %c0_36, %c0_37] : memref<8x8x512xbf16, #tpu.memory_space<vmem>>, vector<1x8x512xbf16>
    %148 = vector.shape_cast %147 : vector<1x8x512xbf16> to vector<8x512xbf16>
    %149 = arith.extf %148 : vector<8x512xbf16> to vector<8x512xf32>
    %150 = arith.truncf %140 : vector<8x128xf32> to vector<8x128xbf16>
    %cst_38 = arith.constant dense<0.000000e+00> : vector<8x512xf32>
    %151 = tpu.matmul %150, %3, %cst_38 {dimension_numbers = #tpu.dot_dimension_numbers<[1], [0], [0], [1], [0, 0, 1, 1], [], []>} : vector<8x128xbf16>, vector<128x512xbf16>, vector<8x512xf32> -> vector<8x512xf32>
    %152 = arith.addf %149, %151 : vector<8x512xf32>
    %153 = vector.extract_strided_slice %152 {offsets = [0, 0], sizes = [8, 384], strides = [1, 1]} : vector<8x512xf32> to vector<8x384xf32>
    %154 = arith.negf %153 : vector<8x384xf32>
    %155 = math.exp %154 : vector<8x384xf32>
    %cst_39 = arith.constant 1.000000e+00 : f32
    %156 = vector.broadcast %cst_39 : f32 to vector<8x384xf32>
    %157 = arith.addf %156, %155 : vector<8x384xf32>
    %158 = arith.divf %156, %157 : vector<8x384xf32>
    %159 = vector.extract_strided_slice %158 {offsets = [0, 0], sizes = [8, 128], strides = [1, 1]} : vector<8x384xf32> to vector<8x128xf32>
    %160 = vector.extract_strided_slice %158 {offsets = [0, 128], sizes = [8, 128], strides = [1, 1]} : vector<8x384xf32> to vector<8x128xf32>
    %161 = vector.extract_strided_slice %158 {offsets = [0, 256], sizes = [8, 128], strides = [1, 1]} : vector<8x384xf32> to vector<8x128xf32>
    %162 = vector.extract_strided_slice %152 {offsets = [0, 384], sizes = [8, 128], strides = [1, 1]} : vector<8x512xf32> to vector<8x128xf32>
    %163 = math.tanh %162 : vector<8x128xf32>
    %164 = arith.mulf %160, %138 : vector<8x128xf32>
    %165 = arith.mulf %159, %163 : vector<8x128xf32>
    %166 = arith.addf %164, %165 : vector<8x128xf32>
    %167 = math.tanh %166 : vector<8x128xf32>
    %168 = arith.mulf %161, %167 : vector<8x128xf32>
    %169 = arith.truncf %168 : vector<8x128xf32> to vector<8x128xbf16>
    %170 = arith.index_cast %c5_i32 : i32 to index
    %c0_40 = arith.constant 0 : index
    %c0_41 = arith.constant 0 : index
    %171 = vector.load %arg5[%170, %c0_40, %c0_41] : memref<8x8x128xbf16, #tpu.memory_space<vmem>>, vector<1x8x128xbf16>
    %172 = vector.shape_cast %171 : vector<1x8x128xbf16> to vector<8x128xbf16>
    %173 = vector.shape_cast %169 : vector<8x128xbf16> to vector<1x8x128xbf16>
    tpu.vector_store %arg5[%170, %c0_40, %c0_41], %173 {strides = array<i32>} : memref<8x8x128xbf16, #tpu.memory_space<vmem>>, vector<1x8x128xbf16>,
    %c6_i32 = arith.constant 6 : i32
    %174 = arith.index_cast %c6_i32 : i32 to index
    %c0_42 = arith.constant 0 : index
    %c0_43 = arith.constant 0 : index
    %175 = vector.load %arg1[%174, %c0_42, %c0_43] : memref<8x8x512xbf16, #tpu.memory_space<vmem>>, vector<1x8x512xbf16>
    %176 = vector.shape_cast %175 : vector<1x8x512xbf16> to vector<8x512xbf16>
    %177 = arith.extf %176 : vector<8x512xbf16> to vector<8x512xf32>
    %178 = arith.truncf %168 : vector<8x128xf32> to vector<8x128xbf16>
    %cst_44 = arith.constant dense<0.000000e+00> : vector<8x512xf32>
    %179 = tpu.matmul %178, %3, %cst_44 {dimension_numbers = #tpu.dot_dimension_numbers<[1], [0], [0], [1], [0, 0, 1, 1], [], []>} : vector<8x128xbf16>, vector<128x512xbf16>, vector<8x512xf32> -> vector<8x512xf32>
    %180 = arith.addf %177, %179 : vector<8x512xf32>
    %181 = vector.extract_strided_slice %180 {offsets = [0, 0], sizes = [8, 384], strides = [1, 1]} : vector<8x512xf32> to vector<8x384xf32>
    %182 = arith.negf %181 : vector<8x384xf32>
    %183 = math.exp %182 : vector<8x384xf32>
    %cst_45 = arith.constant 1.000000e+00 : f32
    %184 = vector.broadcast %cst_45 : f32 to vector<8x384xf32>
    %185 = arith.addf %184, %183 : vector<8x384xf32>
    %186 = arith.divf %184, %185 : vector<8x384xf32>
    %187 = vector.extract_strided_slice %186 {offsets = [0, 0], sizes = [8, 128], strides = [1, 1]} : vector<8x384xf32> to vector<8x128xf32>
    %188 = vector.extract_strided_slice %186 {offsets = [0, 128], sizes = [8, 128], strides = [1, 1]} : vector<8x384xf32> to vector<8x128xf32>
    %189 = vector.extract_strided_slice %186 {offsets = [0, 256], sizes = [8, 128], strides = [1, 1]} : vector<8x384xf32> to vector<8x128xf32>
    %190 = vector.extract_strided_slice %180 {offsets = [0, 384], sizes = [8, 128], strides = [1, 1]} : vector<8x512xf32> to vector<8x128xf32>
    %191 = math.tanh %190 : vector<8x128xf32>
    %192 = arith.mulf %188, %166 : vector<8x128xf32>
    %193 = arith.mulf %187, %191 : vector<8x128xf32>
    %194 = arith.addf %192, %193 : vector<8x128xf32>
    %195 = math.tanh %194 : vector<8x128xf32>
    %196 = arith.mulf %189, %195 : vector<8x128xf32>
    %197 = arith.truncf %196 : vector<8x128xf32> to vector<8x128xbf16>
    %198 = arith.index_cast %c6_i32 : i32 to index
    %c0_46 = arith.constant 0 : index
    %c0_47 = arith.constant 0 : index
    %199 = vector.load %arg5[%198, %c0_46, %c0_47] : memref<8x8x128xbf16, #tpu.memory_space<vmem>>, vector<1x8x128xbf16>
    %200 = vector.shape_cast %199 : vector<1x8x128xbf16> to vector<8x128xbf16>
    %201 = vector.shape_cast %197 : vector<8x128xbf16> to vector<1x8x128xbf16>
    tpu.vector_store %arg5[%198, %c0_46, %c0_47], %201 {strides = array<i32>} : memref<8x8x128xbf16, #tpu.memory_space<vmem>>, vector<1x8x128xbf16>,
    %c7_i32 = arith.constant 7 : i32
    %202 = arith.index_cast %c7_i32 : i32 to index
    %c0_48 = arith.constant 0 : index
    %c0_49 = arith.constant 0 : index
    %203 = vector.load %arg1[%202, %c0_48, %c0_49] : memref<8x8x512xbf16, #tpu.memory_space<vmem>>, vector<1x8x512xbf16>
    %204 = vector.shape_cast %203 : vector<1x8x512xbf16> to vector<8x512xbf16>
    %205 = arith.extf %204 : vector<8x512xbf16> to vector<8x512xf32>
    %206 = arith.truncf %196 : vector<8x128xf32> to vector<8x128xbf16>
    %cst_50 = arith.constant dense<0.000000e+00> : vector<8x512xf32>
    %207 = tpu.matmul %206, %3, %cst_50 {dimension_numbers = #tpu.dot_dimension_numbers<[1], [0], [0], [1], [0, 0, 1, 1], [], []>} : vector<8x128xbf16>, vector<128x512xbf16>, vector<8x512xf32> -> vector<8x512xf32>
    %208 = arith.addf %205, %207 : vector<8x512xf32>
    %209 = vector.extract_strided_slice %208 {offsets = [0, 0], sizes = [8, 384], strides = [1, 1]} : vector<8x512xf32> to vector<8x384xf32>
    %210 = arith.negf %209 : vector<8x384xf32>
    %211 = math.exp %210 : vector<8x384xf32>
    %cst_51 = arith.constant 1.000000e+00 : f32
    %212 = vector.broadcast %cst_51 : f32 to vector<8x384xf32>
    %213 = arith.addf %212, %211 : vector<8x384xf32>
    %214 = arith.divf %212, %213 : vector<8x384xf32>
    %215 = vector.extract_strided_slice %214 {offsets = [0, 0], sizes = [8, 128], strides = [1, 1]} : vector<8x384xf32> to vector<8x128xf32>
    %216 = vector.extract_strided_slice %214 {offsets = [0, 128], sizes = [8, 128], strides = [1, 1]} : vector<8x384xf32> to vector<8x128xf32>
    %217 = vector.extract_strided_slice %214 {offsets = [0, 256], sizes = [8, 128], strides = [1, 1]} : vector<8x384xf32> to vector<8x128xf32>
    %218 = vector.extract_strided_slice %208 {offsets = [0, 384], sizes = [8, 128], strides = [1, 1]} : vector<8x512xf32> to vector<8x128xf32>
    %219 = math.tanh %218 : vector<8x128xf32>
    %220 = arith.mulf %216, %194 : vector<8x128xf32>
    %221 = arith.mulf %215, %219 : vector<8x128xf32>
    %222 = arith.addf %220, %221 : vector<8x128xf32>
    %223 = math.tanh %222 : vector<8x128xf32>
    %224 = arith.mulf %217, %223 : vector<8x128xf32>
    %225 = arith.truncf %224 : vector<8x128xf32> to vector<8x128xbf16>
    %226 = arith.index_cast %c7_i32 : i32 to index
    %c0_52 = arith.constant 0 : index
    %c0_53 = arith.constant 0 : index
    %227 = vector.load %arg5[%226, %c0_52, %c0_53] : memref<8x8x128xbf16, #tpu.memory_space<vmem>>, vector<1x8x128xbf16>
    %228 = vector.shape_cast %227 : vector<1x8x128xbf16> to vector<8x128xbf16>
    %229 = vector.shape_cast %225 : vector<8x128xbf16> to vector<1x8x128xbf16>
    tpu.vector_store %arg5[%226, %c0_52, %c0_53], %229 {strides = array<i32>} : memref<8x8x128xbf16, #tpu.memory_space<vmem>>, vector<1x8x128xbf16>,
    %c8_i32 = arith.constant 8 : i32
    %c0_54 = arith.constant 0 : index
    %c0_55 = arith.constant 0 : index
    %230 = vector.load %arg8[%c0_54, %c0_55] : memref<8x128xf32, #tpu.memory_space<vmem>>, vector<8x128xf32>
    tpu.vector_store %arg8[%c0_54, %c0_55], %224 {strides = array<i32>} : memref<8x128xf32, #tpu.memory_space<vmem>>, vector<8x128xf32>,
    %c0_56 = arith.constant 0 : index
    %c0_57 = arith.constant 0 : index
    %231 = vector.load %arg9[%c0_56, %c0_57] : memref<8x128xf32, #tpu.memory_space<vmem>>, vector<8x128xf32>
    tpu.vector_store %arg9[%c0_56, %c0_57], %222 {strides = array<i32>} : memref<8x128xf32, #tpu.memory_space<vmem>>, vector<8x128xf32>,
    %c0_i32_58 = arith.constant 0 : i32
    %232 = arith.cmpi eq, %arg0, %c0_i32_58 : i32
    %233 = arith.extui %232 : i1 to i32
    %c0_i32_59 = arith.constant 0 : i32
    %234 = arith.cmpi ne, %233, %c0_i32_59 : i32
    scf.if %234 {
      %c0_60 = arith.constant 0 : index
      %c0_61 = arith.constant 0 : index
      %235 = vector.load %arg6[%c0_60, %c0_61] : memref<8x128xf32, #tpu.memory_space<vmem>>, vector<8x128xf32>
      tpu.vector_store %arg6[%c0_60, %c0_61], %224 {strides = array<i32>} : memref<8x128xf32, #tpu.memory_space<vmem>>, vector<8x128xf32>,
      %c0_62 = arith.constant 0 : index
      %c0_63 = arith.constant 0 : index
      %236 = vector.load %arg7[%c0_62, %c0_63] : memref<8x128xf32, #tpu.memory_space<vmem>>, vector<8x128xf32>
      tpu.vector_store %arg7[%c0_62, %c0_63], %222 {strides = array<i32>} : memref<8x128xf32, #tpu.memory_space<vmem>>, vector<8x128xf32>,
    } else {
    }
    return
  }
  func.func @transform_0(%arg0: i32) -> (i32, i32, i32) {
    %c0_i32 = arith.constant 0 : i32
    %c0_i32_0 = arith.constant 0 : i32
    %c0_i32_1 = arith.constant 0 : i32
    return %arg0, %c0_i32, %c0_i32_0 : i32, i32, i32
  }
  func.func @transform_1(%arg0: i32) -> (i32, i32) {
    %c0_i32 = arith.constant 0 : i32
    %c0_i32_0 = arith.constant 0 : i32
    %c0_i32_1 = arith.constant 0 : i32
    return %c0_i32, %c0_i32_0 : i32, i32
  }
  func.func @transform_2(%arg0: i32) -> (i32, i32) {
    %c0_i32 = arith.constant 0 : i32
    %c0_i32_0 = arith.constant 0 : i32
    %c0_i32_1 = arith.constant 0 : i32
    return %c0_i32, %c0_i32_0 : i32, i32
  }
  func.func @transform_3(%arg0: i32) -> (i32, i32) {
    %c0_i32 = arith.constant 0 : i32
    %c0_i32_0 = arith.constant 0 : i32
    %c0_i32_1 = arith.constant 0 : i32
    return %c0_i32, %c0_i32_0 : i32, i32
  }
  func.func @transform_4(%arg0: i32) -> (i32, i32, i32) {
    %c0_i32 = arith.constant 0 : i32
    %c0_i32_0 = arith.constant 0 : i32
    %c0_i32_1 = arith.constant 0 : i32
    return %arg0, %c0_i32, %c0_i32_0 : i32, i32, i32
  }
  func.func @transform_5(%arg0: i32) -> (i32, i32) {
    %c0_i32 = arith.constant 0 : i32
    %c0_i32_0 = arith.constant 0 : i32
    %c0_i32_1 = arith.constant 0 : i32
    return %c0_i32, %c0_i32_0 : i32, i32
  }
  func.func @transform_6(%arg0: i32) -> (i32, i32) {
    %c0_i32 = arith.constant 0 : i32
    %c0_i32_0 = arith.constant 0 : i32
    %c0_i32_1 = arith.constant 0 : i32
    return %c0_i32, %c0_i32_0 : i32, i32
  }
}

module attributes {stable_mosaic.version = 11 : i64} {
  func.func @_lstm_recurrent_kernel(%arg0: i32, %arg1: memref<8x8x512xbf16, #tpu.memory_space<vmem>>, %arg2: memref<8x128xf32, #tpu.memory_space<vmem>>, %arg3: memref<8x128xf32, #tpu.memory_space<vmem>>, %arg4: memref<128x512xbf16, #tpu.memory_space<vmem>>, %arg5: memref<128x128xf32, #tpu.memory_space<vmem>>, %arg6: memref<1x128xf32, #tpu.memory_space<vmem>>, %arg7: memref<8x128xf32, #tpu.memory_space<vmem>>, %arg8: memref<8x128xf32, #tpu.memory_space<vmem>>, %arg9: memref<8x128xf32, #tpu.memory_space<vmem>>, %arg10: memref<8x128xf32, #tpu.memory_space<vmem>>, %arg11: memref<8x128xf32, #tpu.memory_space<vmem>>) attributes {dimension_semantics = [#tpu.dimension_semantics<arbitrary>], iteration_bounds = array<i64: 1>, scalar_prefetch = 0 : i64, scratch_operands = 2 : i64, tpu.core_type = #tpu.core_type<tc>, window_params = [{transform_indices = @transform_0, window_bounds = array<i64: 8, 8, 512>}, {pipeline_mode = #tpu.pipeline_mode<synchronous>, transform_indices = @transform_1, window_bounds = array<i64: 8, 128>}, {pipeline_mode = #tpu.pipeline_mode<synchronous>, transform_indices = @transform_2, window_bounds = array<i64: 8, 128>}, {pipeline_mode = #tpu.pipeline_mode<synchronous>, transform_indices = @transform_3, window_bounds = array<i64: 128, 512>}, {pipeline_mode = #tpu.pipeline_mode<synchronous>, transform_indices = @transform_4, window_bounds = array<i64: 128, 128>}, {pipeline_mode = #tpu.pipeline_mode<synchronous>, transform_indices = @transform_5, window_bounds = array<i64: 1, 128>}, {pipeline_mode = #tpu.pipeline_mode<synchronous>, transform_indices = @transform_6, window_bounds = array<i64: 8, 128>}, {pipeline_mode = #tpu.pipeline_mode<synchronous>, transform_indices = @transform_7, window_bounds = array<i64: 8, 128>}, {pipeline_mode = #tpu.pipeline_mode<synchronous>, transform_indices = @transform_8, window_bounds = array<i64: 8, 128>}]} {
    %c0_i32 = arith.constant 0 : i32
    %0 = arith.cmpi eq, %arg0, %c0_i32 : i32
    %1 = arith.extui %0 : i1 to i32
    %c0_i32_0 = arith.constant 0 : i32
    %2 = arith.cmpi ne, %1, %c0_i32_0 : i32
    scf.if %2 {
      %c0_44 = arith.constant 0 : index
      %c0_45 = arith.constant 0 : index
      %195 = vector.load %arg2[%c0_44, %c0_45] : memref<8x128xf32, #tpu.memory_space<vmem>>, vector<8x128xf32>
      %c0_46 = arith.constant 0 : index
      %c0_47 = arith.constant 0 : index
      %196 = vector.load %arg10[%c0_46, %c0_47] : memref<8x128xf32, #tpu.memory_space<vmem>>, vector<8x128xf32>
      tpu.vector_store %arg10[%c0_46, %c0_47], %195 {strides = array<i32>} : memref<8x128xf32, #tpu.memory_space<vmem>>, vector<8x128xf32>,
      %c0_48 = arith.constant 0 : index
      %c0_49 = arith.constant 0 : index
      %197 = vector.load %arg3[%c0_48, %c0_49] : memref<8x128xf32, #tpu.memory_space<vmem>>, vector<8x128xf32>
      %c0_50 = arith.constant 0 : index
      %c0_51 = arith.constant 0 : index
      %198 = vector.load %arg11[%c0_50, %c0_51] : memref<8x128xf32, #tpu.memory_space<vmem>>, vector<8x128xf32>
      tpu.vector_store %arg11[%c0_50, %c0_51], %197 {strides = array<i32>} : memref<8x128xf32, #tpu.memory_space<vmem>>, vector<8x128xf32>,
    } else {
    }
    %c0 = arith.constant 0 : index
    %c0_1 = arith.constant 0 : index
    %3 = vector.load %arg4[%c0, %c0_1] : memref<128x512xbf16, #tpu.memory_space<vmem>>, vector<128x512xbf16>
    %c0_2 = arith.constant 0 : index
    %c0_3 = arith.constant 0 : index
    %4 = vector.load %arg10[%c0_2, %c0_3] : memref<8x128xf32, #tpu.memory_space<vmem>>, vector<8x128xf32>
    %c0_4 = arith.constant 0 : index
    %c0_5 = arith.constant 0 : index
    %5 = vector.load %arg11[%c0_4, %c0_5] : memref<8x128xf32, #tpu.memory_space<vmem>>, vector<8x128xf32>
    %c0_i32_6 = arith.constant 0 : i32
    %6 = arith.index_cast %c0_i32_6 : i32 to index
    %c0_7 = arith.constant 0 : index
    %c0_8 = arith.constant 0 : index
    %7 = vector.load %arg1[%6, %c0_7, %c0_8] : memref<8x8x512xbf16, #tpu.memory_space<vmem>>, vector<1x8x512xbf16>
    %8 = vector.shape_cast %7 : vector<1x8x512xbf16> to vector<8x512xbf16>
    %9 = arith.extf %8 : vector<8x512xbf16> to vector<8x512xf32>
    %10 = arith.truncf %4 : vector<8x128xf32> to vector<8x128xbf16>
    %cst = arith.constant dense<0.000000e+00> : vector<8x512xf32>
    %11 = tpu.matmul %10, %3, %cst {dimension_numbers = #tpu.dot_dimension_numbers<[1], [0], [0], [1], [0, 0, 1, 1], [], []>} : vector<8x128xbf16>, vector<128x512xbf16>, vector<8x512xf32> -> vector<8x512xf32>
    %12 = arith.addf %9, %11 : vector<8x512xf32>
    %13 = vector.extract_strided_slice %12 {offsets = [0, 0], sizes = [8, 384], strides = [1, 1]} : vector<8x512xf32> to vector<8x384xf32>
    %14 = arith.negf %13 : vector<8x384xf32>
    %15 = math.exp %14 : vector<8x384xf32>
    %cst_9 = arith.constant 1.000000e+00 : f32
    %16 = vector.broadcast %cst_9 : f32 to vector<8x384xf32>
    %17 = arith.addf %16, %15 : vector<8x384xf32>
    %18 = arith.divf %16, %17 : vector<8x384xf32>
    %19 = vector.extract_strided_slice %18 {offsets = [0, 0], sizes = [8, 128], strides = [1, 1]} : vector<8x384xf32> to vector<8x128xf32>
    %20 = vector.extract_strided_slice %18 {offsets = [0, 128], sizes = [8, 128], strides = [1, 1]} : vector<8x384xf32> to vector<8x128xf32>
    %21 = vector.extract_strided_slice %18 {offsets = [0, 256], sizes = [8, 128], strides = [1, 1]} : vector<8x384xf32> to vector<8x128xf32>
    %22 = vector.extract_strided_slice %12 {offsets = [0, 384], sizes = [8, 128], strides = [1, 1]} : vector<8x512xf32> to vector<8x128xf32>
    %23 = math.tanh %22 : vector<8x128xf32>
    %24 = arith.mulf %20, %5 : vector<8x128xf32>
    %25 = arith.mulf %19, %23 : vector<8x128xf32>
    %26 = arith.addf %24, %25 : vector<8x128xf32>
    %27 = math.tanh %26 : vector<8x128xf32>
    %28 = arith.mulf %21, %27 : vector<8x128xf32>
    %c1_i32 = arith.constant 1 : i32
    %29 = arith.index_cast %c1_i32 : i32 to index
    %c0_10 = arith.constant 0 : index
    %c0_11 = arith.constant 0 : index
    %30 = vector.load %arg1[%29, %c0_10, %c0_11] : memref<8x8x512xbf16, #tpu.memory_space<vmem>>, vector<1x8x512xbf16>
    %31 = vector.shape_cast %30 : vector<1x8x512xbf16> to vector<8x512xbf16>
    %32 = arith.extf %31 : vector<8x512xbf16> to vector<8x512xf32>
    %33 = arith.truncf %28 : vector<8x128xf32> to vector<8x128xbf16>
    %cst_12 = arith.constant dense<0.000000e+00> : vector<8x512xf32>
    %34 = tpu.matmul %33, %3, %cst_12 {dimension_numbers = #tpu.dot_dimension_numbers<[1], [0], [0], [1], [0, 0, 1, 1], [], []>} : vector<8x128xbf16>, vector<128x512xbf16>, vector<8x512xf32> -> vector<8x512xf32>
    %35 = arith.addf %32, %34 : vector<8x512xf32>
    %36 = vector.extract_strided_slice %35 {offsets = [0, 0], sizes = [8, 384], strides = [1, 1]} : vector<8x512xf32> to vector<8x384xf32>
    %37 = arith.negf %36 : vector<8x384xf32>
    %38 = math.exp %37 : vector<8x384xf32>
    %cst_13 = arith.constant 1.000000e+00 : f32
    %39 = vector.broadcast %cst_13 : f32 to vector<8x384xf32>
    %40 = arith.addf %39, %38 : vector<8x384xf32>
    %41 = arith.divf %39, %40 : vector<8x384xf32>
    %42 = vector.extract_strided_slice %41 {offsets = [0, 0], sizes = [8, 128], strides = [1, 1]} : vector<8x384xf32> to vector<8x128xf32>
    %43 = vector.extract_strided_slice %41 {offsets = [0, 128], sizes = [8, 128], strides = [1, 1]} : vector<8x384xf32> to vector<8x128xf32>
    %44 = vector.extract_strided_slice %41 {offsets = [0, 256], sizes = [8, 128], strides = [1, 1]} : vector<8x384xf32> to vector<8x128xf32>
    %45 = vector.extract_strided_slice %35 {offsets = [0, 384], sizes = [8, 128], strides = [1, 1]} : vector<8x512xf32> to vector<8x128xf32>
    %46 = math.tanh %45 : vector<8x128xf32>
    %47 = arith.mulf %43, %26 : vector<8x128xf32>
    %48 = arith.mulf %42, %46 : vector<8x128xf32>
    %49 = arith.addf %47, %48 : vector<8x128xf32>
    %50 = math.tanh %49 : vector<8x128xf32>
    %51 = arith.mulf %44, %50 : vector<8x128xf32>
    %c2_i32 = arith.constant 2 : i32
    %52 = arith.index_cast %c2_i32 : i32 to index
    %c0_14 = arith.constant 0 : index
    %c0_15 = arith.constant 0 : index
    %53 = vector.load %arg1[%52, %c0_14, %c0_15] : memref<8x8x512xbf16, #tpu.memory_space<vmem>>, vector<1x8x512xbf16>
    %54 = vector.shape_cast %53 : vector<1x8x512xbf16> to vector<8x512xbf16>
    %55 = arith.extf %54 : vector<8x512xbf16> to vector<8x512xf32>
    %56 = arith.truncf %51 : vector<8x128xf32> to vector<8x128xbf16>
    %cst_16 = arith.constant dense<0.000000e+00> : vector<8x512xf32>
    %57 = tpu.matmul %56, %3, %cst_16 {dimension_numbers = #tpu.dot_dimension_numbers<[1], [0], [0], [1], [0, 0, 1, 1], [], []>} : vector<8x128xbf16>, vector<128x512xbf16>, vector<8x512xf32> -> vector<8x512xf32>
    %58 = arith.addf %55, %57 : vector<8x512xf32>
    %59 = vector.extract_strided_slice %58 {offsets = [0, 0], sizes = [8, 384], strides = [1, 1]} : vector<8x512xf32> to vector<8x384xf32>
    %60 = arith.negf %59 : vector<8x384xf32>
    %61 = math.exp %60 : vector<8x384xf32>
    %cst_17 = arith.constant 1.000000e+00 : f32
    %62 = vector.broadcast %cst_17 : f32 to vector<8x384xf32>
    %63 = arith.addf %62, %61 : vector<8x384xf32>
    %64 = arith.divf %62, %63 : vector<8x384xf32>
    %65 = vector.extract_strided_slice %64 {offsets = [0, 0], sizes = [8, 128], strides = [1, 1]} : vector<8x384xf32> to vector<8x128xf32>
    %66 = vector.extract_strided_slice %64 {offsets = [0, 128], sizes = [8, 128], strides = [1, 1]} : vector<8x384xf32> to vector<8x128xf32>
    %67 = vector.extract_strided_slice %64 {offsets = [0, 256], sizes = [8, 128], strides = [1, 1]} : vector<8x384xf32> to vector<8x128xf32>
    %68 = vector.extract_strided_slice %58 {offsets = [0, 384], sizes = [8, 128], strides = [1, 1]} : vector<8x512xf32> to vector<8x128xf32>
    %69 = math.tanh %68 : vector<8x128xf32>
    %70 = arith.mulf %66, %49 : vector<8x128xf32>
    %71 = arith.mulf %65, %69 : vector<8x128xf32>
    %72 = arith.addf %70, %71 : vector<8x128xf32>
    %73 = math.tanh %72 : vector<8x128xf32>
    %74 = arith.mulf %67, %73 : vector<8x128xf32>
    %c3_i32 = arith.constant 3 : i32
    %75 = arith.index_cast %c3_i32 : i32 to index
    %c0_18 = arith.constant 0 : index
    %c0_19 = arith.constant 0 : index
    %76 = vector.load %arg1[%75, %c0_18, %c0_19] : memref<8x8x512xbf16, #tpu.memory_space<vmem>>, vector<1x8x512xbf16>
    %77 = vector.shape_cast %76 : vector<1x8x512xbf16> to vector<8x512xbf16>
    %78 = arith.extf %77 : vector<8x512xbf16> to vector<8x512xf32>
    %79 = arith.truncf %74 : vector<8x128xf32> to vector<8x128xbf16>
    %cst_20 = arith.constant dense<0.000000e+00> : vector<8x512xf32>
    %80 = tpu.matmul %79, %3, %cst_20 {dimension_numbers = #tpu.dot_dimension_numbers<[1], [0], [0], [1], [0, 0, 1, 1], [], []>} : vector<8x128xbf16>, vector<128x512xbf16>, vector<8x512xf32> -> vector<8x512xf32>
    %81 = arith.addf %78, %80 : vector<8x512xf32>
    %82 = vector.extract_strided_slice %81 {offsets = [0, 0], sizes = [8, 384], strides = [1, 1]} : vector<8x512xf32> to vector<8x384xf32>
    %83 = arith.negf %82 : vector<8x384xf32>
    %84 = math.exp %83 : vector<8x384xf32>
    %cst_21 = arith.constant 1.000000e+00 : f32
    %85 = vector.broadcast %cst_21 : f32 to vector<8x384xf32>
    %86 = arith.addf %85, %84 : vector<8x384xf32>
    %87 = arith.divf %85, %86 : vector<8x384xf32>
    %88 = vector.extract_strided_slice %87 {offsets = [0, 0], sizes = [8, 128], strides = [1, 1]} : vector<8x384xf32> to vector<8x128xf32>
    %89 = vector.extract_strided_slice %87 {offsets = [0, 128], sizes = [8, 128], strides = [1, 1]} : vector<8x384xf32> to vector<8x128xf32>
    %90 = vector.extract_strided_slice %87 {offsets = [0, 256], sizes = [8, 128], strides = [1, 1]} : vector<8x384xf32> to vector<8x128xf32>
    %91 = vector.extract_strided_slice %81 {offsets = [0, 384], sizes = [8, 128], strides = [1, 1]} : vector<8x512xf32> to vector<8x128xf32>
    %92 = math.tanh %91 : vector<8x128xf32>
    %93 = arith.mulf %89, %72 : vector<8x128xf32>
    %94 = arith.mulf %88, %92 : vector<8x128xf32>
    %95 = arith.addf %93, %94 : vector<8x128xf32>
    %96 = math.tanh %95 : vector<8x128xf32>
    %97 = arith.mulf %90, %96 : vector<8x128xf32>
    %c4_i32 = arith.constant 4 : i32
    %98 = arith.index_cast %c4_i32 : i32 to index
    %c0_22 = arith.constant 0 : index
    %c0_23 = arith.constant 0 : index
    %99 = vector.load %arg1[%98, %c0_22, %c0_23] : memref<8x8x512xbf16, #tpu.memory_space<vmem>>, vector<1x8x512xbf16>
    %100 = vector.shape_cast %99 : vector<1x8x512xbf16> to vector<8x512xbf16>
    %101 = arith.extf %100 : vector<8x512xbf16> to vector<8x512xf32>
    %102 = arith.truncf %97 : vector<8x128xf32> to vector<8x128xbf16>
    %cst_24 = arith.constant dense<0.000000e+00> : vector<8x512xf32>
    %103 = tpu.matmul %102, %3, %cst_24 {dimension_numbers = #tpu.dot_dimension_numbers<[1], [0], [0], [1], [0, 0, 1, 1], [], []>} : vector<8x128xbf16>, vector<128x512xbf16>, vector<8x512xf32> -> vector<8x512xf32>
    %104 = arith.addf %101, %103 : vector<8x512xf32>
    %105 = vector.extract_strided_slice %104 {offsets = [0, 0], sizes = [8, 384], strides = [1, 1]} : vector<8x512xf32> to vector<8x384xf32>
    %106 = arith.negf %105 : vector<8x384xf32>
    %107 = math.exp %106 : vector<8x384xf32>
    %cst_25 = arith.constant 1.000000e+00 : f32
    %108 = vector.broadcast %cst_25 : f32 to vector<8x384xf32>
    %109 = arith.addf %108, %107 : vector<8x384xf32>
    %110 = arith.divf %108, %109 : vector<8x384xf32>
    %111 = vector.extract_strided_slice %110 {offsets = [0, 0], sizes = [8, 128], strides = [1, 1]} : vector<8x384xf32> to vector<8x128xf32>
    %112 = vector.extract_strided_slice %110 {offsets = [0, 128], sizes = [8, 128], strides = [1, 1]} : vector<8x384xf32> to vector<8x128xf32>
    %113 = vector.extract_strided_slice %110 {offsets = [0, 256], sizes = [8, 128], strides = [1, 1]} : vector<8x384xf32> to vector<8x128xf32>
    %114 = vector.extract_strided_slice %104 {offsets = [0, 384], sizes = [8, 128], strides = [1, 1]} : vector<8x512xf32> to vector<8x128xf32>
    %115 = math.tanh %114 : vector<8x128xf32>
    %116 = arith.mulf %112, %95 : vector<8x128xf32>
    %117 = arith.mulf %111, %115 : vector<8x128xf32>
    %118 = arith.addf %116, %117 : vector<8x128xf32>
    %119 = math.tanh %118 : vector<8x128xf32>
    %120 = arith.mulf %113, %119 : vector<8x128xf32>
    %c5_i32 = arith.constant 5 : i32
    %121 = arith.index_cast %c5_i32 : i32 to index
    %c0_26 = arith.constant 0 : index
    %c0_27 = arith.constant 0 : index
    %122 = vector.load %arg1[%121, %c0_26, %c0_27] : memref<8x8x512xbf16, #tpu.memory_space<vmem>>, vector<1x8x512xbf16>
    %123 = vector.shape_cast %122 : vector<1x8x512xbf16> to vector<8x512xbf16>
    %124 = arith.extf %123 : vector<8x512xbf16> to vector<8x512xf32>
    %125 = arith.truncf %120 : vector<8x128xf32> to vector<8x128xbf16>
    %cst_28 = arith.constant dense<0.000000e+00> : vector<8x512xf32>
    %126 = tpu.matmul %125, %3, %cst_28 {dimension_numbers = #tpu.dot_dimension_numbers<[1], [0], [0], [1], [0, 0, 1, 1], [], []>} : vector<8x128xbf16>, vector<128x512xbf16>, vector<8x512xf32> -> vector<8x512xf32>
    %127 = arith.addf %124, %126 : vector<8x512xf32>
    %128 = vector.extract_strided_slice %127 {offsets = [0, 0], sizes = [8, 384], strides = [1, 1]} : vector<8x512xf32> to vector<8x384xf32>
    %129 = arith.negf %128 : vector<8x384xf32>
    %130 = math.exp %129 : vector<8x384xf32>
    %cst_29 = arith.constant 1.000000e+00 : f32
    %131 = vector.broadcast %cst_29 : f32 to vector<8x384xf32>
    %132 = arith.addf %131, %130 : vector<8x384xf32>
    %133 = arith.divf %131, %132 : vector<8x384xf32>
    %134 = vector.extract_strided_slice %133 {offsets = [0, 0], sizes = [8, 128], strides = [1, 1]} : vector<8x384xf32> to vector<8x128xf32>
    %135 = vector.extract_strided_slice %133 {offsets = [0, 128], sizes = [8, 128], strides = [1, 1]} : vector<8x384xf32> to vector<8x128xf32>
    %136 = vector.extract_strided_slice %133 {offsets = [0, 256], sizes = [8, 128], strides = [1, 1]} : vector<8x384xf32> to vector<8x128xf32>
    %137 = vector.extract_strided_slice %127 {offsets = [0, 384], sizes = [8, 128], strides = [1, 1]} : vector<8x512xf32> to vector<8x128xf32>
    %138 = math.tanh %137 : vector<8x128xf32>
    %139 = arith.mulf %135, %118 : vector<8x128xf32>
    %140 = arith.mulf %134, %138 : vector<8x128xf32>
    %141 = arith.addf %139, %140 : vector<8x128xf32>
    %142 = math.tanh %141 : vector<8x128xf32>
    %143 = arith.mulf %136, %142 : vector<8x128xf32>
    %c6_i32 = arith.constant 6 : i32
    %144 = arith.index_cast %c6_i32 : i32 to index
    %c0_30 = arith.constant 0 : index
    %c0_31 = arith.constant 0 : index
    %145 = vector.load %arg1[%144, %c0_30, %c0_31] : memref<8x8x512xbf16, #tpu.memory_space<vmem>>, vector<1x8x512xbf16>
    %146 = vector.shape_cast %145 : vector<1x8x512xbf16> to vector<8x512xbf16>
    %147 = arith.extf %146 : vector<8x512xbf16> to vector<8x512xf32>
    %148 = arith.truncf %143 : vector<8x128xf32> to vector<8x128xbf16>
    %cst_32 = arith.constant dense<0.000000e+00> : vector<8x512xf32>
    %149 = tpu.matmul %148, %3, %cst_32 {dimension_numbers = #tpu.dot_dimension_numbers<[1], [0], [0], [1], [0, 0, 1, 1], [], []>} : vector<8x128xbf16>, vector<128x512xbf16>, vector<8x512xf32> -> vector<8x512xf32>
    %150 = arith.addf %147, %149 : vector<8x512xf32>
    %151 = vector.extract_strided_slice %150 {offsets = [0, 0], sizes = [8, 384], strides = [1, 1]} : vector<8x512xf32> to vector<8x384xf32>
    %152 = arith.negf %151 : vector<8x384xf32>
    %153 = math.exp %152 : vector<8x384xf32>
    %cst_33 = arith.constant 1.000000e+00 : f32
    %154 = vector.broadcast %cst_33 : f32 to vector<8x384xf32>
    %155 = arith.addf %154, %153 : vector<8x384xf32>
    %156 = arith.divf %154, %155 : vector<8x384xf32>
    %157 = vector.extract_strided_slice %156 {offsets = [0, 0], sizes = [8, 128], strides = [1, 1]} : vector<8x384xf32> to vector<8x128xf32>
    %158 = vector.extract_strided_slice %156 {offsets = [0, 128], sizes = [8, 128], strides = [1, 1]} : vector<8x384xf32> to vector<8x128xf32>
    %159 = vector.extract_strided_slice %156 {offsets = [0, 256], sizes = [8, 128], strides = [1, 1]} : vector<8x384xf32> to vector<8x128xf32>
    %160 = vector.extract_strided_slice %150 {offsets = [0, 384], sizes = [8, 128], strides = [1, 1]} : vector<8x512xf32> to vector<8x128xf32>
    %161 = math.tanh %160 : vector<8x128xf32>
    %162 = arith.mulf %158, %141 : vector<8x128xf32>
    %163 = arith.mulf %157, %161 : vector<8x128xf32>
    %164 = arith.addf %162, %163 : vector<8x128xf32>
    %165 = math.tanh %164 : vector<8x128xf32>
    %166 = arith.mulf %159, %165 : vector<8x128xf32>
    %c7_i32 = arith.constant 7 : i32
    %167 = arith.index_cast %c7_i32 : i32 to index
    %c0_34 = arith.constant 0 : index
    %c0_35 = arith.constant 0 : index
    %168 = vector.load %arg1[%167, %c0_34, %c0_35] : memref<8x8x512xbf16, #tpu.memory_space<vmem>>, vector<1x8x512xbf16>
    %169 = vector.shape_cast %168 : vector<1x8x512xbf16> to vector<8x512xbf16>
    %170 = arith.extf %169 : vector<8x512xbf16> to vector<8x512xf32>
    %171 = arith.truncf %166 : vector<8x128xf32> to vector<8x128xbf16>
    %cst_36 = arith.constant dense<0.000000e+00> : vector<8x512xf32>
    %172 = tpu.matmul %171, %3, %cst_36 {dimension_numbers = #tpu.dot_dimension_numbers<[1], [0], [0], [1], [0, 0, 1, 1], [], []>} : vector<8x128xbf16>, vector<128x512xbf16>, vector<8x512xf32> -> vector<8x512xf32>
    %173 = arith.addf %170, %172 : vector<8x512xf32>
    %174 = vector.extract_strided_slice %173 {offsets = [0, 0], sizes = [8, 384], strides = [1, 1]} : vector<8x512xf32> to vector<8x384xf32>
    %175 = arith.negf %174 : vector<8x384xf32>
    %176 = math.exp %175 : vector<8x384xf32>
    %cst_37 = arith.constant 1.000000e+00 : f32
    %177 = vector.broadcast %cst_37 : f32 to vector<8x384xf32>
    %178 = arith.addf %177, %176 : vector<8x384xf32>
    %179 = arith.divf %177, %178 : vector<8x384xf32>
    %180 = vector.extract_strided_slice %179 {offsets = [0, 0], sizes = [8, 128], strides = [1, 1]} : vector<8x384xf32> to vector<8x128xf32>
    %181 = vector.extract_strided_slice %179 {offsets = [0, 128], sizes = [8, 128], strides = [1, 1]} : vector<8x384xf32> to vector<8x128xf32>
    %182 = vector.extract_strided_slice %179 {offsets = [0, 256], sizes = [8, 128], strides = [1, 1]} : vector<8x384xf32> to vector<8x128xf32>
    %183 = vector.extract_strided_slice %173 {offsets = [0, 384], sizes = [8, 128], strides = [1, 1]} : vector<8x512xf32> to vector<8x128xf32>
    %184 = math.tanh %183 : vector<8x128xf32>
    %185 = arith.mulf %181, %164 : vector<8x128xf32>
    %186 = arith.mulf %180, %184 : vector<8x128xf32>
    %187 = arith.addf %185, %186 : vector<8x128xf32>
    %188 = math.tanh %187 : vector<8x128xf32>
    %189 = arith.mulf %182, %188 : vector<8x128xf32>
    %c8_i32 = arith.constant 8 : i32
    %c0_38 = arith.constant 0 : index
    %c0_39 = arith.constant 0 : index
    %190 = vector.load %arg10[%c0_38, %c0_39] : memref<8x128xf32, #tpu.memory_space<vmem>>, vector<8x128xf32>
    tpu.vector_store %arg10[%c0_38, %c0_39], %189 {strides = array<i32>} : memref<8x128xf32, #tpu.memory_space<vmem>>, vector<8x128xf32>,
    %c0_40 = arith.constant 0 : index
    %c0_41 = arith.constant 0 : index
    %191 = vector.load %arg11[%c0_40, %c0_41] : memref<8x128xf32, #tpu.memory_space<vmem>>, vector<8x128xf32>
    tpu.vector_store %arg11[%c0_40, %c0_41], %187 {strides = array<i32>} : memref<8x128xf32, #tpu.memory_space<vmem>>, vector<8x128xf32>,
    %c0_i32_42 = arith.constant 0 : i32
    %192 = arith.cmpi eq, %arg0, %c0_i32_42 : i32
    %193 = arith.extui %192 : i1 to i32
    %c0_i32_43 = arith.constant 0 : i32
    %194 = arith.cmpi ne, %193, %c0_i32_43 : i32
    scf.if %194 {
      %c0_44 = arith.constant 0 : index
      %c0_45 = arith.constant 0 : index
      %195 = vector.load %arg7[%c0_44, %c0_45] : memref<8x128xf32, #tpu.memory_space<vmem>>, vector<8x128xf32>
      tpu.vector_store %arg7[%c0_44, %c0_45], %189 {strides = array<i32>} : memref<8x128xf32, #tpu.memory_space<vmem>>, vector<8x128xf32>,
      %c0_46 = arith.constant 0 : index
      %c0_47 = arith.constant 0 : index
      %196 = vector.load %arg8[%c0_46, %c0_47] : memref<8x128xf32, #tpu.memory_space<vmem>>, vector<8x128xf32>
      tpu.vector_store %arg8[%c0_46, %c0_47], %187 {strides = array<i32>} : memref<8x128xf32, #tpu.memory_space<vmem>>, vector<8x128xf32>,
      %c0_48 = arith.constant 0 : index
      %c0_49 = arith.constant 0 : index
      %197 = vector.load %arg5[%c0_48, %c0_49] : memref<128x128xf32, #tpu.memory_space<vmem>>, vector<128x128xf32>
      %cst_50 = arith.constant dense<0.000000e+00> : vector<8x128xf32>
      %198 = tpu.matmul %189, %197, %cst_50 {dimension_numbers = #tpu.dot_dimension_numbers<[1], [0], [0], [1], [0, 0, 1, 1], [], []>} : vector<8x128xf32>, vector<128x128xf32>, vector<8x128xf32> -> vector<8x128xf32>
      %c0_51 = arith.constant 0 : index
      %c0_52 = arith.constant 0 : index
      %199 = vector.load %arg6[%c0_51, %c0_52] : memref<1x128xf32, #tpu.memory_space<vmem>>, vector<1x128xf32>
      %200 = vector.broadcast %199 : vector<1x128xf32> to vector<8x128xf32>
      %201 = arith.addf %198, %200 : vector<8x128xf32>
      %c0_53 = arith.constant 0 : index
      %c0_54 = arith.constant 0 : index
      %202 = vector.load %arg9[%c0_53, %c0_54] : memref<8x128xf32, #tpu.memory_space<vmem>>, vector<8x128xf32>
      tpu.vector_store %arg9[%c0_53, %c0_54], %201 {strides = array<i32>} : memref<8x128xf32, #tpu.memory_space<vmem>>, vector<8x128xf32>,
    } else {
    }
    return
  }
  func.func @transform_0(%arg0: i32) -> (i32, i32, i32) {
    %c0_i32 = arith.constant 0 : i32
    %c0_i32_0 = arith.constant 0 : i32
    %c0_i32_1 = arith.constant 0 : i32
    return %arg0, %c0_i32, %c0_i32_0 : i32, i32, i32
  }
  func.func @transform_1(%arg0: i32) -> (i32, i32) {
    %c0_i32 = arith.constant 0 : i32
    %c0_i32_0 = arith.constant 0 : i32
    %c0_i32_1 = arith.constant 0 : i32
    return %c0_i32, %c0_i32_0 : i32, i32
  }
  func.func @transform_2(%arg0: i32) -> (i32, i32) {
    %c0_i32 = arith.constant 0 : i32
    %c0_i32_0 = arith.constant 0 : i32
    %c0_i32_1 = arith.constant 0 : i32
    return %c0_i32, %c0_i32_0 : i32, i32
  }
  func.func @transform_3(%arg0: i32) -> (i32, i32) {
    %c0_i32 = arith.constant 0 : i32
    %c0_i32_0 = arith.constant 0 : i32
    %c0_i32_1 = arith.constant 0 : i32
    return %c0_i32, %c0_i32_0 : i32, i32
  }
  func.func @transform_4(%arg0: i32) -> (i32, i32) {
    %c0_i32 = arith.constant 0 : i32
    %c0_i32_0 = arith.constant 0 : i32
    %c0_i32_1 = arith.constant 0 : i32
    return %c0_i32, %c0_i32_0 : i32, i32
  }
  func.func @transform_5(%arg0: i32) -> (i32, i32) {
    %c0_i32 = arith.constant 0 : i32
    %c0_i32_0 = arith.constant 0 : i32
    %c0_i32_1 = arith.constant 0 : i32
    return %c0_i32, %c0_i32_0 : i32, i32
  }
  func.func @transform_6(%arg0: i32) -> (i32, i32) {
    %c0_i32 = arith.constant 0 : i32
    %c0_i32_0 = arith.constant 0 : i32
    %c0_i32_1 = arith.constant 0 : i32
    return %c0_i32, %c0_i32_0 : i32, i32
  }
  func.func @transform_7(%arg0: i32) -> (i32, i32) {
    %c0_i32 = arith.constant 0 : i32
    %c0_i32_0 = arith.constant 0 : i32
    %c0_i32_1 = arith.constant 0 : i32
    return %c0_i32, %c0_i32_0 : i32, i32
  }
  func.func @transform_8(%arg0: i32) -> (i32, i32) {
    %c0_i32 = arith.constant 0 : i32
    %c0_i32_0 = arith.constant 0 : i32
    %c0_i32_1 = arith.constant 0 : i32
    return %c0_i32, %c0_i32_0 : i32, i32
  }
}

</mosaic_0001>

<llo_original>
// kernel: lstm_forward.6
$region0: #{lstm_forward.6}
  #allocation0 [shape = 'u32[]', space=smem, size = 0x4, offset = 0x4, fixed_abs, tag = 'smem constant byte address 0x4 - core index']
  #allocation1 [shape = 'u32[72,128]{1,0:T(1,128)}', space=vmem, size = 0x9000, scoped, tag = 'internal scratch']
  %s0 = inlined_call_operand.vmem [shape: bf16[8,8,128], index: 0, kind: input, shape index: {}]
  %s1 = inlined_call_operand.hbm [shape: bf16[128,512], index: 1, kind: input, shape index: {}]
  %s2 = inlined_call_operand.vmem [shape: f32[1,512], index: 2, kind: input, shape index: {}]
  %s3 = inlined_call_operand.vmem [shape: bf16[8,8,512], index: 3, kind: output, shape index: {}]
  %s4 = sld [smem:[#allocation0]]
  $region26: #{lstm_forward.6} parent=0
    _
  %s6 = ssub.s32 1, %s4
  %s7 = scalar_select 0, %s6, %s4
  $region1: #{lstm_forward.6} parent=0
    #allocation2 [shape = 'u8[131072]{0}', space=vmem, size = 0x20000, scoped, tag = 'input window, operand 1, single buffered']
    #allocation3 [shape = 's32[1]{0}', space=sflag, size = 0x4, scoped, tag = 'scoped memory for lstm_forward.6']
    %8 = vsyncpa [#allocation3], 0
    // Predicated region
    $region2: #{lstm_forward.6} parent=1 // pred_check
      _
    $region3: #{lstm_forward.6} parent=1 // pred_check_branch
      %10 = sbr.rel (0) target = $region5
    $region4: #{lstm_forward.6} parent=1 // pred_region
      _
    $region5: #{lstm_forward.6} parent=1 // pred_fallthru
      _
    // Predicated region
    $region6: #{lstm_forward.6} parent=1 // pred_check
      _
    $region7: #{lstm_forward.6} parent=1 // pred_check_branch
      %12 = sbr.rel (0) target = $region9
    $region8: #{lstm_forward.6} parent=1 // pred_region
      %14 = vsyncadd [#allocation3], 0
      %s15 = sshll.u32 %s1, 4
      %s16 = int_to_ptr.hbm [resolvable:$true] %s15
      %s17 = sshll.u32 [#allocation2], 4
      %s18 = int_to_ptr.vmem [resolvable:$true] %s17
      %23 = dma.hbm_to_vmem [thread:$0]  %s16, 4096, %s18, [#allocation3], 256, 256, 16
    $region9: #{lstm_forward.6} parent=1 // pred_fallthru
      _
    // Predicated region
    $region10: #{lstm_forward.6} parent=1 // pred_check
      _
    $region11: #{lstm_forward.6} parent=1 // pred_check_branch
      %25 = sbr.rel (0) target = $region13
    $region12: #{lstm_forward.6} parent=1 // pred_region
      _
    $region13: #{lstm_forward.6} parent=1 // pred_fallthru
      _
    // Predicated region
    $region14: #{lstm_forward.6} parent=1 // pred_check
      _
    $region15: #{lstm_forward.6} parent=1 // pred_check_branch
      %27 = sbr.rel (0) target = $region17
    $region16: #{lstm_forward.6} parent=1 // pred_region
      %29 = dma.done [#allocation3], 4096
    $region17: #{lstm_forward.6} parent=1 // pred_fallthru
      _
    %v30 = vld [vmem:[%s0] sm:$0xf]
    %v31 = vld [vmem:[%s0 + $0x4] sm:$0xf]
    %v32 = vld [vmem:[%s0 + $0x8] sm:$0xf]
    %v33 = vld [vmem:[%s0 + $0xc] sm:$0xf]
    %v34 = vld [vmem:[%s0 + $0x10] sm:$0xf]
    %v35 = vld [vmem:[%s0 + $0x14] sm:$0xf]
    %v36 = vld [vmem:[%s0 + $0x18] sm:$0xf]
    %v37 = vld [vmem:[%s0 + $0x1c] sm:$0xf]
    %v38 = vld [vmem:[#allocation2] sm:$0xff]
    %v39 = vld [vmem:[#allocation2 + $0x8] sm:$0xff]
    %v40 = vld [vmem:[#allocation2 + $0x10] sm:$0xff]
    %v41 = vld [vmem:[#allocation2 + $0x18] sm:$0xff]
    %v42 = vld [vmem:[#allocation2 + $0x20] sm:$0xff]
    %v43 = vld [vmem:[#allocation2 + $0x28] sm:$0xff]
    %v44 = vld [vmem:[#allocation2 + $0x30] sm:$0xff]
    %v45 = vld [vmem:[#allocation2 + $0x38] sm:$0xff]
    %v46 = vld [vmem:[#allocation2 + $0x40] sm:$0xff]
    %v47 = vld [vmem:[#allocation2 + $0x48] sm:$0xff]
    %v48 = vld [vmem:[#allocation2 + $0x50] sm:$0xff]
    %v49 = vld [vmem:[#allocation2 + $0x58] sm:$0xff]
    %v50 = vld [vmem:[#allocation2 + $0x60] sm:$0xff]
    %v51 = vld [vmem:[#allocation2 + $0x68] sm:$0xff]
    %v52 = vld [vmem:[#allocation2 + $0x70] sm:$0xff]
    %v53 = vld [vmem:[#allocation2 + $0x78] sm:$0xff]
    %v54 = vld [vmem:[#allocation2 + $0x80] sm:$0xff]
    %v55 = vld [vmem:[#allocation2 + $0x88] sm:$0xff]
    %v56 = vld [vmem:[#allocation2 + $0x90] sm:$0xff]
    %v57 = vld [vmem:[#allocation2 + $0x98] sm:$0xff]
    %v58 = vld [vmem:[#allocation2 + $0xa0] sm:$0xff]
    %v59 = vld [vmem:[#allocation2 + $0xa8] sm:$0xff]
    %v60 = vld [vmem:[#allocation2 + $0xb0] sm:$0xff]
    %v61 = vld [vmem:[#allocation2 + $0xb8] sm:$0xff]
    %v62 = vld [vmem:[#allocation2 + $0xc0] sm:$0xff]
    %v63 = vld [vmem:[#allocation2 + $0xc8] sm:$0xff]
    %v64 = vld [vmem:[#allocation2 + $0xd0] sm:$0xff]
    %v65 = vld [vmem:[#allocation2 + $0xd8] sm:$0xff]
    %v66 = vld [vmem:[#allocation2 + $0xe0] sm:$0xff]
    %v67 = vld [vmem:[#allocation2 + $0xe8] sm:$0xff]
    %v68 = vld [vmem:[#allocation2 + $0xf0] sm:$0xff]
    %v69 = vld [vmem:[#allocation2 + $0xf8] sm:$0xff]
    %v70 = vld [vmem:[%s2] sm:$0xf]
    %v72 = vperm.slane %v70, 0
    %v73 = vperm.slane %v70, 1
    %v74 = vperm.slane %v70, 2
    %v75 = vperm.slane %v70, 3
    %v88 = vunpack.c.l.b16 %v30
    %v89 = vunpack.c.l.b16 %v31
    %v90 = vunpack.c.l.b16 %v32
    %v91 = vunpack.c.l.b16 %v33
    %v92 = vunpack.c.l.b16 %v34
    %v93 = vunpack.c.l.b16 %v35
    %v94 = vunpack.c.l.b16 %v36
    %v95 = vunpack.c.l.b16 %v37
    %v96 = vpack.c.b16 %v89, %v88
    %v97 = vpack.c.b16 %v91, %v90
    %v98 = vpack.c.b16 %v93, %v92
    %v99 = vpack.c.b16 %v95, %v94
    %v136 = vunpack.c.l.b16 %v38
    %v137 = vunpack.c.h.b16 %v38
    %v138 = vunpack.c.l.b16 %v39
    %v139 = vunpack.c.h.b16 %v39
    %v140 = vunpack.c.l.b16 %v40
    %v141 = vunpack.c.h.b16 %v40
    %v142 = vunpack.c.l.b16 %v41
    %v143 = vunpack.c.h.b16 %v41
    %v144 = vunpack.c.l.b16 %v42
    %v145 = vunpack.c.h.b16 %v42
    %v146 = vunpack.c.l.b16 %v43
    %v147 = vunpack.c.h.b16 %v43
    %v148 = vunpack.c.l.b16 %v44
    %v149 = vunpack.c.h.b16 %v44
    %v150 = vunpack.c.l.b16 %v45
    %v151 = vunpack.c.h.b16 %v45
    %v152 = vunpack.c.l.b16 %v46
    %v153 = vunpack.c.h.b16 %v46
    %v154 = vunpack.c.l.b16 %v47
    %v155 = vunpack.c.h.b16 %v47
    %v156 = vunpack.c.l.b16 %v48
    %v157 = vunpack.c.h.b16 %v48
    %v158 = vunpack.c.l.b16 %v49
    %v159 = vunpack.c.h.b16 %v49
    %v160 = vunpack.c.l.b16 %v50
    %v161 = vunpack.c.h.b16 %v50
    %v162 = vunpack.c.l.b16 %v51
    %v163 = vunpack.c.h.b16 %v51
    %v164 = vunpack.c.l.b16 %v52
    %v165 = vunpack.c.h.b16 %v52
    %v166 = vunpack.c.l.b16 %v53
    %v167 = vunpack.c.h.b16 %v53
    %v168 = vunpack.c.l.b16 %v54
    %v169 = vunpack.c.h.b16 %v54
    %v170 = vunpack.c.l.b16 %v55
    %v171 = vunpack.c.h.b16 %v55
    %v172 = vunpack.c.l.b16 %v56
    %v173 = vunpack.c.h.b16 %v56
    %v174 = vunpack.c.l.b16 %v57
    %v175 = vunpack.c.h.b16 %v57
    %v176 = vunpack.c.l.b16 %v58
    %v177 = vunpack.c.h.b16 %v58
    %v178 = vunpack.c.l.b16 %v59
    %v179 = vunpack.c.h.b16 %v59
    %v180 = vunpack.c.l.b16 %v60
    %v181 = vunpack.c.h.b16 %v60
    %v182 = vunpack.c.l.b16 %v61
    %v183 = vunpack.c.h.b16 %v61
    %v184 = vunpack.c.l.b16 %v62
    %v185 = vunpack.c.h.b16 %v62
    %v186 = vunpack.c.l.b16 %v63
    %v187 = vunpack.c.h.b16 %v63
    %v188 = vunpack.c.l.b16 %v64
    %v189 = vunpack.c.h.b16 %v64
    %v190 = vunpack.c.l.b16 %v65
    %v191 = vunpack.c.h.b16 %v65
    %v192 = vunpack.c.l.b16 %v66
    %v193 = vunpack.c.h.b16 %v66
    %v194 = vunpack.c.l.b16 %v67
    %v195 = vunpack.c.h.b16 %v67
    %v196 = vunpack.c.l.b16 %v68
    %v197 = vunpack.c.h.b16 %v68
    %v198 = vunpack.c.l.b16 %v69
    %v199 = vunpack.c.h.b16 %v69
    %v200 = vpack.c.b16 %v140, %v136
    %v201 = vpack.c.b16 %v141, %v137
    %v202 = vpack.c.b16 %v142, %v138
    %v203 = vpack.c.b16 %v143, %v139
    %v204 = vpack.c.b16 %v148, %v144
    %v205 = vpack.c.b16 %v149, %v145
    %v206 = vpack.c.b16 %v150, %v146
    %v207 = vpack.c.b16 %v151, %v147
    %v208 = vpack.c.b16 %v156, %v152
    %v209 = vpack.c.b16 %v157, %v153
    %v210 = vpack.c.b16 %v158, %v154
    %v211 = vpack.c.b16 %v159, %v155
    %v212 = vpack.c.b16 %v164, %v160
    %v213 = vpack.c.b16 %v165, %v161
    %v214 = vpack.c.b16 %v166, %v162
    %v215 = vpack.c.b16 %v167, %v163
    %v216 = vpack.c.b16 %v172, %v168
    %v217 = vpack.c.b16 %v173, %v169
    %v218 = vpack.c.b16 %v174, %v170
    %v219 = vpack.c.b16 %v175, %v171
    %v220 = vpack.c.b16 %v180, %v176
    %v221 = vpack.c.b16 %v181, %v177
    %v222 = vpack.c.b16 %v182, %v178
    %v223 = vpack.c.b16 %v183, %v179
    %v224 = vpack.c.b16 %v188, %v184
    %v225 = vpack.c.b16 %v189, %v185
    %v226 = vpack.c.b16 %v190, %v186
    %v227 = vpack.c.b16 %v191, %v187
    %v228 = vpack.c.b16 %v196, %v192
    %v229 = vpack.c.b16 %v197, %v193
    %v230 = vpack.c.b16 %v198, %v194
    %v231 = vpack.c.b16 %v199, %v195
    %264 = vmatpush.bf16.msra.mxu0 %v228
    %265 = vmatpush.bf16.msra.mxu0 %v224
    %266 = vmatpush.bf16.msra.mxu0 %v220
    %267 = vmatpush.bf16.msra.mxu0 %v216
    %268 = vmatpush.bf16.msra.mxu0 %v212
    %269 = vmatpush.bf16.msra.mxu0 %v208
    %270 = vmatpush.bf16.msra.mxu0 %v204
    %271 = vmatpush.bf16.msra.mxu0 %v200
    %272 = vmatmul.bf16.gmra.mxu0 %v96
    %v273 = vpop.f32.mrf.mxu0
    %v274 = vadd.f32 %v72, %v273
    %v275 = vpop.f32.mrf.mxu0
    %v276 = vadd.f32 %v72, %v275
    %277 = vmatmul.bf16.gmra.mxu0 %v97
    %v278 = vpop.f32.mrf.mxu0
    %v279 = vadd.f32 %v72, %v278
    %v280 = vpop.f32.mrf.mxu0
    %v281 = vadd.f32 %v72, %v280
    %282 = vmatmul.bf16.gmra.mxu0 %v98
    %v283 = vpop.f32.mrf.mxu0
    %v284 = vadd.f32 %v72, %v283
    %v285 = vpop.f32.mrf.mxu0
    %v286 = vadd.f32 %v72, %v285
    %287 = vmatmul.bf16.gmra.mxu0 %v99
    %v288 = vpop.f32.mrf.mxu0
    %v289 = vadd.f32 %v72, %v288
    %v290 = vpop.f32.mrf.mxu0
    %v291 = vadd.f32 %v72, %v290
    %292 = vdwg.mxu0
    %293 = vmatpush.bf16.msra.mxu0 %v229
    %294 = vmatpush.bf16.msra.mxu0 %v225
    %295 = vmatpush.bf16.msra.mxu0 %v221
    %296 = vmatpush.bf16.msra.mxu0 %v217
    %297 = vmatpush.bf16.msra.mxu0 %v213
    %298 = vmatpush.bf16.msra.mxu0 %v209
    %299 = vmatpush.bf16.msra.mxu0 %v205
    %300 = vmatpush.bf16.msra.mxu0 %v201
    %301 = vmatmul.bf16.gmra.mxu0 %v96
    %v302 = vpop.f32.mrf.mxu0
    %v303 = vadd.f32 %v73, %v302
    %v304 = vpop.f32.mrf.mxu0
    %v305 = vadd.f32 %v73, %v304
    %306 = vmatmul.bf16.gmra.mxu0 %v97
    %v307 = vpop.f32.mrf.mxu0
    %v308 = vadd.f32 %v73, %v307
    %v309 = vpop.f32.mrf.mxu0
    %v310 = vadd.f32 %v73, %v309
    %311 = vmatmul.bf16.gmra.mxu0 %v98
    %v312 = vpop.f32.mrf.mxu0
    %v313 = vadd.f32 %v73, %v312
    %v314 = vpop.f32.mrf.mxu0
    %v315 = vadd.f32 %v73, %v314
    %316 = vmatmul.bf16.gmra.mxu0 %v99
    %v317 = vpop.f32.mrf.mxu0
    %v318 = vadd.f32 %v73, %v317
    %v319 = vpop.f32.mrf.mxu0
    %v320 = vadd.f32 %v73, %v319
    %321 = vdwg.mxu0
    %322 = vmatpush.bf16.msra.mxu0 %v230
    %323 = vmatpush.bf16.msra.mxu0 %v226
    %324 = vmatpush.bf16.msra.mxu0 %v222
    %325 = vmatpush.bf16.msra.mxu0 %v218
    %326 = vmatpush.bf16.msra.mxu0 %v214
    %327 = vmatpush.bf16.msra.mxu0 %v210
    %328 = vmatpush.bf16.msra.mxu0 %v206
    %329 = vmatpush.bf16.msra.mxu0 %v202
    %330 = vmatmul.bf16.gmra.mxu0 %v96
    %v331 = vpop.f32.mrf.mxu0
    %v332 = vadd.f32 %v74, %v331
    %v333 = vpop.f32.mrf.mxu0
    %v334 = vadd.f32 %v74, %v333
    %335 = vmatmul.bf16.gmra.mxu0 %v97
    %v336 = vpop.f32.mrf.mxu0
    %v337 = vadd.f32 %v74, %v336
    %v338 = vpop.f32.mrf.mxu0
    %v339 = vadd.f32 %v74, %v338
    %340 = vmatmul.bf16.gmra.mxu0 %v98
    %v341 = vpop.f32.mrf.mxu0
    %v342 = vadd.f32 %v74, %v341
    %v343 = vpop.f32.mrf.mxu0
    %v344 = vadd.f32 %v74, %v343
    %345 = vmatmul.bf16.gmra.mxu0 %v99
    %v346 = vpop.f32.mrf.mxu0
    %v347 = vadd.f32 %v74, %v346
    %v348 = vpop.f32.mrf.mxu0
    %v349 = vadd.f32 %v74, %v348
    %350 = vdwg.mxu0
    %351 = vmatpush.bf16.msra.mxu0 %v231
    %352 = vmatpush.bf16.msra.mxu0 %v227
    %353 = vmatpush.bf16.msra.mxu0 %v223
    %354 = vmatpush.bf16.msra.mxu0 %v219
    %355 = vmatpush.bf16.msra.mxu0 %v215
    %356 = vmatpush.bf16.msra.mxu0 %v211
    %357 = vmatpush.bf16.msra.mxu0 %v207
    %358 = vmatpush.bf16.msra.mxu0 %v203
    %359 = vmatmul.bf16.gmra.mxu0 %v96
    %v360 = vpop.f32.mrf.mxu0
    %v361 = vadd.f32 %v75, %v360
    %v362 = vpop.f32.mrf.mxu0
    %v363 = vadd.f32 %v75, %v362
    %364 = vmatmul.bf16.gmra.mxu0 %v97
    %v365 = vpop.f32.mrf.mxu0
    %v366 = vadd.f32 %v75, %v365
    %v367 = vpop.f32.mrf.mxu0
    %v368 = vadd.f32 %v75, %v367
    %369 = vmatmul.bf16.gmra.mxu0 %v98
    %v370 = vpop.f32.mrf.mxu0
    %v371 = vadd.f32 %v75, %v370
    %v372 = vpop.f32.mrf.mxu0
    %v373 = vadd.f32 %v75, %v372
    %374 = vmatmul.bf16.gmra.mxu0 %v99
    %v375 = vpop.f32.mrf.mxu0
    %v376 = vadd.f32 %v75, %v375
    %v377 = vpop.f32.mrf.mxu0
    %v378 = vadd.f32 %v75, %v377
    %379 = vdwg.mxu0
    %v380 = vpack.c.bf16 %v303, %v274
    %v381 = vpack.c.bf16 %v361, %v332
    %v382 = vpack.c.bf16 %v305, %v276
    %v383 = vpack.c.bf16 %v363, %v334
    %v384 = vpack.c.bf16 %v308, %v279
    %v385 = vpack.c.bf16 %v366, %v337
    %v386 = vpack.c.bf16 %v310, %v281
    %v387 = vpack.c.bf16 %v368, %v339
    %v388 = vpack.c.bf16 %v313, %v284
    %v389 = vpack.c.bf16 %v371, %v342
    %v390 = vpack.c.bf16 %v315, %v286
    %v391 = vpack.c.bf16 %v373, %v344
    %v392 = vpack.c.bf16 %v318, %v289
    %v393 = vpack.c.bf16 %v376, %v347
    %v394 = vpack.c.bf16 %v320, %v291
    %v395 = vpack.c.bf16 %v378, %v349
    %396 = vst [vmem:[%s3] sm:$0xff] %v380
    %397 = vst [vmem:[%s3 + $0x8] sm:$0xff] %v381
    %398 = vst [vmem:[%s3 + $0x10] sm:$0xff] %v382
    %399 = vst [vmem:[%s3 + $0x18] sm:$0xff] %v383
    %400 = vst [vmem:[%s3 + $0x20] sm:$0xff] %v384
    %401 = vst [vmem:[%s3 + $0x28] sm:$0xff] %v385
    %402 = vst [vmem:[%s3 + $0x30] sm:$0xff] %v386
    %403 = vst [vmem:[%s3 + $0x38] sm:$0xff] %v387
    %404 = vst [vmem:[%s3 + $0x40] sm:$0xff] %v388
    %405 = vst [vmem:[%s3 + $0x48] sm:$0xff] %v389
    %406 = vst [vmem:[%s3 + $0x50] sm:$0xff] %v390
    %407 = vst [vmem:[%s3 + $0x58] sm:$0xff] %v391
    %408 = vst [vmem:[%s3 + $0x60] sm:$0xff] %v392
    %409 = vst [vmem:[%s3 + $0x68] sm:$0xff] %v393
    %410 = vst [vmem:[%s3 + $0x70] sm:$0xff] %v394
    %411 = vst [vmem:[%s3 + $0x78] sm:$0xff] %v395
    // Predicated region
    $region18: #{lstm_forward.6} parent=1 // pred_check
      _
    $region19: #{lstm_forward.6} parent=1 // pred_check_branch
      %413 = sbr.rel (0) target = $region21
    $region20: #{lstm_forward.6} parent=1 // pred_region
      _
    $region21: #{lstm_forward.6} parent=1 // pred_fallthru
      _
    // Predicated region
    $region22: #{lstm_forward.6} parent=1 // pred_check
      _
    $region23: #{lstm_forward.6} parent=1 // pred_check_branch
      %415 = sbr.rel (0) target = $region25
    $region24: #{lstm_forward.6} parent=1 // pred_region
      _
    $region25: #{lstm_forward.6} parent=1 // pred_fallthru
      _
    %416 = vsyncpa [#allocation3], 1

// kernel: lstm_forward.4
$region0: #{lstm_forward.4}
  #allocation0 [shape = 'u32[]', space=smem, size = 0x4, offset = 0x4, fixed_abs, tag = 'smem constant byte address 0x4 - core index']
  #allocation1 [shape = 'u32[72,128]{1,0:T(1,128)}', space=vmem, size = 0x9000, scoped, tag = 'internal scratch']
  %s0 = inlined_call_operand.vmem [shape: bf16[8,8,16], index: 0, kind: input, shape index: {}]
  %s1 = inlined_call_operand.vmem [shape: bf16[16,512], index: 1, kind: input, shape index: {}]
  %s2 = inlined_call_operand.vmem [shape: f32[1,512], index: 2, kind: input, shape index: {}]
  %s3 = inlined_call_operand.vmem [shape: bf16[8,8,512], index: 3, kind: output, shape index: {}]
  %s4 = sld [smem:[#allocation0]]
  $region22: #{lstm_forward.4} parent=0
    _
  %s6 = ssub.s32 1, %s4
  %s7 = scalar_select 0, %s6, %s4
  // Predicated region
  $region2: #{lstm_forward.4} parent=0 // pred_check
    _
  $region3: #{lstm_forward.4} parent=0 // pred_check_branch
    %9 = sbr.rel (0) target = $region5
  $region4: #{lstm_forward.4} parent=0 // pred_region
    _
  $region5: #{lstm_forward.4} parent=0 // pred_fallthru
    _
  // Predicated region
  $region6: #{lstm_forward.4} parent=0 // pred_check
    _
  $region7: #{lstm_forward.4} parent=0 // pred_check_branch
    %11 = sbr.rel (0) target = $region9
  $region8: #{lstm_forward.4} parent=0 // pred_region
    _
  $region9: #{lstm_forward.4} parent=0 // pred_fallthru
    _
  // Predicated region
  $region10: #{lstm_forward.4} parent=0 // pred_check
    _
  $region11: #{lstm_forward.4} parent=0 // pred_check_branch
    %13 = sbr.rel (0) target = $region13
  $region12: #{lstm_forward.4} parent=0 // pred_region
    _
  $region13: #{lstm_forward.4} parent=0 // pred_fallthru
    _
  %v15 = vld [vmem:[%s0] sm:$0xf]
  %v16 = vld [vmem:[%s0 + $0x4] sm:$0xf]
  %v17 = vld [vmem:[%s0 + $0x8] sm:$0xf]
  %v18 = vld [vmem:[%s0 + $0xc] sm:$0xf]
  %v19 = vld [vmem:[%s0 + $0x10] sm:$0xf]
  %v20 = vld [vmem:[%s0 + $0x14] sm:$0xf]
  %v21 = vld [vmem:[%s0 + $0x18] sm:$0xf]
  %v22 = vld [vmem:[%s0 + $0x1c] sm:$0xf]
  %v23 = vld [vmem:[%s1] sm:$0xff]
  %v24 = vld [vmem:[%s1 + $0x8] sm:$0xff]
  %v25 = vld [vmem:[%s1 + $0x10] sm:$0xff]
  %v26 = vld [vmem:[%s1 + $0x18] sm:$0xff]
  %v27 = vld [vmem:[%s2] sm:$0xf]
  %v29 = vperm.slane %v27, 0
  %v30 = vperm.slane %v27, 1
  %v31 = vperm.slane %v27, 2
  %v32 = vperm.slane %v27, 3
  %v45 = vunpack.c.l.b16 %v15
  %v46 = vunpack.c.l.b16 %v16
  %v47 = vunpack.c.l.b16 %v17
  %v48 = vunpack.c.l.b16 %v18
  %v49 = vunpack.c.l.b16 %v19
  %v50 = vunpack.c.l.b16 %v20
  %v51 = vunpack.c.l.b16 %v21
  %v52 = vunpack.c.l.b16 %v22
  %v53 = vpack.c.b16 %v46, %v45
  %v54 = vpack.c.b16 %v48, %v47
  %v55 = vpack.c.b16 %v50, %v49
  %v56 = vpack.c.b16 %v52, %v51
  %v61 = vunpack.c.l.b16 %v23
  %v62 = vunpack.c.h.b16 %v23
  %v63 = vunpack.c.l.b16 %v24
  %v64 = vunpack.c.h.b16 %v24
  %v65 = vunpack.c.l.b16 %v25
  %v66 = vunpack.c.h.b16 %v25
  %v67 = vunpack.c.l.b16 %v26
  %v68 = vunpack.c.h.b16 %v26
  %v69 = vpack.c.b16 %v65, %v61
  %v70 = vpack.c.b16 %v66, %v62
  %v71 = vpack.c.b16 %v67, %v63
  %v72 = vpack.c.b16 %v68, %v64
  %vm77 = vcmask 130048
  %v79 = vsel %vm77, %v53, 0
  %v82 = vsel %vm77, %v54, 0
  %v85 = vsel %vm77, %v55, 0
  %v88 = vsel %vm77, %v56, 0
  %90 = vmatpush.bf16.msra.mxu0 0
  %91 = vmatpush.bf16.msra.mxu0 0
  %92 = vmatpush.bf16.msra.mxu0 0
  %93 = vmatpush.bf16.msra.mxu0 0
  %94 = vmatpush.bf16.msra.mxu0 0
  %95 = vmatpush.bf16.msra.mxu0 0
  %96 = vmatpush.bf16.msra.mxu0 0
  %97 = vmatpush.bf16.msra.mxu0 %v69
  %98 = vmatmul.bf16.gmra.mxu0 %v79
  %v99 = vpop.f32.mrf.mxu0
  %v100 = vadd.f32 %v29, %v99
  %v101 = vpop.f32.mrf.mxu0
  %v102 = vadd.f32 %v29, %v101
  %103 = vmatmul.bf16.gmra.mxu0 %v82
  %v104 = vpop.f32.mrf.mxu0
  %v105 = vadd.f32 %v29, %v104
  %v106 = vpop.f32.mrf.mxu0
  %v107 = vadd.f32 %v29, %v106
  %108 = vmatmul.bf16.gmra.mxu0 %v85
  %v109 = vpop.f32.mrf.mxu0
  %v110 = vadd.f32 %v29, %v109
  %v111 = vpop.f32.mrf.mxu0
  %v112 = vadd.f32 %v29, %v111
  %113 = vmatmul.bf16.gmra.mxu0 %v88
  %v114 = vpop.f32.mrf.mxu0
  %v115 = vadd.f32 %v29, %v114
  %v116 = vpop.f32.mrf.mxu0
  %v117 = vadd.f32 %v29, %v116
  %118 = vdwg.mxu0
  %119 = vmatpush.bf16.msra.mxu0 0
  %120 = vmatpush.bf16.msra.mxu0 0
  %121 = vmatpush.bf16.msra.mxu0 0
  %122 = vmatpush.bf16.msra.mxu0 0
  %123 = vmatpush.bf16.msra.mxu0 0
  %124 = vmatpush.bf16.msra.mxu0 0
  %125 = vmatpush.bf16.msra.mxu0 0
  %126 = vmatpush.bf16.msra.mxu0 %v70
  %127 = vmatmul.bf16.gmra.mxu0 %v79
  %v128 = vpop.f32.mrf.mxu0
  %v129 = vadd.f32 %v30, %v128
  %v130 = vpop.f32.mrf.mxu0
  %v131 = vadd.f32 %v30, %v130
  %132 = vmatmul.bf16.gmra.mxu0 %v82
  %v133 = vpop.f32.mrf.mxu0
  %v134 = vadd.f32 %v30, %v133
  %v135 = vpop.f32.mrf.mxu0
  %v136 = vadd.f32 %v30, %v135
  %137 = vmatmul.bf16.gmra.mxu0 %v85
  %v138 = vpop.f32.mrf.mxu0
  %v139 = vadd.f32 %v30, %v138
  %v140 = vpop.f32.mrf.mxu0
  %v141 = vadd.f32 %v30, %v140
  %142 = vmatmul.bf16.gmra.mxu0 %v88
  %v143 = vpop.f32.mrf.mxu0
  %v144 = vadd.f32 %v30, %v143
  %v145 = vpop.f32.mrf.mxu0
  %v146 = vadd.f32 %v30, %v145
  %147 = vdwg.mxu0
  %148 = vmatpush.bf16.msra.mxu0 0
  %149 = vmatpush.bf16.msra.mxu0 0
  %150 = vmatpush.bf16.msra.mxu0 0
  %151 = vmatpush.bf16.msra.mxu0 0
  %152 = vmatpush.bf16.msra.mxu0 0
  %153 = vmatpush.bf16.msra.mxu0 0
  %154 = vmatpush.bf16.msra.mxu0 0
  %155 = vmatpush.bf16.msra.mxu0 %v71
  %156 = vmatmul.bf16.gmra.mxu0 %v79
  %v157 = vpop.f32.mrf.mxu0
  %v158 = vadd.f32 %v31, %v157
  %v159 = vpop.f32.mrf.mxu0
  %v160 = vadd.f32 %v31, %v159
  %161 = vmatmul.bf16.gmra.mxu0 %v82
  %v162 = vpop.f32.mrf.mxu0
  %v163 = vadd.f32 %v31, %v162
  %v164 = vpop.f32.mrf.mxu0
  %v165 = vadd.f32 %v31, %v164
  %166 = vmatmul.bf16.gmra.mxu0 %v85
  %v167 = vpop.f32.mrf.mxu0
  %v168 = vadd.f32 %v31, %v167
  %v169 = vpop.f32.mrf.mxu0
  %v170 = vadd.f32 %v31, %v169
  %171 = vmatmul.bf16.gmra.mxu0 %v88
  %v172 = vpop.f32.mrf.mxu0
  %v173 = vadd.f32 %v31, %v172
  %v174 = vpop.f32.mrf.mxu0
  %v175 = vadd.f32 %v31, %v174
  %176 = vdwg.mxu0
  %177 = vmatpush.bf16.msra.mxu0 0
  %178 = vmatpush.bf16.msra.mxu0 0
  %179 = vmatpush.bf16.msra.mxu0 0
  %180 = vmatpush.bf16.msra.mxu0 0
  %181 = vmatpush.bf16.msra.mxu0 0
  %182 = vmatpush.bf16.msra.mxu0 0
  %183 = vmatpush.bf16.msra.mxu0 0
  %184 = vmatpush.bf16.msra.mxu0 %v72
  %185 = vmatmul.bf16.gmra.mxu0 %v79
  %v186 = vpop.f32.mrf.mxu0
  %v187 = vadd.f32 %v32, %v186
  %v188 = vpop.f32.mrf.mxu0
  %v189 = vadd.f32 %v32, %v188
  %190 = vmatmul.bf16.gmra.mxu0 %v82
  %v191 = vpop.f32.mrf.mxu0
  %v192 = vadd.f32 %v32, %v191
  %v193 = vpop.f32.mrf.mxu0
  %v194 = vadd.f32 %v32, %v193
  %195 = vmatmul.bf16.gmra.mxu0 %v85
  %v196 = vpop.f32.mrf.mxu0
  %v197 = vadd.f32 %v32, %v196
  %v198 = vpop.f32.mrf.mxu0
  %v199 = vadd.f32 %v32, %v198
  %200 = vmatmul.bf16.gmra.mxu0 %v88
  %v201 = vpop.f32.mrf.mxu0
  %v202 = vadd.f32 %v32, %v201
  %v203 = vpop.f32.mrf.mxu0
  %v204 = vadd.f32 %v32, %v203
  %205 = vdwg.mxu0
  %v206 = vrot.slane %v105, 4
  %vm207 = vcmask 1047556
  %v208 = vsel %vm207, %v206, %v100
  %v209 = vrot.slane %v100, 4
  %v210 = vsel %vm207, %v105, %v209
  %v212 = vunpack.c.l.s4 1983009808
  %v213 = vunpack.c.0.s8 %v212
  %v214 = vperm.slane %v208, %v213
  %v216 = vunpack.c.l.s4 1983009808
  %v217 = vunpack.c.0.s8 %v216
  %v218 = vperm.slane %v210, %v217
  %v219 = vrot.slane %v107, 4
  %v220 = vsel %vm207, %v219, %v102
  %v221 = vrot.slane %v102, 4
  %v222 = vsel %vm207, %v107, %v221
  %v224 = vunpack.c.l.s4 1983009808
  %v225 = vunpack.c.0.s8 %v224
  %v226 = vperm.slane %v220, %v225
  %v228 = vunpack.c.l.s4 1983009808
  %v229 = vunpack.c.0.s8 %v228
  %v230 = vperm.slane %v222, %v229
  %v231 = vrot.slane %v115, 4
  %v232 = vsel %vm207, %v231, %v110
  %v233 = vrot.slane %v110, 4
  %v234 = vsel %vm207, %v115, %v233
  %v236 = vunpack.c.l.s4 1983009808
  %v237 = vunpack.c.0.s8 %v236
  %v238 = vperm.slane %v232, %v237
  %v240 = vunpack.c.l.s4 1983009808
  %v241 = vunpack.c.0.s8 %v240
  %v242 = vperm.slane %v234, %v241
  %v243 = vrot.slane %v117, 4
  %v244 = vsel %vm207, %v243, %v112
  %v245 = vrot.slane %v112, 4
  %v246 = vsel %vm207, %v117, %v245
  %v248 = vunpack.c.l.s4 1983009808
  %v249 = vunpack.c.0.s8 %v248
  %v250 = vperm.slane %v244, %v249
  %v252 = vunpack.c.l.s4 1983009808
  %v253 = vunpack.c.0.s8 %v252
  %v254 = vperm.slane %v246, %v253
  %v255 = vrot.slane %v226, 4
  %v256 = vsel %vm207, %v255, %v214
  %v257 = vrot.slane %v214, 4
  %v258 = vsel %vm207, %v226, %v257
  %v260 = vunpack.c.l.s4 1934713408
  %v261 = vunpack.c.0.s8 %v260
  %v262 = vperm.slane %v256, %v261
  %v264 = vunpack.c.l.s4 1934713408
  %v265 = vunpack.c.0.s8 %v264
  %v266 = vperm.slane %v258, %v265
  %v267 = vrot.slane %v230, 4
  %v268 = vsel %vm207, %v267, %v218
  %v269 = vrot.slane %v218, 4
  %v270 = vsel %vm207, %v230, %v269
  %v272 = vunpack.c.l.s4 1934713408
  %v273 = vunpack.c.0.s8 %v272
  %v274 = vperm.slane %v268, %v273
  %v276 = vunpack.c.l.s4 1934713408
  %v277 = vunpack.c.0.s8 %v276
  %v278 = vperm.slane %v270, %v277
  %v279 = vrot.slane %v250, 4
  %v280 = vsel %vm207, %v279, %v238
  %v281 = vrot.slane %v238, 4
  %v282 = vsel %vm207, %v250, %v281
  %v284 = vunpack.c.l.s4 1934713408
  %v285 = vunpack.c.0.s8 %v284
  %v286 = vperm.slane %v280, %v285
  %v288 = vunpack.c.l.s4 1934713408
  %v289 = vunpack.c.0.s8 %v288
  %v290 = vperm.slane %v282, %v289
  %v291 = vrot.slane %v254, 4
  %v292 = vsel %vm207, %v291, %v242
  %v293 = vrot.slane %v242, 4
  %v294 = vsel %vm207, %v254, %v293
  %v296 = vunpack.c.l.s4 1934713408
  %v297 = vunpack.c.0.s8 %v296
  %v298 = vperm.slane %v292, %v297
  %v300 = vunpack.c.l.s4 1934713408
  %v301 = vunpack.c.0.s8 %v300
  %v302 = vperm.slane %v294, %v301
  %v303 = vrot.slane %v286, 4
  %v304 = vsel %vm207, %v303, %v262
  %v305 = vrot.slane %v262, 4
  %v306 = vsel %vm207, %v286, %v305
  %v307 = vrot.slane %v290, 4
  %v308 = vsel %vm207, %v307, %v266
  %v309 = vrot.slane %v266, 4
  %v310 = vsel %vm207, %v290, %v309
  %v311 = vrot.slane %v298, 4
  %v312 = vsel %vm207, %v311, %v274
  %v313 = vrot.slane %v274, 4
  %v314 = vsel %vm207, %v298, %v313
  %v315 = vrot.slane %v302, 4
  %v316 = vsel %vm207, %v315, %v278
  %v317 = vrot.slane %v278, 4
  %v318 = vsel %vm207, %v302, %v317
  %v319 = vrot.slane %v134, 4
  %v320 = vsel %vm207, %v319, %v129
  %v321 = vrot.slane %v129, 4
  %v322 = vsel %vm207, %v134, %v321
  %v324 = vunpack.c.l.s4 1983009808
  %v325 = vunpack.c.0.s8 %v324
  %v326 = vperm.slane %v320, %v325
  %v328 = vunpack.c.l.s4 1983009808
  %v329 = vunpack.c.0.s8 %v328
  %v330 = vperm.slane %v322, %v329
  %v331 = vrot.slane %v136, 4
  %v332 = vsel %vm207, %v331, %v131
  %v333 = vrot.slane %v131, 4
  %v334 = vsel %vm207, %v136, %v333
  %v336 = vunpack.c.l.s4 1983009808
  %v337 = vunpack.c.0.s8 %v336
  %v338 = vperm.slane %v332, %v337
  %v340 = vunpack.c.l.s4 1983009808
  %v341 = vunpack.c.0.s8 %v340
  %v342 = vperm.slane %v334, %v341
  %v343 = vrot.slane %v144, 4
  %v344 = vsel %vm207, %v343, %v139
  %v345 = vrot.slane %v139, 4
  %v346 = vsel %vm207, %v144, %v345
  %v348 = vunpack.c.l.s4 1983009808
  %v349 = vunpack.c.0.s8 %v348
  %v350 = vperm.slane %v344, %v349
  %v352 = vunpack.c.l.s4 1983009808
  %v353 = vunpack.c.0.s8 %v352
  %v354 = vperm.slane %v346, %v353
  %v355 = vrot.slane %v146, 4
  %v356 = vsel %vm207, %v355, %v141
  %v357 = vrot.slane %v141, 4
  %v358 = vsel %vm207, %v146, %v357
  %v360 = vunpack.c.l.s4 1983009808
  %v361 = vunpack.c.0.s8 %v360
  %v362 = vperm.slane %v356, %v361
  %v364 = vunpack.c.l.s4 1983009808
  %v365 = vunpack.c.0.s8 %v364
  %v366 = vperm.slane %v358, %v365
  %v367 = vrot.slane %v338, 4
  %v368 = vsel %vm207, %v367, %v326
  %v369 = vrot.slane %v326, 4
  %v370 = vsel %vm207, %v338, %v369
  %v372 = vunpack.c.l.s4 1934713408
  %v373 = vunpack.c.0.s8 %v372
  %v374 = vperm.slane %v368, %v373
  %v376 = vunpack.c.l.s4 1934713408
  %v377 = vunpack.c.0.s8 %v376
  %v378 = vperm.slane %v370, %v377
  %v379 = vrot.slane %v342, 4
  %v380 = vsel %vm207, %v379, %v330
  %v381 = vrot.slane %v330, 4
  %v382 = vsel %vm207, %v342, %v381
  %v384 = vunpack.c.l.s4 1934713408
  %v385 = vunpack.c.0.s8 %v384
  %v386 = vperm.slane %v380, %v385
  %v388 = vunpack.c.l.s4 1934713408
  %v389 = vunpack.c.0.s8 %v388
  %v390 = vperm.slane %v382, %v389
  %v391 = vrot.slane %v362, 4
  %v392 = vsel %vm207, %v391, %v350
  %v393 = vrot.slane %v350, 4
  %v394 = vsel %vm207, %v362, %v393
  %v396 = vunpack.c.l.s4 1934713408
  %v397 = vunpack.c.0.s8 %v396
  %v398 = vperm.slane %v392, %v397
  %v400 = vunpack.c.l.s4 1934713408
  %v401 = vunpack.c.0.s8 %v400
  %v402 = vperm.slane %v394, %v401
  %v403 = vrot.slane %v366, 4
  %v404 = vsel %vm207, %v403, %v354
  %v405 = vrot.slane %v354, 4
  %v406 = vsel %vm207, %v366, %v405
  %v408 = vunpack.c.l.s4 1934713408
  %v409 = vunpack.c.0.s8 %v408
  %v410 = vperm.slane %v404, %v409
  %v412 = vunpack.c.l.s4 1934713408
  %v413 = vunpack.c.0.s8 %v412
  %v414 = vperm.slane %v406, %v413
  %v415 = vrot.slane %v398, 4
  %v416 = vsel %vm207, %v415, %v374
  %v417 = vrot.slane %v374, 4
  %v418 = vsel %vm207, %v398, %v417
  %v419 = vrot.slane %v402, 4
  %v420 = vsel %vm207, %v419, %v378
  %v421 = vrot.slane %v378, 4
  %v422 = vsel %vm207, %v402, %v421
  %v423 = vrot.slane %v410, 4
  %v424 = vsel %vm207, %v423, %v386
  %v425 = vrot.slane %v386, 4
  %v426 = vsel %vm207, %v410, %v425
  %v427 = vrot.slane %v414, 4
  %v428 = vsel %vm207, %v427, %v390
  %v429 = vrot.slane %v390, 4
  %v430 = vsel %vm207, %v414, %v429
  %v431 = vrot.slane %v163, 4
  %v432 = vsel %vm207, %v431, %v158
  %v433 = vrot.slane %v158, 4
  %v434 = vsel %vm207, %v163, %v433
  %v436 = vunpack.c.l.s4 1983009808
  %v437 = vunpack.c.0.s8 %v436
  %v438 = vperm.slane %v432, %v437
  %v440 = vunpack.c.l.s4 1983009808
  %v441 = vunpack.c.0.s8 %v440
  %v442 = vperm.slane %v434, %v441
  %v443 = vrot.slane %v165, 4
  %v444 = vsel %vm207, %v443, %v160
  %v445 = vrot.slane %v160, 4
  %v446 = vsel %vm207, %v165, %v445
  %v448 = vunpack.c.l.s4 1983009808
  %v449 = vunpack.c.0.s8 %v448
  %v450 = vperm.slane %v444, %v449
  %v452 = vunpack.c.l.s4 1983009808
  %v453 = vunpack.c.0.s8 %v452
  %v454 = vperm.slane %v446, %v453
  %v455 = vrot.slane %v173, 4
  %v456 = vsel %vm207, %v455, %v168
  %v457 = vrot.slane %v168, 4
  %v458 = vsel %vm207, %v173, %v457
  %v460 = vunpack.c.l.s4 1983009808
  %v461 = vunpack.c.0.s8 %v460
  %v462 = vperm.slane %v456, %v461
  %v464 = vunpack.c.l.s4 1983009808
  %v465 = vunpack.c.0.s8 %v464
  %v466 = vperm.slane %v458, %v465
  %v467 = vrot.slane %v175, 4
  %v468 = vsel %vm207, %v467, %v170
  %v469 = vrot.slane %v170, 4
  %v470 = vsel %vm207, %v175, %v469
  %v472 = vunpack.c.l.s4 1983009808
  %v473 = vunpack.c.0.s8 %v472
  %v474 = vperm.slane %v468, %v473
  %v476 = vunpack.c.l.s4 1983009808
  %v477 = vunpack.c.0.s8 %v476
  %v478 = vperm.slane %v470, %v477
  %v479 = vrot.slane %v450, 4
  %v480 = vsel %vm207, %v479, %v438
  %v481 = vrot.slane %v438, 4
  %v482 = vsel %vm207, %v450, %v481
  %v484 = vunpack.c.l.s4 1934713408
  %v485 = vunpack.c.0.s8 %v484
  %v486 = vperm.slane %v480, %v485
  %v488 = vunpack.c.l.s4 1934713408
  %v489 = vunpack.c.0.s8 %v488
  %v490 = vperm.slane %v482, %v489
  %v491 = vrot.slane %v454, 4
  %v492 = vsel %vm207, %v491, %v442
  %v493 = vrot.slane %v442, 4
  %v494 = vsel %vm207, %v454, %v493
  %v496 = vunpack.c.l.s4 1934713408
  %v497 = vunpack.c.0.s8 %v496
  %v498 = vperm.slane %v492, %v497
  %v500 = vunpack.c.l.s4 1934713408
  %v501 = vunpack.c.0.s8 %v500
  %v502 = vperm.slane %v494, %v501
  %v503 = vrot.slane %v474, 4
  %v504 = vsel %vm207, %v503, %v462
  %v505 = vrot.slane %v462, 4
  %v506 = vsel %vm207, %v474, %v505
  %v508 = vunpack.c.l.s4 1934713408
  %v509 = vunpack.c.0.s8 %v508
  %v510 = vperm.slane %v504, %v509
  %v512 = vunpack.c.l.s4 1934713408
  %v513 = vunpack.c.0.s8 %v512
  %v514 = vperm.slane %v506, %v513
  %v515 = vrot.slane %v478, 4
  %v516 = vsel %vm207, %v515, %v466
  %v517 = vrot.slane %v466, 4
  %v518 = vsel %vm207, %v478, %v517
  %v520 = vunpack.c.l.s4 1934713408
  %v521 = vunpack.c.0.s8 %v520
  %v522 = vperm.slane %v516, %v521
  %v524 = vunpack.c.l.s4 1934713408
  %v525 = vunpack.c.0.s8 %v524
  %v526 = vperm.slane %v518, %v525
  %v527 = vrot.slane %v510, 4
  %v528 = vsel %vm207, %v527, %v486
  %v529 = vrot.slane %v486, 4
  %v530 = vsel %vm207, %v510, %v529
  %v531 = vrot.slane %v514, 4
  %v532 = vsel %vm207, %v531, %v490
  %v533 = vrot.slane %v490, 4
  %v534 = vsel %vm207, %v514, %v533
  %v535 = vrot.slane %v522, 4
  %v536 = vsel %vm207, %v535, %v498
  %v537 = vrot.slane %v498, 4
  %v538 = vsel %vm207, %v522, %v537
  %v539 = vrot.slane %v526, 4
  %v540 = vsel %vm207, %v539, %v502
  %v541 = vrot.slane %v502, 4
  %v542 = vsel %vm207, %v526, %v541
  %v543 = vrot.slane %v192, 4
  %v544 = vsel %vm207, %v543, %v187
  %v545 = vrot.slane %v187, 4
  %v546 = vsel %vm207, %v192, %v545
  %v548 = vunpack.c.l.s4 1983009808
  %v549 = vunpack.c.0.s8 %v548
  %v550 = vperm.slane %v544, %v549
  %v552 = vunpack.c.l.s4 1983009808
  %v553 = vunpack.c.0.s8 %v552
  %v554 = vperm.slane %v546, %v553
  %v555 = vrot.slane %v194, 4
  %v556 = vsel %vm207, %v555, %v189
  %v557 = vrot.slane %v189, 4
  %v558 = vsel %vm207, %v194, %v557
  %v560 = vunpack.c.l.s4 1983009808
  %v561 = vunpack.c.0.s8 %v560
  %v562 = vperm.slane %v556, %v561
  %v564 = vunpack.c.l.s4 1983009808
  %v565 = vunpack.c.0.s8 %v564
  %v566 = vperm.slane %v558, %v565
  %v567 = vrot.slane %v202, 4
  %v568 = vsel %vm207, %v567, %v197
  %v569 = vrot.slane %v197, 4
  %v570 = vsel %vm207, %v202, %v569
  %v572 = vunpack.c.l.s4 1983009808
  %v573 = vunpack.c.0.s8 %v572
  %v574 = vperm.slane %v568, %v573
  %v576 = vunpack.c.l.s4 1983009808
  %v577 = vunpack.c.0.s8 %v576
  %v578 = vperm.slane %v570, %v577
  %v579 = vrot.slane %v204, 4
  %v580 = vsel %vm207, %v579, %v199
  %v581 = vrot.slane %v199, 4
  %v582 = vsel %vm207, %v204, %v581
  %v584 = vunpack.c.l.s4 1983009808
  %v585 = vunpack.c.0.s8 %v584
  %v586 = vperm.slane %v580, %v585
  %v588 = vunpack.c.l.s4 1983009808
  %v589 = vunpack.c.0.s8 %v588
  %v590 = vperm.slane %v582, %v589
  %v591 = vrot.slane %v562, 4
  %v592 = vsel %vm207, %v591, %v550
  %v593 = vrot.slane %v550, 4
  %v594 = vsel %vm207, %v562, %v593
  %v596 = vunpack.c.l.s4 1934713408
  %v597 = vunpack.c.0.s8 %v596
  %v598 = vperm.slane %v592, %v597
  %v600 = vunpack.c.l.s4 1934713408
  %v601 = vunpack.c.0.s8 %v600
  %v602 = vperm.slane %v594, %v601
  %v603 = vrot.slane %v566, 4
  %v604 = vsel %vm207, %v603, %v554
  %v605 = vrot.slane %v554, 4
  %v606 = vsel %vm207, %v566, %v605
  %v608 = vunpack.c.l.s4 1934713408
  %v609 = vunpack.c.0.s8 %v608
  %v610 = vperm.slane %v604, %v609
  %v612 = vunpack.c.l.s4 1934713408
  %v613 = vunpack.c.0.s8 %v612
  %v614 = vperm.slane %v606, %v613
  %v615 = vrot.slane %v586, 4
  %v616 = vsel %vm207, %v615, %v574
  %v617 = vrot.slane %v574, 4
  %v618 = vsel %vm207, %v586, %v617
  %v620 = vunpack.c.l.s4 1934713408
  %v621 = vunpack.c.0.s8 %v620
  %v622 = vperm.slane %v616, %v621
  %v624 = vunpack.c.l.s4 1934713408
  %v625 = vunpack.c.0.s8 %v624
  %v626 = vperm.slane %v618, %v625
  %v627 = vrot.slane %v590, 4
  %v628 = vsel %vm207, %v627, %v578
  %v629 = vrot.slane %v578, 4
  %v630 = vsel %vm207, %v590, %v629
  %v632 = vunpack.c.l.s4 1934713408
  %v633 = vunpack.c.0.s8 %v632
  %v634 = vperm.slane %v628, %v633
  %v636 = vunpack.c.l.s4 1934713408
  %v637 = vunpack.c.0.s8 %v636
  %v638 = vperm.slane %v630, %v637
  %v639 = vrot.slane %v622, 4
  %v640 = vsel %vm207, %v639, %v598
  %v641 = vrot.slane %v598, 4
  %v642 = vsel %vm207, %v622, %v641
  %v643 = vrot.slane %v626, 4
  %v644 = vsel %vm207, %v643, %v602
  %v645 = vrot.slane %v602, 4
  %v646 = vsel %vm207, %v626, %v645
  %v647 = vrot.slane %v634, 4
  %v648 = vsel %vm207, %v647, %v610
  %v649 = vrot.slane %v610, 4
  %v650 = vsel %vm207, %v634, %v649
  %v651 = vrot.slane %v638, 4
  %v652 = vsel %vm207, %v651, %v614
  %v653 = vrot.slane %v614, 4
  %v654 = vsel %vm207, %v638, %v653
  %v655 = vpack.c.bf16 %v416, %v304
  %v656 = vpack.c.bf16 %v640, %v528
  %v657 = vpack.c.bf16 %v418, %v306
  %v658 = vpack.c.bf16 %v642, %v530
  %v659 = vpack.c.bf16 %v420, %v308
  %v660 = vpack.c.bf16 %v644, %v532
  %v661 = vpack.c.bf16 %v422, %v310
  %v662 = vpack.c.bf16 %v646, %v534
  %v663 = vpack.c.bf16 %v424, %v312
  %v664 = vpack.c.bf16 %v648, %v536
  %v665 = vpack.c.bf16 %v426, %v314
  %v666 = vpack.c.bf16 %v650, %v538
  %v667 = vpack.c.bf16 %v428, %v316
  %v668 = vpack.c.bf16 %v652, %v540
  %v669 = vpack.c.bf16 %v430, %v318
  %v670 = vpack.c.bf16 %v654, %v542
  %671 = vst [vmem:[%s3] sm:$0xff] %v655
  %672 = vst [vmem:[%s3 + $0x8] sm:$0xff] %v656
  %673 = vst [vmem:[%s3 + $0x10] sm:$0xff] %v657
  %674 = vst [vmem:[%s3 + $0x18] sm:$0xff] %v658
  %675 = vst [vmem:[%s3 + $0x20] sm:$0xff] %v659
  %676 = vst [vmem:[%s3 + $0x28] sm:$0xff] %v660
  %677 = vst [vmem:[%s3 + $0x30] sm:$0xff] %v661
  %678 = vst [vmem:[%s3 + $0x38] sm:$0xff] %v662
  %679 = vst [vmem:[%s3 + $0x40] sm:$0xff] %v663
  %680 = vst [vmem:[%s3 + $0x48] sm:$0xff] %v664
  %681 = vst [vmem:[%s3 + $0x50] sm:$0xff] %v665
  %682 = vst [vmem:[%s3 + $0x58] sm:$0xff] %v666
  %683 = vst [vmem:[%s3 + $0x60] sm:$0xff] %v667
  %684 = vst [vmem:[%s3 + $0x68] sm:$0xff] %v668
  %685 = vst [vmem:[%s3 + $0x70] sm:$0xff] %v669
  %686 = vst [vmem:[%s3 + $0x78] sm:$0xff] %v670
  // Predicated region
  $region14: #{lstm_forward.4} parent=0 // pred_check
    _
  $region15: #{lstm_forward.4} parent=0 // pred_check_branch
    %688 = sbr.rel (0) target = $region17
  $region16: #{lstm_forward.4} parent=0 // pred_region
    _
  $region17: #{lstm_forward.4} parent=0 // pred_fallthru
    _
  // Predicated region
  $region18: #{lstm_forward.4} parent=0 // pred_check
    _
  $region19: #{lstm_forward.4} parent=0 // pred_check_branch
    %690 = sbr.rel (0) target = $region21
  $region20: #{lstm_forward.4} parent=0 // pred_region
    _
  $region21: #{lstm_forward.4} parent=0 // pred_fallthru
    _

// kernel: lstm_forward.7
$region0: #{lstm_forward.7}
  #allocation0 [shape = 'u32[]', space=smem, size = 0x4, offset = 0x4, fixed_abs, tag = 'smem constant byte address 0x4 - core index']
  #allocation1 [shape = 'u32[72,128]{1,0:T(1,128)}', space=vmem, size = 0x9000, scoped, tag = 'internal scratch']
  #allocation2 [shape = 'f32[8,128]{1,0:T(8,128)}', space=vmem, size = 0x1000, scoped, tag = 'scratch operand']
  #allocation3 [shape = 'f32[8,128]{1,0:T(8,128)}', space=vmem, size = 0x1000, scoped, tag = 'scratch operand']
  %s0 = inlined_call_operand.vmem [shape: bf16[8,8,512], index: 0, kind: input, shape index: {}]
  %s1 = inlined_call_operand.vmem [shape: f32[8,128], index: 1, kind: input, shape index: {}]
  %s2 = inlined_call_operand.vmem [shape: f32[8,128], index: 2, kind: input, shape index: {}]
  %s3 = inlined_call_operand.hbm [shape: bf16[128,512], index: 3, kind: input, shape index: {}]
  %s4 = inlined_call_operand.hbm [shape: f32[128,128], index: 4, kind: input, shape index: {}]
  %s5 = inlined_call_operand.vmem [shape: f32[1,128], index: 5, kind: input, shape index: {}]
  %s6 = inlined_call_operand.vmem [shape: f32[8,128], index: 6, kind: output, shape index: {0}]
  %s7 = inlined_call_operand.vmem [shape: f32[8,128], index: 7, kind: output, shape index: {1}]
  %s8 = inlined_call_operand.vmem [shape: f32[8,128], index: 8, kind: output, shape index: {2}]
  %9 = xla_tuple %s6, %s7, %s8
  %s10 = sld [smem:[#allocation0]]
  $region66: #{lstm_forward.7} parent=0
    _
  %s12 = ssub.s32 1, %s10
  %s13 = scalar_select 0, %s12, %s10
  $region1: #{lstm_forward.7} parent=0
    #allocation4 [shape = 'u8[131072]{0}', space=vmem, size = 0x20000, scoped, tag = 'input window, operand 3, single buffered']
    #allocation5 [shape = 's32[1]{0}', space=sflag, size = 0x4, scoped, tag = 'scoped memory for lstm_forward.7']
    #allocation6 [shape = 'u8[65536]{0}', space=vmem, size = 0x10000, scoped, tag = 'input window, operand 4, single buffered']
    #allocation7 [shape = 's32[1]{0}', space=sflag, size = 0x4, scoped, tag = 'scoped memory for lstm_forward.7']
    %14 = vsyncpa [#allocation5], 0
    %15 = vsyncpa [#allocation7], 0
    // Predicated region
    $region2: #{lstm_forward.7} parent=1 // pred_check
      _
    $region3: #{lstm_forward.7} parent=1 // pred_check_branch
      %17 = sbr.rel (0) target = $region5
    $region4: #{lstm_forward.7} parent=1 // pred_region
      _
    $region5: #{lstm_forward.7} parent=1 // pred_fallthru
      _
    // Predicated region
    $region6: #{lstm_forward.7} parent=1 // pred_check
      _
    $region7: #{lstm_forward.7} parent=1 // pred_check_branch
      %19 = sbr.rel (0) target = $region9
    $region8: #{lstm_forward.7} parent=1 // pred_region
      _
    $region9: #{lstm_forward.7} parent=1 // pred_fallthru
      _
    // Predicated region
    $region10: #{lstm_forward.7} parent=1 // pred_check
      _
    $region11: #{lstm_forward.7} parent=1 // pred_check_branch
      %21 = sbr.rel (0) target = $region13
    $region12: #{lstm_forward.7} parent=1 // pred_region
      _
    $region13: #{lstm_forward.7} parent=1 // pred_fallthru
      _
    // Predicated region
    $region14: #{lstm_forward.7} parent=1 // pred_check
      _
    $region15: #{lstm_forward.7} parent=1 // pred_check_branch
      %23 = sbr.rel (0) target = $region17
    $region16: #{lstm_forward.7} parent=1 // pred_region
      %25 = vsyncadd [#allocation5], 0
      %s26 = sshll.u32 %s3, 4
      %s27 = int_to_ptr.hbm [resolvable:$true] %s26
      %s28 = sshll.u32 [#allocation4], 4
      %s29 = int_to_ptr.vmem [resolvable:$true] %s28
      %34 = dma.hbm_to_vmem [thread:$0]  %s27, 4096, %s29, [#allocation5], 256, 256, 16
    $region17: #{lstm_forward.7} parent=1 // pred_fallthru
      _
    // Predicated region
    $region18: #{lstm_forward.7} parent=1 // pred_check
      _
    $region19: #{lstm_forward.7} parent=1 // pred_check_branch
      %36 = sbr.rel (0) target = $region21
    $region20: #{lstm_forward.7} parent=1 // pred_region
      %38 = vsyncadd [#allocation7], 0
      %s39 = sshll.u32 %s4, 4
      %s40 = int_to_ptr.hbm [resolvable:$true] %s39
      %s41 = sshll.u32 [#allocation6], 4
      %s42 = int_to_ptr.vmem [resolvable:$true] %s41
      %47 = dma.hbm_to_vmem [thread:$0]  %s40, 2048, %s42, [#allocation7], 128, 128, 8
    $region21: #{lstm_forward.7} parent=1 // pred_fallthru
      _
    // Predicated region
    $region22: #{lstm_forward.7} parent=1 // pred_check
      _
    $region23: #{lstm_forward.7} parent=1 // pred_check_branch
      %49 = sbr.rel (0) target = $region25
    $region24: #{lstm_forward.7} parent=1 // pred_region
      _
    $region25: #{lstm_forward.7} parent=1 // pred_fallthru
      _
    // Predicated region
    $region26: #{lstm_forward.7} parent=1 // pred_check
      _
    $region27: #{lstm_forward.7} parent=1 // pred_check_branch
      %51 = sbr.rel (0) target = $region29
    $region28: #{lstm_forward.7} parent=1 // pred_region
      %53 = dma.done [#allocation5], 4096
    $region29: #{lstm_forward.7} parent=1 // pred_fallthru
      _
    // Predicated region
    $region30: #{lstm_forward.7} parent=1 // pred_check
      _
    $region31: #{lstm_forward.7} parent=1 // pred_check_branch
      %55 = sbr.rel (0) target = $region33
    $region32: #{lstm_forward.7} parent=1 // pred_region
      %57 = dma.done [#allocation7], 2048
    $region33: #{lstm_forward.7} parent=1 // pred_fallthru
      _
    %p58 = scmp.eq.s32.totalorder 0, 0
    // Predicated region
    $region34: #{lstm_forward.7} parent=1 // pred_check
      %p59 = pneg %p58
    $region35: #{lstm_forward.7} parent=1 // pred_check_branch
      %61 = sbr.rel (%p59) target = $region37
    $region36: #{lstm_forward.7} parent=1 // pred_region
      %v62 = vld [vmem:[%s1] sm:$0xff]
      %63 = vst [vmem:[#allocation2] sm:$0xff] %v62
      %v64 = vld [vmem:[%s2] sm:$0xff]
      %65 = vst [vmem:[#allocation3] sm:$0xff] %v64
    $region37: #{lstm_forward.7} parent=1 // pred_fallthru
      _
    %v66 = vld [vmem:[#allocation4] sm:$0xff]
    %v67 = vld [vmem:[#allocation4 + $0x8] sm:$0xff]
    %v68 = vld [vmem:[#allocation4 + $0x10] sm:$0xff]
    %v69 = vld [vmem:[#allocation4 + $0x18] sm:$0xff]
    %v70 = vld [vmem:[#allocation4 + $0x20] sm:$0xff]
    %v71 = vld [vmem:[#allocation4 + $0x28] sm:$0xff]
    %v72 = vld [vmem:[#allocation4 + $0x30] sm:$0xff]
    %v73 = vld [vmem:[#allocation4 + $0x38] sm:$0xff]
    %v74 = vld [vmem:[#allocation4 + $0x40] sm:$0xff]
    %v75 = vld [vmem:[#allocation4 + $0x48] sm:$0xff]
    %v76 = vld [vmem:[#allocation4 + $0x50] sm:$0xff]
    %v77 = vld [vmem:[#allocation4 + $0x58] sm:$0xff]
    %v78 = vld [vmem:[#allocation4 + $0x60] sm:$0xff]
    %v79 = vld [vmem:[#allocation4 + $0x68] sm:$0xff]
    %v80 = vld [vmem:[#allocation4 + $0x70] sm:$0xff]
    %v81 = vld [vmem:[#allocation4 + $0x78] sm:$0xff]
    %v82 = vld [vmem:[#allocation4 + $0x80] sm:$0xff]
    %v83 = vld [vmem:[#allocation4 + $0x88] sm:$0xff]
    %v84 = vld [vmem:[#allocation4 + $0x90] sm:$0xff]
    %v85 = vld [vmem:[#allocation4 + $0x98] sm:$0xff]
    %v86 = vld [vmem:[#allocation4 + $0xa0] sm:$0xff]
    %v87 = vld [vmem:[#allocation4 + $0xa8] sm:$0xff]
    %v88 = vld [vmem:[#allocation4 + $0xb0] sm:$0xff]
    %v89 = vld [vmem:[#allocation4 + $0xb8] sm:$0xff]
    %v90 = vld [vmem:[#allocation4 + $0xc0] sm:$0xff]
    %v91 = vld [vmem:[#allocation4 + $0xc8] sm:$0xff]
    %v92 = vld [vmem:[#allocation4 + $0xd0] sm:$0xff]
    %v93 = vld [vmem:[#allocation4 + $0xd8] sm:$0xff]
    %v94 = vld [vmem:[#allocation4 + $0xe0] sm:$0xff]
    %v95 = vld [vmem:[#allocation4 + $0xe8] sm:$0xff]
    %v96 = vld [vmem:[#allocation4 + $0xf0] sm:$0xff]
    %v97 = vld [vmem:[#allocation4 + $0xf8] sm:$0xff]
    %v98 = vld [vmem:[#allocation2] sm:$0xff]
    %v99 = vld [vmem:[#allocation3] sm:$0xff]
    %v100 = vld [vmem:[%s0] sm:$0xff]
    %v101 = vld [vmem:[%s0 + $0x8] sm:$0xff]
    %v102 = vunpack.c.l.bf16 %v100
    %v103 = vunpack.c.h.bf16 %v100
    %v104 = vunpack.c.l.bf16 %v101
    %v105 = vunpack.c.h.bf16 %v101
    %v106 = vpack.c.bf16 %v98, %v98
    %v139 = vunpack.c.l.b16 %v66
    %v140 = vunpack.c.h.b16 %v66
    %v141 = vunpack.c.l.b16 %v67
    %v142 = vunpack.c.h.b16 %v67
    %v143 = vunpack.c.l.b16 %v68
    %v144 = vunpack.c.h.b16 %v68
    %v145 = vunpack.c.l.b16 %v69
    %v146 = vunpack.c.h.b16 %v69
    %v147 = vunpack.c.l.b16 %v70
    %v148 = vunpack.c.h.b16 %v70
    %v149 = vunpack.c.l.b16 %v71
    %v150 = vunpack.c.h.b16 %v71
    %v151 = vunpack.c.l.b16 %v72
    %v152 = vunpack.c.h.b16 %v72
    %v153 = vunpack.c.l.b16 %v73
    %v154 = vunpack.c.h.b16 %v73
    %v155 = vunpack.c.l.b16 %v74
    %v156 = vunpack.c.h.b16 %v74
    %v157 = vunpack.c.l.b16 %v75
    %v158 = vunpack.c.h.b16 %v75
    %v159 = vunpack.c.l.b16 %v76
    %v160 = vunpack.c.h.b16 %v76
    %v161 = vunpack.c.l.b16 %v77
    %v162 = vunpack.c.h.b16 %v77
    %v163 = vunpack.c.l.b16 %v78
    %v164 = vunpack.c.h.b16 %v78
    %v165 = vunpack.c.l.b16 %v79
    %v166 = vunpack.c.h.b16 %v79
    %v167 = vunpack.c.l.b16 %v80
    %v168 = vunpack.c.h.b16 %v80
    %v169 = vunpack.c.l.b16 %v81
    %v170 = vunpack.c.h.b16 %v81
    %v171 = vunpack.c.l.b16 %v82
    %v172 = vunpack.c.h.b16 %v82
    %v173 = vunpack.c.l.b16 %v83
    %v174 = vunpack.c.h.b16 %v83
    %v175 = vunpack.c.l.b16 %v84
    %v176 = vunpack.c.h.b16 %v84
    %v177 = vunpack.c.l.b16 %v85
    %v178 = vunpack.c.h.b16 %v85
    %v179 = vunpack.c.l.b16 %v86
    %v180 = vunpack.c.h.b16 %v86
    %v181 = vunpack.c.l.b16 %v87
    %v182 = vunpack.c.h.b16 %v87
    %v183 = vunpack.c.l.b16 %v88
    %v184 = vunpack.c.h.b16 %v88
    %v185 = vunpack.c.l.b16 %v89
    %v186 = vunpack.c.h.b16 %v89
    %v187 = vunpack.c.l.b16 %v90
    %v188 = vunpack.c.h.b16 %v90
    %v189 = vunpack.c.l.b16 %v91
    %v190 = vunpack.c.h.b16 %v91
    %v191 = vunpack.c.l.b16 %v92
    %v192 = vunpack.c.h.b16 %v92
    %v193 = vunpack.c.l.b16 %v93
    %v194 = vunpack.c.h.b16 %v93
    %v195 = vunpack.c.l.b16 %v94
    %v196 = vunpack.c.h.b16 %v94
    %v197 = vunpack.c.l.b16 %v95
    %v198 = vunpack.c.h.b16 %v95
    %v199 = vunpack.c.l.b16 %v96
    %v200 = vunpack.c.h.b16 %v96
    %v201 = vunpack.c.l.b16 %v97
    %v202 = vunpack.c.h.b16 %v97
    %v203 = vpack.c.b16 %v143, %v139
    %v204 = vpack.c.b16 %v144, %v140
    %v205 = vpack.c.b16 %v145, %v141
    %v206 = vpack.c.b16 %v146, %v142
    %v207 = vpack.c.b16 %v151, %v147
    %v208 = vpack.c.b16 %v152, %v148
    %v209 = vpack.c.b16 %v153, %v149
    %v210 = vpack.c.b16 %v154, %v150
    %v211 = vpack.c.b16 %v159, %v155
    %v212 = vpack.c.b16 %v160, %v156
    %v213 = vpack.c.b16 %v161, %v157
    %v214 = vpack.c.b16 %v162, %v158
    %v215 = vpack.c.b16 %v167, %v163
    %v216 = vpack.c.b16 %v168, %v164
    %v217 = vpack.c.b16 %v169, %v165
    %v218 = vpack.c.b16 %v170, %v166
    %v219 = vpack.c.b16 %v175, %v171
    %v220 = vpack.c.b16 %v176, %v172
    %v221 = vpack.c.b16 %v177, %v173
    %v222 = vpack.c.b16 %v178, %v174
    %v223 = vpack.c.b16 %v183, %v179
    %v224 = vpack.c.b16 %v184, %v180
    %v225 = vpack.c.b16 %v185, %v181
    %v226 = vpack.c.b16 %v186, %v182
    %v227 = vpack.c.b16 %v191, %v187
    %v228 = vpack.c.b16 %v192, %v188
    %v229 = vpack.c.b16 %v193, %v189
    %v230 = vpack.c.b16 %v194, %v190
    %v231 = vpack.c.b16 %v199, %v195
    %v232 = vpack.c.b16 %v200, %v196
    %v233 = vpack.c.b16 %v201, %v197
    %v234 = vpack.c.b16 %v202, %v198
    %267 = vmatpush.bf16.msra.mxu0 %v231
    %268 = vmatpush.bf16.msra.mxu0 %v227
    %269 = vmatpush.bf16.msra.mxu0 %v223
    %270 = vmatpush.bf16.msra.mxu0 %v219
    %271 = vmatpush.bf16.msra.mxu0 %v215
    %272 = vmatpush.bf16.msra.mxu0 %v211
    %273 = vmatpush.bf16.msra.mxu0 %v207
    %274 = vmatpush.bf16.msra.mxu0 %v203
    %275 = vmatmul.bf16.gmra.mxu0 %v106
    %v276 = vpop.f32.mrf.mxu0
    %v277 = vadd.f32 0.0, %v276
    %v278 = vpop.f32.mrf.mxu0
    %279 = vdwg.mxu0
    %280 = vmatpush.bf16.msra.mxu0 %v232
    %281 = vmatpush.bf16.msra.mxu0 %v228
    %282 = vmatpush.bf16.msra.mxu0 %v224
    %283 = vmatpush.bf16.msra.mxu0 %v220
    %284 = vmatpush.bf16.msra.mxu0 %v216
    %285 = vmatpush.bf16.msra.mxu0 %v212
    %286 = vmatpush.bf16.msra.mxu0 %v208
    %287 = vmatpush.bf16.msra.mxu0 %v204
    %288 = vmatmul.bf16.gmra.mxu0 %v106
    %v289 = vpop.f32.mrf.mxu0
    %v290 = vadd.f32 0.0, %v289
    %v291 = vpop.f32.mrf.mxu0
    %292 = vdwg.mxu0
    %293 = vmatpush.bf16.msra.mxu0 %v233
    %294 = vmatpush.bf16.msra.mxu0 %v229
    %295 = vmatpush.bf16.msra.mxu0 %v225
    %296 = vmatpush.bf16.msra.mxu0 %v221
    %297 = vmatpush.bf16.msra.mxu0 %v217
    %298 = vmatpush.bf16.msra.mxu0 %v213
    %299 = vmatpush.bf16.msra.mxu0 %v209
    %300 = vmatpush.bf16.msra.mxu0 %v205
    %301 = vmatmul.bf16.gmra.mxu0 %v106
    %v302 = vpop.f32.mrf.mxu0
    %v303 = vadd.f32 0.0, %v302
    %v304 = vpop.f32.mrf.mxu0
    %305 = vdwg.mxu0
    %306 = vmatpush.bf16.msra.mxu0 %v234
    %307 = vmatpush.bf16.msra.mxu0 %v230
    %308 = vmatpush.bf16.msra.mxu0 %v226
    %309 = vmatpush.bf16.msra.mxu0 %v222
    %310 = vmatpush.bf16.msra.mxu0 %v218
    %311 = vmatpush.bf16.msra.mxu0 %v214
    %312 = vmatpush.bf16.msra.mxu0 %v210
    %313 = vmatpush.bf16.msra.mxu0 %v206
    %314 = vmatmul.bf16.gmra.mxu0 %v106
    %v315 = vpop.f32.mrf.mxu0
    %v316 = vadd.f32 0.0, %v315
    %v317 = vpop.f32.mrf.mxu0
    %318 = vdwg.mxu0
    %v319 = vadd.f32 %v102, %v277
    %v320 = vadd.f32 %v103, %v290
    %v321 = vadd.f32 %v104, %v303
    %v322 = vadd.f32 %v105, %v316
    %v323 = vxor.u32 %v319, 2147483648
    %v324 = vxor.u32 %v320, 2147483648
    %v325 = vxor.u32 %v321, 2147483648
    %v326 = vmul.f32 %v323, 1.442695
    %v327 = vpow.pop %v326
    %v328 = vmul.f32 %v324, 1.442695
    %v329 = vpow.pop %v328
    %v330 = vmul.f32 %v325, 1.442695
    %v331 = vpow.pop %v330
    %v332 = vadd.f32 %v327, 1.0
    %v333 = vadd.f32 %v329, 1.0
    %v334 = vadd.f32 %v331, 1.0
    %v335 = vrcp.pop %v332
    %v336 = vmul.f32 %v332, %v335
    %v337 = vsub.f32 1.0, %v336
    %v338 = vmul.f32 %v335, %v337
    %v339 = vadd.f32 %v335, %v338
    %vm340 = vweird.f32 %v332
    %vm341 = vweird.f32 %v335
    %vm342 = vmor %vm340, %vm341
    %v343 = vsel %vm342, %v335, %v339
    %v344 = vand.u32 2147483647, %v332
    %vm345 = vcmp.eq.f32.partialorder %v344, 8.507059e+37
    %v346 = vand.u32 %v332, 2147483648
    %v347 = vor.u32 1.1754944e-38, %v346
    %v348 = vsel %vm345, %v347, %v343
    %v349 = vmul.f32 1.0, %v348
    %v350 = vrcp.pop %v333
    %v351 = vmul.f32 %v333, %v350
    %v352 = vsub.f32 1.0, %v351
    %v353 = vmul.f32 %v350, %v352
    %v354 = vadd.f32 %v350, %v353
    %vm355 = vweird.f32 %v333
    %vm356 = vweird.f32 %v350
    %vm357 = vmor %vm355, %vm356
    %v358 = vsel %vm357, %v350, %v354
    %v359 = vand.u32 2147483647, %v333
    %vm360 = vcmp.eq.f32.partialorder %v359, 8.507059e+37
    %v361 = vand.u32 %v333, 2147483648
    %v362 = vor.u32 1.1754944e-38, %v361
    %v363 = vsel %vm360, %v362, %v358
    %v364 = vmul.f32 1.0, %v363
    %v365 = vrcp.pop %v334
    %v366 = vmul.f32 %v334, %v365
    %v367 = vsub.f32 1.0, %v366
    %v368 = vmul.f32 %v365, %v367
    %v369 = vadd.f32 %v365, %v368
    %vm370 = vweird.f32 %v334
    %vm371 = vweird.f32 %v365
    %vm372 = vmor %vm370, %vm371
    %v373 = vsel %vm372, %v365, %v369
    %v374 = vand.u32 2147483647, %v334
    %vm375 = vcmp.eq.f32.partialorder %v374, 8.507059e+37
    %v376 = vand.u32 %v334, 2147483648
    %v377 = vor.u32 1.1754944e-38, %v376
    %v378 = vsel %vm375, %v377, %v373
    %v379 = vmul.f32 1.0, %v378
    %v380 = vtanh.pop %v322
    %v381 = vmul.f32 %v364, %v99
    %v382 = vmul.f32 %v349, %v380
    %v383 = vadd.f32 %v381, %v382
    %v384 = vtanh.pop %v383
    %v385 = vmul.f32 %v379, %v384
    %s386 = scalar_lea.vmem %s0, 16
    %v387 = vld [vmem:[%s386] sm:$0xff]
    %v388 = vld [vmem:[%s386 + $0x8] sm:$0xff]
    %v389 = vunpack.c.l.bf16 %v387
    %v390 = vunpack.c.h.bf16 %v387
    %v391 = vunpack.c.l.bf16 %v388
    %v392 = vunpack.c.h.bf16 %v388
    %v393 = vpack.c.bf16 %v385, %v385
    %394 = vmatpush.bf16.msra.mxu0 %v231
    %395 = vmatpush.bf16.msra.mxu0 %v227
    %396 = vmatpush.bf16.msra.mxu0 %v223
    %397 = vmatpush.bf16.msra.mxu0 %v219
    %398 = vmatpush.bf16.msra.mxu0 %v215
    %399 = vmatpush.bf16.msra.mxu0 %v211
    %400 = vmatpush.bf16.msra.mxu0 %v207
    %401 = vmatpush.bf16.msra.mxu0 %v203
    %402 = vmatmul.bf16.gmra.mxu0 %v393
    %v403 = vpop.f32.mrf.mxu0
    %v404 = vadd.f32 0.0, %v403
    %v405 = vpop.f32.mrf.mxu0
    %406 = vdwg.mxu0
    %407 = vmatpush.bf16.msra.mxu0 %v232
    %408 = vmatpush.bf16.msra.mxu0 %v228
    %409 = vmatpush.bf16.msra.mxu0 %v224
    %410 = vmatpush.bf16.msra.mxu0 %v220
    %411 = vmatpush.bf16.msra.mxu0 %v216
    %412 = vmatpush.bf16.msra.mxu0 %v212
    %413 = vmatpush.bf16.msra.mxu0 %v208
    %414 = vmatpush.bf16.msra.mxu0 %v204
    %415 = vmatmul.bf16.gmra.mxu0 %v393
    %v416 = vpop.f32.mrf.mxu0
    %v417 = vadd.f32 0.0, %v416
    %v418 = vpop.f32.mrf.mxu0
    %419 = vdwg.mxu0
    %420 = vmatpush.bf16.msra.mxu0 %v233
    %421 = vmatpush.bf16.msra.mxu0 %v229
    %422 = vmatpush.bf16.msra.mxu0 %v225
    %423 = vmatpush.bf16.msra.mxu0 %v221
    %424 = vmatpush.bf16.msra.mxu0 %v217
    %425 = vmatpush.bf16.msra.mxu0 %v213
    %426 = vmatpush.bf16.msra.mxu0 %v209
    %427 = vmatpush.bf16.msra.mxu0 %v205
    %428 = vmatmul.bf16.gmra.mxu0 %v393
    %v429 = vpop.f32.mrf.mxu0
    %v430 = vadd.f32 0.0, %v429
    %v431 = vpop.f32.mrf.mxu0
    %432 = vdwg.mxu0
    %433 = vmatpush.bf16.msra.mxu0 %v234
    %434 = vmatpush.bf16.msra.mxu0 %v230
    %435 = vmatpush.bf16.msra.mxu0 %v226
    %436 = vmatpush.bf16.msra.mxu0 %v222
    %437 = vmatpush.bf16.msra.mxu0 %v218
    %438 = vmatpush.bf16.msra.mxu0 %v214
    %439 = vmatpush.bf16.msra.mxu0 %v210
    %440 = vmatpush.bf16.msra.mxu0 %v206
    %441 = vmatmul.bf16.gmra.mxu0 %v393
    %v442 = vpop.f32.mrf.mxu0
    %v443 = vadd.f32 0.0, %v442
    %v444 = vpop.f32.mrf.mxu0
    %445 = vdwg.mxu0
    %v446 = vadd.f32 %v389, %v404
    %v447 = vadd.f32 %v390, %v417
    %v448 = vadd.f32 %v391, %v430
    %v449 = vadd.f32 %v392, %v443
    %v450 = vxor.u32 %v446, 2147483648
    %v451 = vxor.u32 %v447, 2147483648
    %v452 = vxor.u32 %v448, 2147483648
    %v453 = vmul.f32 %v450, 1.442695
    %v454 = vpow.pop %v453
    %v455 = vmul.f32 %v451, 1.442695
    %v456 = vpow.pop %v455
    %v457 = vmul.f32 %v452, 1.442695
    %v458 = vpow.pop %v457
    %v459 = vadd.f32 %v454, 1.0
    %v460 = vadd.f32 %v456, 1.0
    %v461 = vadd.f32 %v458, 1.0
    %v462 = vrcp.pop %v459
    %v463 = vmul.f32 %v459, %v462
    %v464 = vsub.f32 1.0, %v463
    %v465 = vmul.f32 %v462, %v464
    %v466 = vadd.f32 %v462, %v465
    %vm467 = vweird.f32 %v459
    %vm468 = vweird.f32 %v462
    %vm469 = vmor %vm467, %vm468
    %v470 = vsel %vm469, %v462, %v466
    %v471 = vand.u32 2147483647, %v459
    %vm472 = vcmp.eq.f32.partialorder %v471, 8.507059e+37
    %v473 = vand.u32 %v459, 2147483648
    %v474 = vor.u32 1.1754944e-38, %v473
    %v475 = vsel %vm472, %v474, %v470
    %v476 = vmul.f32 1.0, %v475
    %v477 = vrcp.pop %v460
    %v478 = vmul.f32 %v460, %v477
    %v479 = vsub.f32 1.0, %v478
    %v480 = vmul.f32 %v477, %v479
    %v481 = vadd.f32 %v477, %v480
    %vm482 = vweird.f32 %v460
    %vm483 = vweird.f32 %v477
    %vm484 = vmor %vm482, %vm483
    %v485 = vsel %vm484, %v477, %v481
    %v486 = vand.u32 2147483647, %v460
    %vm487 = vcmp.eq.f32.partialorder %v486, 8.507059e+37
    %v488 = vand.u32 %v460, 2147483648
    %v489 = vor.u32 1.1754944e-38, %v488
    %v490 = vsel %vm487, %v489, %v485
    %v491 = vmul.f32 1.0, %v490
    %v492 = vrcp.pop %v461
    %v493 = vmul.f32 %v461, %v492
    %v494 = vsub.f32 1.0, %v493
    %v495 = vmul.f32 %v492, %v494
    %v496 = vadd.f32 %v492, %v495
    %vm497 = vweird.f32 %v461
    %vm498 = vweird.f32 %v492
    %vm499 = vmor %vm497, %vm498
    %v500 = vsel %vm499, %v492, %v496
    %v501 = vand.u32 2147483647, %v461
    %vm502 = vcmp.eq.f32.partialorder %v501, 8.507059e+37
    %v503 = vand.u32 %v461, 2147483648
    %v504 = vor.u32 1.1754944e-38, %v503
    %v505 = vsel %vm502, %v504, %v500
    %v506 = vmul.f32 1.0, %v505
    %v507 = vtanh.pop %v449
    %v508 = vmul.f32 %v491, %v383
    %v509 = vmul.f32 %v476, %v507
    %v510 = vadd.f32 %v508, %v509
    %v511 = vtanh.pop %v510
    %v512 = vmul.f32 %v506, %v511
    %s513 = scalar_lea.vmem %s0, 32
    %v514 = vld [vmem:[%s513] sm:$0xff]
    %v515 = vld [vmem:[%s513 + $0x8] sm:$0xff]
    %v516 = vunpack.c.l.bf16 %v514
    %v517 = vunpack.c.h.bf16 %v514
    %v518 = vunpack.c.l.bf16 %v515
    %v519 = vunpack.c.h.bf16 %v515
    %v520 = vpack.c.bf16 %v512, %v512
    %521 = vmatpush.bf16.msra.mxu0 %v231
    %522 = vmatpush.bf16.msra.mxu0 %v227
    %523 = vmatpush.bf16.msra.mxu0 %v223
    %524 = vmatpush.bf16.msra.mxu0 %v219
    %525 = vmatpush.bf16.msra.mxu0 %v215
    %526 = vmatpush.bf16.msra.mxu0 %v211
    %527 = vmatpush.bf16.msra.mxu0 %v207
    %528 = vmatpush.bf16.msra.mxu0 %v203
    %529 = vmatmul.bf16.gmra.mxu0 %v520
    %v530 = vpop.f32.mrf.mxu0
    %v531 = vadd.f32 0.0, %v530
    %v532 = vpop.f32.mrf.mxu0
    %533 = vdwg.mxu0
    %534 = vmatpush.bf16.msra.mxu0 %v232
    %535 = vmatpush.bf16.msra.mxu0 %v228
    %536 = vmatpush.bf16.msra.mxu0 %v224
    %537 = vmatpush.bf16.msra.mxu0 %v220
    %538 = vmatpush.bf16.msra.mxu0 %v216
    %539 = vmatpush.bf16.msra.mxu0 %v212
    %540 = vmatpush.bf16.msra.mxu0 %v208
    %541 = vmatpush.bf16.msra.mxu0 %v204
    %542 = vmatmul.bf16.gmra.mxu0 %v520
    %v543 = vpop.f32.mrf.mxu0
    %v544 = vadd.f32 0.0, %v543
    %v545 = vpop.f32.mrf.mxu0
    %546 = vdwg.mxu0
    %547 = vmatpush.bf16.msra.mxu0 %v233
    %548 = vmatpush.bf16.msra.mxu0 %v229
    %549 = vmatpush.bf16.msra.mxu0 %v225
    %550 = vmatpush.bf16.msra.mxu0 %v221
    %551 = vmatpush.bf16.msra.mxu0 %v217
    %552 = vmatpush.bf16.msra.mxu0 %v213
    %553 = vmatpush.bf16.msra.mxu0 %v209
    %554 = vmatpush.bf16.msra.mxu0 %v205
    %555 = vmatmul.bf16.gmra.mxu0 %v520
    %v556 = vpop.f32.mrf.mxu0
    %v557 = vadd.f32 0.0, %v556
    %v558 = vpop.f32.mrf.mxu0
    %559 = vdwg.mxu0
    %560 = vmatpush.bf16.msra.mxu0 %v234
    %561 = vmatpush.bf16.msra.mxu0 %v230
    %562 = vmatpush.bf16.msra.mxu0 %v226
    %563 = vmatpush.bf16.msra.mxu0 %v222
    %564 = vmatpush.bf16.msra.mxu0 %v218
    %565 = vmatpush.bf16.msra.mxu0 %v214
    %566 = vmatpush.bf16.msra.mxu0 %v210
    %567 = vmatpush.bf16.msra.mxu0 %v206
    %568 = vmatmul.bf16.gmra.mxu0 %v520
    %v569 = vpop.f32.mrf.mxu0
    %v570 = vadd.f32 0.0, %v569
    %v571 = vpop.f32.mrf.mxu0
    %572 = vdwg.mxu0
    %v573 = vadd.f32 %v516, %v531
    %v574 = vadd.f32 %v517, %v544
    %v575 = vadd.f32 %v518, %v557
    %v576 = vadd.f32 %v519, %v570
    %v577 = vxor.u32 %v573, 2147483648
    %v578 = vxor.u32 %v574, 2147483648
    %v579 = vxor.u32 %v575, 2147483648
    %v580 = vmul.f32 %v577, 1.442695
    %v581 = vpow.pop %v580
    %v582 = vmul.f32 %v578, 1.442695
    %v583 = vpow.pop %v582
    %v584 = vmul.f32 %v579, 1.442695
    %v585 = vpow.pop %v584
    %v586 = vadd.f32 %v581, 1.0
    %v587 = vadd.f32 %v583, 1.0
    %v588 = vadd.f32 %v585, 1.0
    %v589 = vrcp.pop %v586
    %v590 = vmul.f32 %v586, %v589
    %v591 = vsub.f32 1.0, %v590
    %v592 = vmul.f32 %v589, %v591
    %v593 = vadd.f32 %v589, %v592
    %vm594 = vweird.f32 %v586
    %vm595 = vweird.f32 %v589
    %vm596 = vmor %vm594, %vm595
    %v597 = vsel %vm596, %v589, %v593
    %v598 = vand.u32 2147483647, %v586
    %vm599 = vcmp.eq.f32.partialorder %v598, 8.507059e+37
    %v600 = vand.u32 %v586, 2147483648
    %v601 = vor.u32 1.1754944e-38, %v600
    %v602 = vsel %vm599, %v601, %v597
    %v603 = vmul.f32 1.0, %v602
    %v604 = vrcp.pop %v587
    %v605 = vmul.f32 %v587, %v604
    %v606 = vsub.f32 1.0, %v605
    %v607 = vmul.f32 %v604, %v606
    %v608 = vadd.f32 %v604, %v607
    %vm609 = vweird.f32 %v587
    %vm610 = vweird.f32 %v604
    %vm611 = vmor %vm609, %vm610
    %v612 = vsel %vm611, %v604, %v608
    %v613 = vand.u32 2147483647, %v587
    %vm614 = vcmp.eq.f32.partialorder %v613, 8.507059e+37
    %v615 = vand.u32 %v587, 2147483648
    %v616 = vor.u32 1.1754944e-38, %v615
    %v617 = vsel %vm614, %v616, %v612
    %v618 = vmul.f32 1.0, %v617
    %v619 = vrcp.pop %v588
    %v620 = vmul.f32 %v588, %v619
    %v621 = vsub.f32 1.0, %v620
    %v622 = vmul.f32 %v619, %v621
    %v623 = vadd.f32 %v619, %v622
    %vm624 = vweird.f32 %v588
    %vm625 = vweird.f32 %v619
    %vm626 = vmor %vm624, %vm625
    %v627 = vsel %vm626, %v619, %v623
    %v628 = vand.u32 2147483647, %v588
    %vm629 = vcmp.eq.f32.partialorder %v628, 8.507059e+37
    %v630 = vand.u32 %v588, 2147483648
    %v631 = vor.u32 1.1754944e-38, %v630
    %v632 = vsel %vm629, %v631, %v627
    %v633 = vmul.f32 1.0, %v632
    %v634 = vtanh.pop %v576
    %v635 = vmul.f32 %v618, %v510
    %v636 = vmul.f32 %v603, %v634
    %v637 = vadd.f32 %v635, %v636
    %v638 = vtanh.pop %v637
    %v639 = vmul.f32 %v633, %v638
    %s640 = scalar_lea.vmem %s0, 48
    %v641 = vld [vmem:[%s640] sm:$0xff]
    %v642 = vld [vmem:[%s640 + $0x8] sm:$0xff]
    %v643 = vunpack.c.l.bf16 %v641
    %v644 = vunpack.c.h.bf16 %v641
    %v645 = vunpack.c.l.bf16 %v642
    %v646 = vunpack.c.h.bf16 %v642
    %v647 = vpack.c.bf16 %v639, %v639
    %648 = vmatpush.bf16.msra.mxu0 %v231
    %649 = vmatpush.bf16.msra.mxu0 %v227
    %650 = vmatpush.bf16.msra.mxu0 %v223
    %651 = vmatpush.bf16.msra.mxu0 %v219
    %652 = vmatpush.bf16.msra.mxu0 %v215
    %653 = vmatpush.bf16.msra.mxu0 %v211
    %654 = vmatpush.bf16.msra.mxu0 %v207
    %655 = vmatpush.bf16.msra.mxu0 %v203
    %656 = vmatmul.bf16.gmra.mxu0 %v647
    %v657 = vpop.f32.mrf.mxu0
    %v658 = vadd.f32 0.0, %v657
    %v659 = vpop.f32.mrf.mxu0
    %660 = vdwg.mxu0
    %661 = vmatpush.bf16.msra.mxu0 %v232
    %662 = vmatpush.bf16.msra.mxu0 %v228
    %663 = vmatpush.bf16.msra.mxu0 %v224
    %664 = vmatpush.bf16.msra.mxu0 %v220
    %665 = vmatpush.bf16.msra.mxu0 %v216
    %666 = vmatpush.bf16.msra.mxu0 %v212
    %667 = vmatpush.bf16.msra.mxu0 %v208
    %668 = vmatpush.bf16.msra.mxu0 %v204
    %669 = vmatmul.bf16.gmra.mxu0 %v647
    %v670 = vpop.f32.mrf.mxu0
    %v671 = vadd.f32 0.0, %v670
    %v672 = vpop.f32.mrf.mxu0
    %673 = vdwg.mxu0
    %674 = vmatpush.bf16.msra.mxu0 %v233
    %675 = vmatpush.bf16.msra.mxu0 %v229
    %676 = vmatpush.bf16.msra.mxu0 %v225
    %677 = vmatpush.bf16.msra.mxu0 %v221
    %678 = vmatpush.bf16.msra.mxu0 %v217
    %679 = vmatpush.bf16.msra.mxu0 %v213
    %680 = vmatpush.bf16.msra.mxu0 %v209
    %681 = vmatpush.bf16.msra.mxu0 %v205
    %682 = vmatmul.bf16.gmra.mxu0 %v647
    %v683 = vpop.f32.mrf.mxu0
    %v684 = vadd.f32 0.0, %v683
    %v685 = vpop.f32.mrf.mxu0
    %686 = vdwg.mxu0
    %687 = vmatpush.bf16.msra.mxu0 %v234
    %688 = vmatpush.bf16.msra.mxu0 %v230
    %689 = vmatpush.bf16.msra.mxu0 %v226
    %690 = vmatpush.bf16.msra.mxu0 %v222
    %691 = vmatpush.bf16.msra.mxu0 %v218
    %692 = vmatpush.bf16.msra.mxu0 %v214
    %693 = vmatpush.bf16.msra.mxu0 %v210
    %694 = vmatpush.bf16.msra.mxu0 %v206
    %695 = vmatmul.bf16.gmra.mxu0 %v647
    %v696 = vpop.f32.mrf.mxu0
    %v697 = vadd.f32 0.0, %v696
    %v698 = vpop.f32.mrf.mxu0
    %699 = vdwg.mxu0
    %v700 = vadd.f32 %v643, %v658
    %v701 = vadd.f32 %v644, %v671
    %v702 = vadd.f32 %v645, %v684
    %v703 = vadd.f32 %v646, %v697
    %v704 = vxor.u32 %v700, 2147483648
    %v705 = vxor.u32 %v701, 2147483648
    %v706 = vxor.u32 %v702, 2147483648
    %v707 = vmul.f32 %v704, 1.442695
    %v708 = vpow.pop %v707
    %v709 = vmul.f32 %v705, 1.442695
    %v710 = vpow.pop %v709
    %v711 = vmul.f32 %v706, 1.442695
    %v712 = vpow.pop %v711
    %v713 = vadd.f32 %v708, 1.0
    %v714 = vadd.f32 %v710, 1.0
    %v715 = vadd.f32 %v712, 1.0
    %v716 = vrcp.pop %v713
    %v717 = vmul.f32 %v713, %v716
    %v718 = vsub.f32 1.0, %v717
    %v719 = vmul.f32 %v716, %v718
    %v720 = vadd.f32 %v716, %v719
    %vm721 = vweird.f32 %v713
    %vm722 = vweird.f32 %v716
    %vm723 = vmor %vm721, %vm722
    %v724 = vsel %vm723, %v716, %v720
    %v725 = vand.u32 2147483647, %v713
    %vm726 = vcmp.eq.f32.partialorder %v725, 8.507059e+37
    %v727 = vand.u32 %v713, 2147483648
    %v728 = vor.u32 1.1754944e-38, %v727
    %v729 = vsel %vm726, %v728, %v724
    %v730 = vmul.f32 1.0, %v729
    %v731 = vrcp.pop %v714
    %v732 = vmul.f32 %v714, %v731
    %v733 = vsub.f32 1.0, %v732
    %v734 = vmul.f32 %v731, %v733
    %v735 = vadd.f32 %v731, %v734
    %vm736 = vweird.f32 %v714
    %vm737 = vweird.f32 %v731
    %vm738 = vmor %vm736, %vm737
    %v739 = vsel %vm738, %v731, %v735
    %v740 = vand.u32 2147483647, %v714
    %vm741 = vcmp.eq.f32.partialorder %v740, 8.507059e+37
    %v742 = vand.u32 %v714, 2147483648
    %v743 = vor.u32 1.1754944e-38, %v742
    %v744 = vsel %vm741, %v743, %v739
    %v745 = vmul.f32 1.0, %v744
    %v746 = vrcp.pop %v715
    %v747 = vmul.f32 %v715, %v746
    %v748 = vsub.f32 1.0, %v747
    %v749 = vmul.f32 %v746, %v748
    %v750 = vadd.f32 %v746, %v749
    %vm751 = vweird.f32 %v715
    %vm752 = vweird.f32 %v746
    %vm753 = vmor %vm751, %vm752
    %v754 = vsel %vm753, %v746, %v750
    %v755 = vand.u32 2147483647, %v715
    %vm756 = vcmp.eq.f32.partialorder %v755, 8.507059e+37
    %v757 = vand.u32 %v715, 2147483648
    %v758 = vor.u32 1.1754944e-38, %v757
    %v759 = vsel %vm756, %v758, %v754
    %v760 = vmul.f32 1.0, %v759
    %v761 = vtanh.pop %v703
    %v762 = vmul.f32 %v745, %v637
    %v763 = vmul.f32 %v730, %v761
    %v764 = vadd.f32 %v762, %v763
    %v765 = vtanh.pop %v764
    %v766 = vmul.f32 %v760, %v765
    %s767 = scalar_lea.vmem %s0, 64
    %v768 = vld [vmem:[%s767] sm:$0xff]
    %v769 = vld [vmem:[%s767 + $0x8] sm:$0xff]
    %v770 = vunpack.c.l.bf16 %v768
    %v771 = vunpack.c.h.bf16 %v768
    %v772 = vunpack.c.l.bf16 %v769
    %v773 = vunpack.c.h.bf16 %v769
    %v774 = vpack.c.bf16 %v766, %v766
    %775 = vmatpush.bf16.msra.mxu0 %v231
    %776 = vmatpush.bf16.msra.mxu0 %v227
    %777 = vmatpush.bf16.msra.mxu0 %v223
    %778 = vmatpush.bf16.msra.mxu0 %v219
    %779 = vmatpush.bf16.msra.mxu0 %v215
    %780 = vmatpush.bf16.msra.mxu0 %v211
    %781 = vmatpush.bf16.msra.mxu0 %v207
    %782 = vmatpush.bf16.msra.mxu0 %v203
    %783 = vmatmul.bf16.gmra.mxu0 %v774
    %v784 = vpop.f32.mrf.mxu0
    %v785 = vadd.f32 0.0, %v784
    %v786 = vpop.f32.mrf.mxu0
    %787 = vdwg.mxu0
    %788 = vmatpush.bf16.msra.mxu0 %v232
    %789 = vmatpush.bf16.msra.mxu0 %v228
    %790 = vmatpush.bf16.msra.mxu0 %v224
    %791 = vmatpush.bf16.msra.mxu0 %v220
    %792 = vmatpush.bf16.msra.mxu0 %v216
    %793 = vmatpush.bf16.msra.mxu0 %v212
    %794 = vmatpush.bf16.msra.mxu0 %v208
    %795 = vmatpush.bf16.msra.mxu0 %v204
    %796 = vmatmul.bf16.gmra.mxu0 %v774
    %v797 = vpop.f32.mrf.mxu0
    %v798 = vadd.f32 0.0, %v797
    %v799 = vpop.f32.mrf.mxu0
    %800 = vdwg.mxu0
    %801 = vmatpush.bf16.msra.mxu0 %v233
    %802 = vmatpush.bf16.msra.mxu0 %v229
    %803 = vmatpush.bf16.msra.mxu0 %v225
    %804 = vmatpush.bf16.msra.mxu0 %v221
    %805 = vmatpush.bf16.msra.mxu0 %v217
    %806 = vmatpush.bf16.msra.mxu0 %v213
    %807 = vmatpush.bf16.msra.mxu0 %v209
    %808 = vmatpush.bf16.msra.mxu0 %v205
    %809 = vmatmul.bf16.gmra.mxu0 %v774
    %v810 = vpop.f32.mrf.mxu0
    %v811 = vadd.f32 0.0, %v810
    %v812 = vpop.f32.mrf.mxu0
    %813 = vdwg.mxu0
    %814 = vmatpush.bf16.msra.mxu0 %v234
    %815 = vmatpush.bf16.msra.mxu0 %v230
    %816 = vmatpush.bf16.msra.mxu0 %v226
    %817 = vmatpush.bf16.msra.mxu0 %v222
    %818 = vmatpush.bf16.msra.mxu0 %v218
    %819 = vmatpush.bf16.msra.mxu0 %v214
    %820 = vmatpush.bf16.msra.mxu0 %v210
    %821 = vmatpush.bf16.msra.mxu0 %v206
    %822 = vmatmul.bf16.gmra.mxu0 %v774
    %v823 = vpop.f32.mrf.mxu0
    %v824 = vadd.f32 0.0, %v823
    %v825 = vpop.f32.mrf.mxu0
    %826 = vdwg.mxu0
    %v827 = vadd.f32 %v770, %v785
    %v828 = vadd.f32 %v771, %v798
    %v829 = vadd.f32 %v772, %v811
    %v830 = vadd.f32 %v773, %v824
    %v831 = vxor.u32 %v827, 2147483648
    %v832 = vxor.u32 %v828, 2147483648
    %v833 = vxor.u32 %v829, 2147483648
    %v834 = vmul.f32 %v831, 1.442695
    %v835 = vpow.pop %v834
    %v836 = vmul.f32 %v832, 1.442695
    %v837 = vpow.pop %v836
    %v838 = vmul.f32 %v833, 1.442695
    %v839 = vpow.pop %v838
    %v840 = vadd.f32 %v835, 1.0
    %v841 = vadd.f32 %v837, 1.0
    %v842 = vadd.f32 %v839, 1.0
    %v843 = vrcp.pop %v840
    %v844 = vmul.f32 %v840, %v843
    %v845 = vsub.f32 1.0, %v844
    %v846 = vmul.f32 %v843, %v845
    %v847 = vadd.f32 %v843, %v846
    %vm848 = vweird.f32 %v840
    %vm849 = vweird.f32 %v843
    %vm850 = vmor %vm848, %vm849
    %v851 = vsel %vm850, %v843, %v847
    %v852 = vand.u32 2147483647, %v840
    %vm853 = vcmp.eq.f32.partialorder %v852, 8.507059e+37
    %v854 = vand.u32 %v840, 2147483648
    %v855 = vor.u32 1.1754944e-38, %v854
    %v856 = vsel %vm853, %v855, %v851
    %v857 = vmul.f32 1.0, %v856
    %v858 = vrcp.pop %v841
    %v859 = vmul.f32 %v841, %v858
    %v860 = vsub.f32 1.0, %v859
    %v861 = vmul.f32 %v858, %v860
    %v862 = vadd.f32 %v858, %v861
    %vm863 = vweird.f32 %v841
    %vm864 = vweird.f32 %v858
    %vm865 = vmor %vm863, %vm864
    %v866 = vsel %vm865, %v858, %v862
    %v867 = vand.u32 2147483647, %v841
    %vm868 = vcmp.eq.f32.partialorder %v867, 8.507059e+37
    %v869 = vand.u32 %v841, 2147483648
    %v870 = vor.u32 1.1754944e-38, %v869
    %v871 = vsel %vm868, %v870, %v866
    %v872 = vmul.f32 1.0, %v871
    %v873 = vrcp.pop %v842
    %v874 = vmul.f32 %v842, %v873
    %v875 = vsub.f32 1.0, %v874
    %v876 = vmul.f32 %v873, %v875
    %v877 = vadd.f32 %v873, %v876
    %vm878 = vweird.f32 %v842
    %vm879 = vweird.f32 %v873
    %vm880 = vmor %vm878, %vm879
    %v881 = vsel %vm880, %v873, %v877
    %v882 = vand.u32 2147483647, %v842
    %vm883 = vcmp.eq.f32.partialorder %v882, 8.507059e+37
    %v884 = vand.u32 %v842, 2147483648
    %v885 = vor.u32 1.1754944e-38, %v884
    %v886 = vsel %vm883, %v885, %v881
    %v887 = vmul.f32 1.0, %v886
    %v888 = vtanh.pop %v830
    %v889 = vmul.f32 %v872, %v764
    %v890 = vmul.f32 %v857, %v888
    %v891 = vadd.f32 %v889, %v890
    %v892 = vtanh.pop %v891
    %v893 = vmul.f32 %v887, %v892
    %s894 = scalar_lea.vmem %s0, 80
    %v895 = vld [vmem:[%s894] sm:$0xff]
    %v896 = vld [vmem:[%s894 + $0x8] sm:$0xff]
    %v897 = vunpack.c.l.bf16 %v895
    %v898 = vunpack.c.h.bf16 %v895
    %v899 = vunpack.c.l.bf16 %v896
    %v900 = vunpack.c.h.bf16 %v896
    %v901 = vpack.c.bf16 %v893, %v893
    %902 = vmatpush.bf16.msra.mxu0 %v231
    %903 = vmatpush.bf16.msra.mxu0 %v227
    %904 = vmatpush.bf16.msra.mxu0 %v223
    %905 = vmatpush.bf16.msra.mxu0 %v219
    %906 = vmatpush.bf16.msra.mxu0 %v215
    %907 = vmatpush.bf16.msra.mxu0 %v211
    %908 = vmatpush.bf16.msra.mxu0 %v207
    %909 = vmatpush.bf16.msra.mxu0 %v203
    %910 = vmatmul.bf16.gmra.mxu0 %v901
    %v911 = vpop.f32.mrf.mxu0
    %v912 = vadd.f32 0.0, %v911
    %v913 = vpop.f32.mrf.mxu0
    %914 = vdwg.mxu0
    %915 = vmatpush.bf16.msra.mxu0 %v232
    %916 = vmatpush.bf16.msra.mxu0 %v228
    %917 = vmatpush.bf16.msra.mxu0 %v224
    %918 = vmatpush.bf16.msra.mxu0 %v220
    %919 = vmatpush.bf16.msra.mxu0 %v216
    %920 = vmatpush.bf16.msra.mxu0 %v212
    %921 = vmatpush.bf16.msra.mxu0 %v208
    %922 = vmatpush.bf16.msra.mxu0 %v204
    %923 = vmatmul.bf16.gmra.mxu0 %v901
    %v924 = vpop.f32.mrf.mxu0
    %v925 = vadd.f32 0.0, %v924
    %v926 = vpop.f32.mrf.mxu0
    %927 = vdwg.mxu0
    %928 = vmatpush.bf16.msra.mxu0 %v233
    %929 = vmatpush.bf16.msra.mxu0 %v229
    %930 = vmatpush.bf16.msra.mxu0 %v225
    %931 = vmatpush.bf16.msra.mxu0 %v221
    %932 = vmatpush.bf16.msra.mxu0 %v217
    %933 = vmatpush.bf16.msra.mxu0 %v213
    %934 = vmatpush.bf16.msra.mxu0 %v209
    %935 = vmatpush.bf16.msra.mxu0 %v205
    %936 = vmatmul.bf16.gmra.mxu0 %v901
    %v937 = vpop.f32.mrf.mxu0
    %v938 = vadd.f32 0.0, %v937
    %v939 = vpop.f32.mrf.mxu0
    %940 = vdwg.mxu0
    %941 = vmatpush.bf16.msra.mxu0 %v234
    %942 = vmatpush.bf16.msra.mxu0 %v230
    %943 = vmatpush.bf16.msra.mxu0 %v226
    %944 = vmatpush.bf16.msra.mxu0 %v222
    %945 = vmatpush.bf16.msra.mxu0 %v218
    %946 = vmatpush.bf16.msra.mxu0 %v214
    %947 = vmatpush.bf16.msra.mxu0 %v210
    %948 = vmatpush.bf16.msra.mxu0 %v206
    %949 = vmatmul.bf16.gmra.mxu0 %v901
    %v950 = vpop.f32.mrf.mxu0
    %v951 = vadd.f32 0.0, %v950
    %v952 = vpop.f32.mrf.mxu0
    %953 = vdwg.mxu0
    %v954 = vadd.f32 %v897, %v912
    %v955 = vadd.f32 %v898, %v925
    %v956 = vadd.f32 %v899, %v938
    %v957 = vadd.f32 %v900, %v951
    %v958 = vxor.u32 %v954, 2147483648
    %v959 = vxor.u32 %v955, 2147483648
    %v960 = vxor.u32 %v956, 2147483648
    %v961 = vmul.f32 %v958, 1.442695
    %v962 = vpow.pop %v961
    %v963 = vmul.f32 %v959, 1.442695
    %v964 = vpow.pop %v963
    %v965 = vmul.f32 %v960, 1.442695
    %v966 = vpow.pop %v965
    %v967 = vadd.f32 %v962, 1.0
    %v968 = vadd.f32 %v964, 1.0
    %v969 = vadd.f32 %v966, 1.0
    %v970 = vrcp.pop %v967
    %v971 = vmul.f32 %v967, %v970
    %v972 = vsub.f32 1.0, %v971
    %v973 = vmul.f32 %v970, %v972
    %v974 = vadd.f32 %v970, %v973
    %vm975 = vweird.f32 %v967
    %vm976 = vweird.f32 %v970
    %vm977 = vmor %vm975, %vm976
    %v978 = vsel %vm977, %v970, %v974
    %v979 = vand.u32 2147483647, %v967
    %vm980 = vcmp.eq.f32.partialorder %v979, 8.507059e+37
    %v981 = vand.u32 %v967, 2147483648
    %v982 = vor.u32 1.1754944e-38, %v981
    %v983 = vsel %vm980, %v982, %v978
    %v984 = vmul.f32 1.0, %v983
    %v985 = vrcp.pop %v968
    %v986 = vmul.f32 %v968, %v985
    %v987 = vsub.f32 1.0, %v986
    %v988 = vmul.f32 %v985, %v987
    %v989 = vadd.f32 %v985, %v988
    %vm990 = vweird.f32 %v968
    %vm991 = vweird.f32 %v985
    %vm992 = vmor %vm990, %vm991
    %v993 = vsel %vm992, %v985, %v989
    %v994 = vand.u32 2147483647, %v968
    %vm995 = vcmp.eq.f32.partialorder %v994, 8.507059e+37
    %v996 = vand.u32 %v968, 2147483648
    %v997 = vor.u32 1.1754944e-38, %v996
    %v998 = vsel %vm995, %v997, %v993
    %v999 = vmul.f32 1.0, %v998
    %v1000 = vrcp.pop %v969
    %v1001 = vmul.f32 %v969, %v1000
    %v1002 = vsub.f32 1.0, %v1001
    %v1003 = vmul.f32 %v1000, %v1002
    %v1004 = vadd.f32 %v1000, %v1003
    %vm1005 = vweird.f32 %v969
    %vm1006 = vweird.f32 %v1000
    %vm1007 = vmor %vm1005, %vm1006
    %v1008 = vsel %vm1007, %v1000, %v1004
    %v1009 = vand.u32 2147483647, %v969
    %vm1010 = vcmp.eq.f32.partialorder %v1009, 8.507059e+37
    %v1011 = vand.u32 %v969, 2147483648
    %v1012 = vor.u32 1.1754944e-38, %v1011
    %v1013 = vsel %vm1010, %v1012, %v1008
    %v1014 = vmul.f32 1.0, %v1013
    %v1015 = vtanh.pop %v957
    %v1016 = vmul.f32 %v999, %v891
    %v1017 = vmul.f32 %v984, %v1015
    %v1018 = vadd.f32 %v1016, %v1017
    %v1019 = vtanh.pop %v1018
    %v1020 = vmul.f32 %v1014, %v1019
    %s1021 = scalar_lea.vmem %s0, 96
    %v1022 = vld [vmem:[%s1021] sm:$0xff]
    %v1023 = vld [vmem:[%s1021 + $0x8] sm:$0xff]
    %v1024 = vunpack.c.l.bf16 %v1022
    %v1025 = vunpack.c.h.bf16 %v1022
    %v1026 = vunpack.c.l.bf16 %v1023
    %v1027 = vunpack.c.h.bf16 %v1023
    %v1028 = vpack.c.bf16 %v1020, %v1020
    %1029 = vmatpush.bf16.msra.mxu0 %v231
    %1030 = vmatpush.bf16.msra.mxu0 %v227
    %1031 = vmatpush.bf16.msra.mxu0 %v223
    %1032 = vmatpush.bf16.msra.mxu0 %v219
    %1033 = vmatpush.bf16.msra.mxu0 %v215
    %1034 = vmatpush.bf16.msra.mxu0 %v211
    %1035 = vmatpush.bf16.msra.mxu0 %v207
    %1036 = vmatpush.bf16.msra.mxu0 %v203
    %1037 = vmatmul.bf16.gmra.mxu0 %v1028
    %v1038 = vpop.f32.mrf.mxu0
    %v1039 = vadd.f32 0.0, %v1038
    %v1040 = vpop.f32.mrf.mxu0
    %1041 = vdwg.mxu0
    %1042 = vmatpush.bf16.msra.mxu0 %v232
    %1043 = vmatpush.bf16.msra.mxu0 %v228
    %1044 = vmatpush.bf16.msra.mxu0 %v224
    %1045 = vmatpush.bf16.msra.mxu0 %v220
    %1046 = vmatpush.bf16.msra.mxu0 %v216
    %1047 = vmatpush.bf16.msra.mxu0 %v212
    %1048 = vmatpush.bf16.msra.mxu0 %v208
    %1049 = vmatpush.bf16.msra.mxu0 %v204
    %1050 = vmatmul.bf16.gmra.mxu0 %v1028
    %v1051 = vpop.f32.mrf.mxu0
    %v1052 = vadd.f32 0.0, %v1051
    %v1053 = vpop.f32.mrf.mxu0
    %1054 = vdwg.mxu0
    %1055 = vmatpush.bf16.msra.mxu0 %v233
    %1056 = vmatpush.bf16.msra.mxu0 %v229
    %1057 = vmatpush.bf16.msra.mxu0 %v225
    %1058 = vmatpush.bf16.msra.mxu0 %v221
    %1059 = vmatpush.bf16.msra.mxu0 %v217
    %1060 = vmatpush.bf16.msra.mxu0 %v213
    %1061 = vmatpush.bf16.msra.mxu0 %v209
    %1062 = vmatpush.bf16.msra.mxu0 %v205
    %1063 = vmatmul.bf16.gmra.mxu0 %v1028
    %v1064 = vpop.f32.mrf.mxu0
    %v1065 = vadd.f32 0.0, %v1064
    %v1066 = vpop.f32.mrf.mxu0
    %1067 = vdwg.mxu0
    %1068 = vmatpush.bf16.msra.mxu0 %v234
    %1069 = vmatpush.bf16.msra.mxu0 %v230
    %1070 = vmatpush.bf16.msra.mxu0 %v226
    %1071 = vmatpush.bf16.msra.mxu0 %v222
    %1072 = vmatpush.bf16.msra.mxu0 %v218
    %1073 = vmatpush.bf16.msra.mxu0 %v214
    %1074 = vmatpush.bf16.msra.mxu0 %v210
    %1075 = vmatpush.bf16.msra.mxu0 %v206
    %1076 = vmatmul.bf16.gmra.mxu0 %v1028
    %v1077 = vpop.f32.mrf.mxu0
    %v1078 = vadd.f32 0.0, %v1077
    %v1079 = vpop.f32.mrf.mxu0
    %1080 = vdwg.mxu0
    %v1081 = vadd.f32 %v1024, %v1039
    %v1082 = vadd.f32 %v1025, %v1052
    %v1083 = vadd.f32 %v1026, %v1065
    %v1084 = vadd.f32 %v1027, %v1078
    %v1085 = vxor.u32 %v1081, 2147483648
    %v1086 = vxor.u32 %v1082, 2147483648
    %v1087 = vxor.u32 %v1083, 2147483648
    %v1088 = vmul.f32 %v1085, 1.442695
    %v1089 = vpow.pop %v1088
    %v1090 = vmul.f32 %v1086, 1.442695
    %v1091 = vpow.pop %v1090
    %v1092 = vmul.f32 %v1087, 1.442695
    %v1093 = vpow.pop %v1092
    %v1094 = vadd.f32 %v1089, 1.0
    %v1095 = vadd.f32 %v1091, 1.0
    %v1096 = vadd.f32 %v1093, 1.0
    %v1097 = vrcp.pop %v1094
    %v1098 = vmul.f32 %v1094, %v1097
    %v1099 = vsub.f32 1.0, %v1098
    %v1100 = vmul.f32 %v1097, %v1099
    %v1101 = vadd.f32 %v1097, %v1100
    %vm1102 = vweird.f32 %v1094
    %vm1103 = vweird.f32 %v1097
    %vm1104 = vmor %vm1102, %vm1103
    %v1105 = vsel %vm1104, %v1097, %v1101
    %v1106 = vand.u32 2147483647, %v1094
    %vm1107 = vcmp.eq.f32.partialorder %v1106, 8.507059e+37
    %v1108 = vand.u32 %v1094, 2147483648
    %v1109 = vor.u32 1.1754944e-38, %v1108
    %v1110 = vsel %vm1107, %v1109, %v1105
    %v1111 = vmul.f32 1.0, %v1110
    %v1112 = vrcp.pop %v1095
    %v1113 = vmul.f32 %v1095, %v1112
    %v1114 = vsub.f32 1.0, %v1113
    %v1115 = vmul.f32 %v1112, %v1114
    %v1116 = vadd.f32 %v1112, %v1115
    %vm1117 = vweird.f32 %v1095
    %vm1118 = vweird.f32 %v1112
    %vm1119 = vmor %vm1117, %vm1118
    %v1120 = vsel %vm1119, %v1112, %v1116
    %v1121 = vand.u32 2147483647, %v1095
    %vm1122 = vcmp.eq.f32.partialorder %v1121, 8.507059e+37
    %v1123 = vand.u32 %v1095, 2147483648
    %v1124 = vor.u32 1.1754944e-38, %v1123
    %v1125 = vsel %vm1122, %v1124, %v1120
    %v1126 = vmul.f32 1.0, %v1125
    %v1127 = vrcp.pop %v1096
    %v1128 = vmul.f32 %v1096, %v1127
    %v1129 = vsub.f32 1.0, %v1128
    %v1130 = vmul.f32 %v1127, %v1129
    %v1131 = vadd.f32 %v1127, %v1130
    %vm1132 = vweird.f32 %v1096
    %vm1133 = vweird.f32 %v1127
    %vm1134 = vmor %vm1132, %vm1133
    %v1135 = vsel %vm1134, %v1127, %v1131
    %v1136 = vand.u32 2147483647, %v1096
    %vm1137 = vcmp.eq.f32.partialorder %v1136, 8.507059e+37
    %v1138 = vand.u32 %v1096, 2147483648
    %v1139 = vor.u32 1.1754944e-38, %v1138
    %v1140 = vsel %vm1137, %v1139, %v1135
    %v1141 = vmul.f32 1.0, %v1140
    %v1142 = vtanh.pop %v1084
    %v1143 = vmul.f32 %v1126, %v1018
    %v1144 = vmul.f32 %v1111, %v1142
    %v1145 = vadd.f32 %v1143, %v1144
    %v1146 = vtanh.pop %v1145
    %v1147 = vmul.f32 %v1141, %v1146
    %s1148 = scalar_lea.vmem %s0, 112
    %v1149 = vld [vmem:[%s1148] sm:$0xff]
    %v1150 = vld [vmem:[%s1148 + $0x8] sm:$0xff]
    %v1151 = vunpack.c.l.bf16 %v1149
    %v1152 = vunpack.c.h.bf16 %v1149
    %v1153 = vunpack.c.l.bf16 %v1150
    %v1154 = vunpack.c.h.bf16 %v1150
    %v1155 = vpack.c.bf16 %v1147, %v1147
    %1156 = vmatpush.bf16.msra.mxu0 %v231
    %1157 = vmatpush.bf16.msra.mxu0 %v227
    %1158 = vmatpush.bf16.msra.mxu0 %v223
    %1159 = vmatpush.bf16.msra.mxu0 %v219
    %1160 = vmatpush.bf16.msra.mxu0 %v215
    %1161 = vmatpush.bf16.msra.mxu0 %v211
    %1162 = vmatpush.bf16.msra.mxu0 %v207
    %1163 = vmatpush.bf16.msra.mxu0 %v203
    %1164 = vmatmul.bf16.gmra.mxu0 %v1155
    %v1165 = vpop.f32.mrf.mxu0
    %v1166 = vadd.f32 0.0, %v1165
    %v1167 = vpop.f32.mrf.mxu0
    %1168 = vdwg.mxu0
    %1169 = vmatpush.bf16.msra.mxu0 %v232
    %1170 = vmatpush.bf16.msra.mxu0 %v228
    %1171 = vmatpush.bf16.msra.mxu0 %v224
    %1172 = vmatpush.bf16.msra.mxu0 %v220
    %1173 = vmatpush.bf16.msra.mxu0 %v216
    %1174 = vmatpush.bf16.msra.mxu0 %v212
    %1175 = vmatpush.bf16.msra.mxu0 %v208
    %1176 = vmatpush.bf16.msra.mxu0 %v204
    %1177 = vmatmul.bf16.gmra.mxu0 %v1155
    %v1178 = vpop.f32.mrf.mxu0
    %v1179 = vadd.f32 0.0, %v1178
    %v1180 = vpop.f32.mrf.mxu0
    %1181 = vdwg.mxu0
    %1182 = vmatpush.bf16.msra.mxu0 %v233
    %1183 = vmatpush.bf16.msra.mxu0 %v229
    %1184 = vmatpush.bf16.msra.mxu0 %v225
    %1185 = vmatpush.bf16.msra.mxu0 %v221
    %1186 = vmatpush.bf16.msra.mxu0 %v217
    %1187 = vmatpush.bf16.msra.mxu0 %v213
    %1188 = vmatpush.bf16.msra.mxu0 %v209
    %1189 = vmatpush.bf16.msra.mxu0 %v205
    %1190 = vmatmul.bf16.gmra.mxu0 %v1155
    %v1191 = vpop.f32.mrf.mxu0
    %v1192 = vadd.f32 0.0, %v1191
    %v1193 = vpop.f32.mrf.mxu0
    %1194 = vdwg.mxu0
    %1195 = vmatpush.bf16.msra.mxu0 %v234
    %1196 = vmatpush.bf16.msra.mxu0 %v230
    %1197 = vmatpush.bf16.msra.mxu0 %v226
    %1198 = vmatpush.bf16.msra.mxu0 %v222
    %1199 = vmatpush.bf16.msra.mxu0 %v218
    %1200 = vmatpush.bf16.msra.mxu0 %v214
    %1201 = vmatpush.bf16.msra.mxu0 %v210
    %1202 = vmatpush.bf16.msra.mxu0 %v206
    %1203 = vmatmul.bf16.gmra.mxu0 %v1155
    %v1204 = vpop.f32.mrf.mxu0
    %v1205 = vadd.f32 0.0, %v1204
    %v1206 = vpop.f32.mrf.mxu0
    %1207 = vdwg.mxu0
    %v1208 = vadd.f32 %v1151, %v1166
    %v1209 = vadd.f32 %v1152, %v1179
    %v1210 = vadd.f32 %v1153, %v1192
    %v1211 = vadd.f32 %v1154, %v1205
    %v1212 = vxor.u32 %v1208, 2147483648
    %v1213 = vxor.u32 %v1209, 2147483648
    %v1214 = vxor.u32 %v1210, 2147483648
    %v1215 = vmul.f32 %v1212, 1.442695
    %v1216 = vpow.pop %v1215
    %v1217 = vmul.f32 %v1213, 1.442695
    %v1218 = vpow.pop %v1217
    %v1219 = vmul.f32 %v1214, 1.442695
    %v1220 = vpow.pop %v1219
    %v1221 = vadd.f32 %v1216, 1.0
    %v1222 = vadd.f32 %v1218, 1.0
    %v1223 = vadd.f32 %v1220, 1.0
    %v1224 = vrcp.pop %v1221
    %v1225 = vmul.f32 %v1221, %v1224
    %v1226 = vsub.f32 1.0, %v1225
    %v1227 = vmul.f32 %v1224, %v1226
    %v1228 = vadd.f32 %v1224, %v1227
    %vm1229 = vweird.f32 %v1221
    %vm1230 = vweird.f32 %v1224
    %vm1231 = vmor %vm1229, %vm1230
    %v1232 = vsel %vm1231, %v1224, %v1228
    %v1233 = vand.u32 2147483647, %v1221
    %vm1234 = vcmp.eq.f32.partialorder %v1233, 8.507059e+37
    %v1235 = vand.u32 %v1221, 2147483648
    %v1236 = vor.u32 1.1754944e-38, %v1235
    %v1237 = vsel %vm1234, %v1236, %v1232
    %v1238 = vmul.f32 1.0, %v1237
    %v1239 = vrcp.pop %v1222
    %v1240 = vmul.f32 %v1222, %v1239
    %v1241 = vsub.f32 1.0, %v1240
    %v1242 = vmul.f32 %v1239, %v1241
    %v1243 = vadd.f32 %v1239, %v1242
    %vm1244 = vweird.f32 %v1222
    %vm1245 = vweird.f32 %v1239
    %vm1246 = vmor %vm1244, %vm1245
    %v1247 = vsel %vm1246, %v1239, %v1243
    %v1248 = vand.u32 2147483647, %v1222
    %vm1249 = vcmp.eq.f32.partialorder %v1248, 8.507059e+37
    %v1250 = vand.u32 %v1222, 2147483648
    %v1251 = vor.u32 1.1754944e-38, %v1250
    %v1252 = vsel %vm1249, %v1251, %v1247
    %v1253 = vmul.f32 1.0, %v1252
    %v1254 = vrcp.pop %v1223
    %v1255 = vmul.f32 %v1223, %v1254
    %v1256 = vsub.f32 1.0, %v1255
    %v1257 = vmul.f32 %v1254, %v1256
    %v1258 = vadd.f32 %v1254, %v1257
    %vm1259 = vweird.f32 %v1223
    %vm1260 = vweird.f32 %v1254
    %vm1261 = vmor %vm1259, %vm1260
    %v1262 = vsel %vm1261, %v1254, %v1258
    %v1263 = vand.u32 2147483647, %v1223
    %vm1264 = vcmp.eq.f32.partialorder %v1263, 8.507059e+37
    %v1265 = vand.u32 %v1223, 2147483648
    %v1266 = vor.u32 1.1754944e-38, %v1265
    %v1267 = vsel %vm1264, %v1266, %v1262
    %v1268 = vmul.f32 1.0, %v1267
    %v1269 = vtanh.pop %v1211
    %v1270 = vmul.f32 %v1253, %v1145
    %v1271 = vmul.f32 %v1238, %v1269
    %v1272 = vadd.f32 %v1270, %v1271
    %v1273 = vtanh.pop %v1272
    %v1274 = vmul.f32 %v1268, %v1273
    %1275 = vst [vmem:[#allocation2] sm:$0xff] %v1274
    %1276 = vst [vmem:[#allocation3] sm:$0xff] %v1272
    // Predicated region
    $region38: #{lstm_forward.7} parent=1 // pred_check
      %p1277 = pneg %p58
    $region39: #{lstm_forward.7} parent=1 // pred_check_branch
      %1279 = sbr.rel (%p1277) target = $region41
    $region40: #{lstm_forward.7} parent=1 // pred_region
      %1280 = vst [vmem:[%s6] sm:$0xff] %v1274
      %1281 = vst [vmem:[%s7] sm:$0xff] %v1272
      %v1282 = vld [vmem:[#allocation6] sm:$0xff]
      %v1283 = vld [vmem:[#allocation6 + $0x8] sm:$0xff]
      %v1284 = vld [vmem:[#allocation6 + $0x10] sm:$0xff]
      %v1285 = vld [vmem:[#allocation6 + $0x18] sm:$0xff]
      %v1286 = vld [vmem:[#allocation6 + $0x20] sm:$0xff]
      %v1287 = vld [vmem:[#allocation6 + $0x28] sm:$0xff]
      %v1288 = vld [vmem:[#allocation6 + $0x30] sm:$0xff]
      %v1289 = vld [vmem:[#allocation6 + $0x38] sm:$0xff]
      %v1290 = vld [vmem:[#allocation6 + $0x40] sm:$0xff]
      %v1291 = vld [vmem:[#allocation6 + $0x48] sm:$0xff]
      %v1292 = vld [vmem:[#allocation6 + $0x50] sm:$0xff]
      %v1293 = vld [vmem:[#allocation6 + $0x58] sm:$0xff]
      %v1294 = vld [vmem:[#allocation6 + $0x60] sm:$0xff]
      %v1295 = vld [vmem:[#allocation6 + $0x68] sm:$0xff]
      %v1296 = vld [vmem:[#allocation6 + $0x70] sm:$0xff]
      %v1297 = vld [vmem:[#allocation6 + $0x78] sm:$0xff]
      %v1298 = vld [vmem:[%s5] sm:$0x1]
      %v1300 = vperm.slane %v1298, 0
      %1302 = vmatpush.msra.mxu0 %v1297
      %1303 = vmatpush.msra.mxu0 %v1296
      %1304 = vmatpush.msra.mxu0 %v1295
      %1305 = vmatpush.msra.mxu0 %v1294
      %1306 = vmatpush.msra.mxu0 %v1293
      %1307 = vmatpush.msra.mxu0 %v1292
      %1308 = vmatpush.msra.mxu0 %v1291
      %1309 = vmatpush.msra.mxu0 %v1290
      %1310 = vmatpush.msra.mxu0 %v1289
      %1311 = vmatpush.msra.mxu0 %v1288
      %1312 = vmatpush.msra.mxu0 %v1287
      %1313 = vmatpush.msra.mxu0 %v1286
      %1314 = vmatpush.msra.mxu0 %v1285
      %1315 = vmatpush.msra.mxu0 %v1284
      %1316 = vmatpush.msra.mxu0 %v1283
      %1317 = vmatpush.msra.mxu0 %v1282
      %1318 = vmatmul.f32.gmra.mxu0 %v1274
      %v1319 = vpop.f32.mrf.mxu0
      %v1320 = vadd.f32 %v1300, %v1319
      %1321 = vdwg.mxu0
      %1322 = vst [vmem:[%s8] sm:$0xff] %v1320
    $region41: #{lstm_forward.7} parent=1 // pred_fallthru
      _
    // Predicated region
    $region42: #{lstm_forward.7} parent=1 // pred_check
      _
    $region43: #{lstm_forward.7} parent=1 // pred_check_branch
      %1324 = sbr.rel (0) target = $region45
    $region44: #{lstm_forward.7} parent=1 // pred_region
      _
    $region45: #{lstm_forward.7} parent=1 // pred_fallthru
      _
    // Predicated region
    $region46: #{lstm_forward.7} parent=1 // pred_check
      _
    $region47: #{lstm_forward.7} parent=1 // pred_check_branch
      %1326 = sbr.rel (0) target = $region49
    $region48: #{lstm_forward.7} parent=1 // pred_region
      _
    $region49: #{lstm_forward.7} parent=1 // pred_fallthru
      _
    // Predicated region
    $region50: #{lstm_forward.7} parent=1 // pred_check
      _
    $region51: #{lstm_forward.7} parent=1 // pred_check_branch
      %1328 = sbr.rel (0) target = $region53
    $region52: #{lstm_forward.7} parent=1 // pred_region
      _
    $region53: #{lstm_forward.7} parent=1 // pred_fallthru
      _
    // Predicated region
    $region54: #{lstm_forward.7} parent=1 // pred_check
      _
    $region55: #{lstm_forward.7} parent=1 // pred_check_branch
      %1330 = sbr.rel (0) target = $region57
    $region56: #{lstm_forward.7} parent=1 // pred_region
      _
    $region57: #{lstm_forward.7} parent=1 // pred_fallthru
      _
    // Predicated region
    $region58: #{lstm_forward.7} parent=1 // pred_check
      _
    $region59: #{lstm_forward.7} parent=1 // pred_check_branch
      %1332 = sbr.rel (0) target = $region61
    $region60: #{lstm_forward.7} parent=1 // pred_region
      _
    $region61: #{lstm_forward.7} parent=1 // pred_fallthru
      _
    // Predicated region
    $region62: #{lstm_forward.7} parent=1 // pred_check
      _
    $region63: #{lstm_forward.7} parent=1 // pred_check_branch
      %1334 = sbr.rel (0) target = $region65
    $region64: #{lstm_forward.7} parent=1 // pred_region
      _
    $region65: #{lstm_forward.7} parent=1 // pred_fallthru
      _
    %1335 = vsyncpa [#allocation5], 1
    %1336 = vsyncpa [#allocation7], 1

// kernel: lstm_forward.5
$region0: #{lstm_forward.5}
  #allocation0 [shape = 'u32[]', space=smem, size = 0x4, offset = 0x4, fixed_abs, tag = 'smem constant byte address 0x4 - core index']
  #allocation1 [shape = 'u32[72,128]{1,0:T(1,128)}', space=vmem, size = 0x9000, scoped, tag = 'internal scratch']
  #allocation2 [shape = 'f32[8,128]{1,0:T(8,128)}', space=vmem, size = 0x1000, scoped, tag = 'scratch operand']
  #allocation3 [shape = 'f32[8,128]{1,0:T(8,128)}', space=vmem, size = 0x1000, scoped, tag = 'scratch operand']
  %s0 = inlined_call_operand.vmem [shape: bf16[8,8,512], index: 0, kind: input, shape index: {}]
  %s1 = inlined_call_operand.vmem [shape: f32[8,128], index: 1, kind: input, shape index: {}]
  %s2 = inlined_call_operand.vmem [shape: f32[8,128], index: 2, kind: input, shape index: {}]
  %s3 = inlined_call_operand.hbm [shape: bf16[128,512], index: 3, kind: input, shape index: {}]
  %s4 = inlined_call_operand.vmem [shape: bf16[8,8,128], index: 4, kind: output, shape index: {0}]
  %s5 = inlined_call_operand.vmem [shape: f32[8,128], index: 5, kind: output, shape index: {1}]
  %s6 = inlined_call_operand.vmem [shape: f32[8,128], index: 6, kind: output, shape index: {2}]
  %7 = xla_tuple %s4, %s5, %s6
  %s8 = sld [smem:[#allocation0]]
  $region54: #{lstm_forward.5} parent=0
    _
  %s10 = ssub.s32 1, %s8
  %s11 = scalar_select 0, %s10, %s8
  $region1: #{lstm_forward.5} parent=0
    #allocation4 [shape = 'u8[131072]{0}', space=vmem, size = 0x20000, scoped, tag = 'input window, operand 3, single buffered']
    #allocation5 [shape = 's32[1]{0}', space=sflag, size = 0x4, scoped, tag = 'scoped memory for lstm_forward.5']
    %12 = vsyncpa [#allocation5], 0
    // Predicated region
    $region2: #{lstm_forward.5} parent=1 // pred_check
      _
    $region3: #{lstm_forward.5} parent=1 // pred_check_branch
      %14 = sbr.rel (0) target = $region5
    $region4: #{lstm_forward.5} parent=1 // pred_region
      _
    $region5: #{lstm_forward.5} parent=1 // pred_fallthru
      _
    // Predicated region
    $region6: #{lstm_forward.5} parent=1 // pred_check
      _
    $region7: #{lstm_forward.5} parent=1 // pred_check_branch
      %16 = sbr.rel (0) target = $region9
    $region8: #{lstm_forward.5} parent=1 // pred_region
      _
    $region9: #{lstm_forward.5} parent=1 // pred_fallthru
      _
    // Predicated region
    $region10: #{lstm_forward.5} parent=1 // pred_check
      _
    $region11: #{lstm_forward.5} parent=1 // pred_check_branch
      %18 = sbr.rel (0) target = $region13
    $region12: #{lstm_forward.5} parent=1 // pred_region
      _
    $region13: #{lstm_forward.5} parent=1 // pred_fallthru
      _
    // Predicated region
    $region14: #{lstm_forward.5} parent=1 // pred_check
      _
    $region15: #{lstm_forward.5} parent=1 // pred_check_branch
      %20 = sbr.rel (0) target = $region17
    $region16: #{lstm_forward.5} parent=1 // pred_region
      %22 = vsyncadd [#allocation5], 0
      %s23 = sshll.u32 %s3, 4
      %s24 = int_to_ptr.hbm [resolvable:$true] %s23
      %s25 = sshll.u32 [#allocation4], 4
      %s26 = int_to_ptr.vmem [resolvable:$true] %s25
      %31 = dma.hbm_to_vmem [thread:$0]  %s24, 4096, %s26, [#allocation5], 256, 256, 16
    $region17: #{lstm_forward.5} parent=1 // pred_fallthru
      _
    // Predicated region
    $region18: #{lstm_forward.5} parent=1 // pred_check
      _
    $region19: #{lstm_forward.5} parent=1 // pred_check_branch
      %33 = sbr.rel (0) target = $region21
    $region20: #{lstm_forward.5} parent=1 // pred_region
      %35 = dma.done [#allocation5], 4096
    $region21: #{lstm_forward.5} parent=1 // pred_fallthru
      _
    %p36 = scmp.eq.s32.totalorder 0, 0
    // Predicated region
    $region22: #{lstm_forward.5} parent=1 // pred_check
      %p37 = pneg %p36
    $region23: #{lstm_forward.5} parent=1 // pred_check_branch
      %39 = sbr.rel (%p37) target = $region25
    $region24: #{lstm_forward.5} parent=1 // pred_region
      %v40 = vld [vmem:[%s1] sm:$0xff]
      %41 = vst [vmem:[#allocation2] sm:$0xff] %v40
      %v42 = vld [vmem:[%s2] sm:$0xff]
      %43 = vst [vmem:[#allocation3] sm:$0xff] %v42
    $region25: #{lstm_forward.5} parent=1 // pred_fallthru
      _
    %v44 = vld [vmem:[#allocation4] sm:$0xff]
    %v45 = vld [vmem:[#allocation4 + $0x8] sm:$0xff]
    %v46 = vld [vmem:[#allocation4 + $0x10] sm:$0xff]
    %v47 = vld [vmem:[#allocation4 + $0x18] sm:$0xff]
    %v48 = vld [vmem:[#allocation4 + $0x20] sm:$0xff]
    %v49 = vld [vmem:[#allocation4 + $0x28] sm:$0xff]
    %v50 = vld [vmem:[#allocation4 + $0x30] sm:$0xff]
    %v51 = vld [vmem:[#allocation4 + $0x38] sm:$0xff]
    %v52 = vld [vmem:[#allocation4 + $0x40] sm:$0xff]
    %v53 = vld [vmem:[#allocation4 + $0x48] sm:$0xff]
    %v54 = vld [vmem:[#allocation4 + $0x50] sm:$0xff]
    %v55 = vld [vmem:[#allocation4 + $0x58] sm:$0xff]
    %v56 = vld [vmem:[#allocation4 + $0x60] sm:$0xff]
    %v57 = vld [vmem:[#allocation4 + $0x68] sm:$0xff]
    %v58 = vld [vmem:[#allocation4 + $0x70] sm:$0xff]
    %v59 = vld [vmem:[#allocation4 + $0x78] sm:$0xff]
    %v60 = vld [vmem:[#allocation4 + $0x80] sm:$0xff]
    %v61 = vld [vmem:[#allocation4 + $0x88] sm:$0xff]
    %v62 = vld [vmem:[#allocation4 + $0x90] sm:$0xff]
    %v63 = vld [vmem:[#allocation4 + $0x98] sm:$0xff]
    %v64 = vld [vmem:[#allocation4 + $0xa0] sm:$0xff]
    %v65 = vld [vmem:[#allocation4 + $0xa8] sm:$0xff]
    %v66 = vld [vmem:[#allocation4 + $0xb0] sm:$0xff]
    %v67 = vld [vmem:[#allocation4 + $0xb8] sm:$0xff]
    %v68 = vld [vmem:[#allocation4 + $0xc0] sm:$0xff]
    %v69 = vld [vmem:[#allocation4 + $0xc8] sm:$0xff]
    %v70 = vld [vmem:[#allocation4 + $0xd0] sm:$0xff]
    %v71 = vld [vmem:[#allocation4 + $0xd8] sm:$0xff]
    %v72 = vld [vmem:[#allocation4 + $0xe0] sm:$0xff]
    %v73 = vld [vmem:[#allocation4 + $0xe8] sm:$0xff]
    %v74 = vld [vmem:[#allocation4 + $0xf0] sm:$0xff]
    %v75 = vld [vmem:[#allocation4 + $0xf8] sm:$0xff]
    %v76 = vld [vmem:[#allocation2] sm:$0xff]
    %v77 = vld [vmem:[#allocation3] sm:$0xff]
    %v78 = vld [vmem:[%s0] sm:$0xff]
    %v79 = vld [vmem:[%s0 + $0x8] sm:$0xff]
    %v80 = vunpack.c.l.bf16 %v78
    %v81 = vunpack.c.h.bf16 %v78
    %v82 = vunpack.c.l.bf16 %v79
    %v83 = vunpack.c.h.bf16 %v79
    %v84 = vpack.c.bf16 %v76, %v76
    %v117 = vunpack.c.l.b16 %v44
    %v118 = vunpack.c.h.b16 %v44
    %v119 = vunpack.c.l.b16 %v45
    %v120 = vunpack.c.h.b16 %v45
    %v121 = vunpack.c.l.b16 %v46
    %v122 = vunpack.c.h.b16 %v46
    %v123 = vunpack.c.l.b16 %v47
    %v124 = vunpack.c.h.b16 %v47
    %v125 = vunpack.c.l.b16 %v48
    %v126 = vunpack.c.h.b16 %v48
    %v127 = vunpack.c.l.b16 %v49
    %v128 = vunpack.c.h.b16 %v49
    %v129 = vunpack.c.l.b16 %v50
    %v130 = vunpack.c.h.b16 %v50
    %v131 = vunpack.c.l.b16 %v51
    %v132 = vunpack.c.h.b16 %v51
    %v133 = vunpack.c.l.b16 %v52
    %v134 = vunpack.c.h.b16 %v52
    %v135 = vunpack.c.l.b16 %v53
    %v136 = vunpack.c.h.b16 %v53
    %v137 = vunpack.c.l.b16 %v54
    %v138 = vunpack.c.h.b16 %v54
    %v139 = vunpack.c.l.b16 %v55
    %v140 = vunpack.c.h.b16 %v55
    %v141 = vunpack.c.l.b16 %v56
    %v142 = vunpack.c.h.b16 %v56
    %v143 = vunpack.c.l.b16 %v57
    %v144 = vunpack.c.h.b16 %v57
    %v145 = vunpack.c.l.b16 %v58
    %v146 = vunpack.c.h.b16 %v58
    %v147 = vunpack.c.l.b16 %v59
    %v148 = vunpack.c.h.b16 %v59
    %v149 = vunpack.c.l.b16 %v60
    %v150 = vunpack.c.h.b16 %v60
    %v151 = vunpack.c.l.b16 %v61
    %v152 = vunpack.c.h.b16 %v61
    %v153 = vunpack.c.l.b16 %v62
    %v154 = vunpack.c.h.b16 %v62
    %v155 = vunpack.c.l.b16 %v63
    %v156 = vunpack.c.h.b16 %v63
    %v157 = vunpack.c.l.b16 %v64
    %v158 = vunpack.c.h.b16 %v64
    %v159 = vunpack.c.l.b16 %v65
    %v160 = vunpack.c.h.b16 %v65
    %v161 = vunpack.c.l.b16 %v66
    %v162 = vunpack.c.h.b16 %v66
    %v163 = vunpack.c.l.b16 %v67
    %v164 = vunpack.c.h.b16 %v67
    %v165 = vunpack.c.l.b16 %v68
    %v166 = vunpack.c.h.b16 %v68
    %v167 = vunpack.c.l.b16 %v69
    %v168 = vunpack.c.h.b16 %v69
    %v169 = vunpack.c.l.b16 %v70
    %v170 = vunpack.c.h.b16 %v70
    %v171 = vunpack.c.l.b16 %v71
    %v172 = vunpack.c.h.b16 %v71
    %v173 = vunpack.c.l.b16 %v72
    %v174 = vunpack.c.h.b16 %v72
    %v175 = vunpack.c.l.b16 %v73
    %v176 = vunpack.c.h.b16 %v73
    %v177 = vunpack.c.l.b16 %v74
    %v178 = vunpack.c.h.b16 %v74
    %v179 = vunpack.c.l.b16 %v75
    %v180 = vunpack.c.h.b16 %v75
    %v181 = vpack.c.b16 %v121, %v117
    %v182 = vpack.c.b16 %v122, %v118
    %v183 = vpack.c.b16 %v123, %v119
    %v184 = vpack.c.b16 %v124, %v120
    %v185 = vpack.c.b16 %v129, %v125
    %v186 = vpack.c.b16 %v130, %v126
    %v187 = vpack.c.b16 %v131, %v127
    %v188 = vpack.c.b16 %v132, %v128
    %v189 = vpack.c.b16 %v137, %v133
    %v190 = vpack.c.b16 %v138, %v134
    %v191 = vpack.c.b16 %v139, %v135
    %v192 = vpack.c.b16 %v140, %v136
    %v193 = vpack.c.b16 %v145, %v141
    %v194 = vpack.c.b16 %v146, %v142
    %v195 = vpack.c.b16 %v147, %v143
    %v196 = vpack.c.b16 %v148, %v144
    %v197 = vpack.c.b16 %v153, %v149
    %v198 = vpack.c.b16 %v154, %v150
    %v199 = vpack.c.b16 %v155, %v151
    %v200 = vpack.c.b16 %v156, %v152
    %v201 = vpack.c.b16 %v161, %v157
    %v202 = vpack.c.b16 %v162, %v158
    %v203 = vpack.c.b16 %v163, %v159
    %v204 = vpack.c.b16 %v164, %v160
    %v205 = vpack.c.b16 %v169, %v165
    %v206 = vpack.c.b16 %v170, %v166
    %v207 = vpack.c.b16 %v171, %v167
    %v208 = vpack.c.b16 %v172, %v168
    %v209 = vpack.c.b16 %v177, %v173
    %v210 = vpack.c.b16 %v178, %v174
    %v211 = vpack.c.b16 %v179, %v175
    %v212 = vpack.c.b16 %v180, %v176
    %245 = vmatpush.bf16.msra.mxu0 %v209
    %246 = vmatpush.bf16.msra.mxu0 %v205
    %247 = vmatpush.bf16.msra.mxu0 %v201
    %248 = vmatpush.bf16.msra.mxu0 %v197
    %249 = vmatpush.bf16.msra.mxu0 %v193
    %250 = vmatpush.bf16.msra.mxu0 %v189
    %251 = vmatpush.bf16.msra.mxu0 %v185
    %252 = vmatpush.bf16.msra.mxu0 %v181
    %253 = vmatmul.bf16.gmra.mxu0 %v84
    %v254 = vpop.f32.mrf.mxu0
    %v255 = vadd.f32 0.0, %v254
    %v256 = vpop.f32.mrf.mxu0
    %257 = vdwg.mxu0
    %258 = vmatpush.bf16.msra.mxu0 %v210
    %259 = vmatpush.bf16.msra.mxu0 %v206
    %260 = vmatpush.bf16.msra.mxu0 %v202
    %261 = vmatpush.bf16.msra.mxu0 %v198
    %262 = vmatpush.bf16.msra.mxu0 %v194
    %263 = vmatpush.bf16.msra.mxu0 %v190
    %264 = vmatpush.bf16.msra.mxu0 %v186
    %265 = vmatpush.bf16.msra.mxu0 %v182
    %266 = vmatmul.bf16.gmra.mxu0 %v84
    %v267 = vpop.f32.mrf.mxu0
    %v268 = vadd.f32 0.0, %v267
    %v269 = vpop.f32.mrf.mxu0
    %270 = vdwg.mxu0
    %271 = vmatpush.bf16.msra.mxu0 %v211
    %272 = vmatpush.bf16.msra.mxu0 %v207
    %273 = vmatpush.bf16.msra.mxu0 %v203
    %274 = vmatpush.bf16.msra.mxu0 %v199
    %275 = vmatpush.bf16.msra.mxu0 %v195
    %276 = vmatpush.bf16.msra.mxu0 %v191
    %277 = vmatpush.bf16.msra.mxu0 %v187
    %278 = vmatpush.bf16.msra.mxu0 %v183
    %279 = vmatmul.bf16.gmra.mxu0 %v84
    %v280 = vpop.f32.mrf.mxu0
    %v281 = vadd.f32 0.0, %v280
    %v282 = vpop.f32.mrf.mxu0
    %283 = vdwg.mxu0
    %284 = vmatpush.bf16.msra.mxu0 %v212
    %285 = vmatpush.bf16.msra.mxu0 %v208
    %286 = vmatpush.bf16.msra.mxu0 %v204
    %287 = vmatpush.bf16.msra.mxu0 %v200
    %288 = vmatpush.bf16.msra.mxu0 %v196
    %289 = vmatpush.bf16.msra.mxu0 %v192
    %290 = vmatpush.bf16.msra.mxu0 %v188
    %291 = vmatpush.bf16.msra.mxu0 %v184
    %292 = vmatmul.bf16.gmra.mxu0 %v84
    %v293 = vpop.f32.mrf.mxu0
    %v294 = vadd.f32 0.0, %v293
    %v295 = vpop.f32.mrf.mxu0
    %296 = vdwg.mxu0
    %v297 = vadd.f32 %v80, %v255
    %v298 = vadd.f32 %v81, %v268
    %v299 = vadd.f32 %v82, %v281
    %v300 = vadd.f32 %v83, %v294
    %v301 = vxor.u32 %v297, 2147483648
    %v302 = vxor.u32 %v298, 2147483648
    %v303 = vxor.u32 %v299, 2147483648
    %v304 = vmul.f32 %v301, 1.442695
    %v305 = vpow.pop %v304
    %v306 = vmul.f32 %v302, 1.442695
    %v307 = vpow.pop %v306
    %v308 = vmul.f32 %v303, 1.442695
    %v309 = vpow.pop %v308
    %v310 = vadd.f32 %v305, 1.0
    %v311 = vadd.f32 %v307, 1.0
    %v312 = vadd.f32 %v309, 1.0
    %v313 = vrcp.pop %v310
    %v314 = vmul.f32 %v310, %v313
    %v315 = vsub.f32 1.0, %v314
    %v316 = vmul.f32 %v313, %v315
    %v317 = vadd.f32 %v313, %v316
    %vm318 = vweird.f32 %v310
    %vm319 = vweird.f32 %v313
    %vm320 = vmor %vm318, %vm319
    %v321 = vsel %vm320, %v313, %v317
    %v322 = vand.u32 2147483647, %v310
    %vm323 = vcmp.eq.f32.partialorder %v322, 8.507059e+37
    %v324 = vand.u32 %v310, 2147483648
    %v325 = vor.u32 1.1754944e-38, %v324
    %v326 = vsel %vm323, %v325, %v321
    %v327 = vmul.f32 1.0, %v326
    %v328 = vrcp.pop %v311
    %v329 = vmul.f32 %v311, %v328
    %v330 = vsub.f32 1.0, %v329
    %v331 = vmul.f32 %v328, %v330
    %v332 = vadd.f32 %v328, %v331
    %vm333 = vweird.f32 %v311
    %vm334 = vweird.f32 %v328
    %vm335 = vmor %vm333, %vm334
    %v336 = vsel %vm335, %v328, %v332
    %v337 = vand.u32 2147483647, %v311
    %vm338 = vcmp.eq.f32.partialorder %v337, 8.507059e+37
    %v339 = vand.u32 %v311, 2147483648
    %v340 = vor.u32 1.1754944e-38, %v339
    %v341 = vsel %vm338, %v340, %v336
    %v342 = vmul.f32 1.0, %v341
    %v343 = vrcp.pop %v312
    %v344 = vmul.f32 %v312, %v343
    %v345 = vsub.f32 1.0, %v344
    %v346 = vmul.f32 %v343, %v345
    %v347 = vadd.f32 %v343, %v346
    %vm348 = vweird.f32 %v312
    %vm349 = vweird.f32 %v343
    %vm350 = vmor %vm348, %vm349
    %v351 = vsel %vm350, %v343, %v347
    %v352 = vand.u32 2147483647, %v312
    %vm353 = vcmp.eq.f32.partialorder %v352, 8.507059e+37
    %v354 = vand.u32 %v312, 2147483648
    %v355 = vor.u32 1.1754944e-38, %v354
    %v356 = vsel %vm353, %v355, %v351
    %v357 = vmul.f32 1.0, %v356
    %v358 = vtanh.pop %v300
    %v359 = vmul.f32 %v342, %v77
    %v360 = vmul.f32 %v327, %v358
    %v361 = vadd.f32 %v359, %v360
    %v362 = vtanh.pop %v361
    %v363 = vmul.f32 %v357, %v362
    %v364 = vpack.c.bf16 %v363, %v363
    %365 = vst [vmem:[%s4] sm:$0xf] %v364
    %s366 = scalar_lea.vmem %s0, 16
    %v367 = vld [vmem:[%s366] sm:$0xff]
    %v368 = vld [vmem:[%s366 + $0x8] sm:$0xff]
    %v369 = vunpack.c.l.bf16 %v367
    %v370 = vunpack.c.h.bf16 %v367
    %v371 = vunpack.c.l.bf16 %v368
    %v372 = vunpack.c.h.bf16 %v368
    %373 = vmatpush.bf16.msra.mxu0 %v209
    %374 = vmatpush.bf16.msra.mxu0 %v205
    %375 = vmatpush.bf16.msra.mxu0 %v201
    %376 = vmatpush.bf16.msra.mxu0 %v197
    %377 = vmatpush.bf16.msra.mxu0 %v193
    %378 = vmatpush.bf16.msra.mxu0 %v189
    %379 = vmatpush.bf16.msra.mxu0 %v185
    %380 = vmatpush.bf16.msra.mxu0 %v181
    %381 = vmatmul.bf16.gmra.mxu0 %v364
    %v382 = vpop.f32.mrf.mxu0
    %v383 = vadd.f32 0.0, %v382
    %v384 = vpop.f32.mrf.mxu0
    %385 = vdwg.mxu0
    %386 = vmatpush.bf16.msra.mxu0 %v210
    %387 = vmatpush.bf16.msra.mxu0 %v206
    %388 = vmatpush.bf16.msra.mxu0 %v202
    %389 = vmatpush.bf16.msra.mxu0 %v198
    %390 = vmatpush.bf16.msra.mxu0 %v194
    %391 = vmatpush.bf16.msra.mxu0 %v190
    %392 = vmatpush.bf16.msra.mxu0 %v186
    %393 = vmatpush.bf16.msra.mxu0 %v182
    %394 = vmatmul.bf16.gmra.mxu0 %v364
    %v395 = vpop.f32.mrf.mxu0
    %v396 = vadd.f32 0.0, %v395
    %v397 = vpop.f32.mrf.mxu0
    %398 = vdwg.mxu0
    %399 = vmatpush.bf16.msra.mxu0 %v211
    %400 = vmatpush.bf16.msra.mxu0 %v207
    %401 = vmatpush.bf16.msra.mxu0 %v203
    %402 = vmatpush.bf16.msra.mxu0 %v199
    %403 = vmatpush.bf16.msra.mxu0 %v195
    %404 = vmatpush.bf16.msra.mxu0 %v191
    %405 = vmatpush.bf16.msra.mxu0 %v187
    %406 = vmatpush.bf16.msra.mxu0 %v183
    %407 = vmatmul.bf16.gmra.mxu0 %v364
    %v408 = vpop.f32.mrf.mxu0
    %v409 = vadd.f32 0.0, %v408
    %v410 = vpop.f32.mrf.mxu0
    %411 = vdwg.mxu0
    %412 = vmatpush.bf16.msra.mxu0 %v212
    %413 = vmatpush.bf16.msra.mxu0 %v208
    %414 = vmatpush.bf16.msra.mxu0 %v204
    %415 = vmatpush.bf16.msra.mxu0 %v200
    %416 = vmatpush.bf16.msra.mxu0 %v196
    %417 = vmatpush.bf16.msra.mxu0 %v192
    %418 = vmatpush.bf16.msra.mxu0 %v188
    %419 = vmatpush.bf16.msra.mxu0 %v184
    %420 = vmatmul.bf16.gmra.mxu0 %v364
    %v421 = vpop.f32.mrf.mxu0
    %v422 = vadd.f32 0.0, %v421
    %v423 = vpop.f32.mrf.mxu0
    %424 = vdwg.mxu0
    %v425 = vadd.f32 %v369, %v383
    %v426 = vadd.f32 %v370, %v396
    %v427 = vadd.f32 %v371, %v409
    %v428 = vadd.f32 %v372, %v422
    %v429 = vxor.u32 %v425, 2147483648
    %v430 = vxor.u32 %v426, 2147483648
    %v431 = vxor.u32 %v427, 2147483648
    %v432 = vmul.f32 %v429, 1.442695
    %v433 = vpow.pop %v432
    %v434 = vmul.f32 %v430, 1.442695
    %v435 = vpow.pop %v434
    %v436 = vmul.f32 %v431, 1.442695
    %v437 = vpow.pop %v436
    %v438 = vadd.f32 %v433, 1.0
    %v439 = vadd.f32 %v435, 1.0
    %v440 = vadd.f32 %v437, 1.0
    %v441 = vrcp.pop %v438
    %v442 = vmul.f32 %v438, %v441
    %v443 = vsub.f32 1.0, %v442
    %v444 = vmul.f32 %v441, %v443
    %v445 = vadd.f32 %v441, %v444
    %vm446 = vweird.f32 %v438
    %vm447 = vweird.f32 %v441
    %vm448 = vmor %vm446, %vm447
    %v449 = vsel %vm448, %v441, %v445
    %v450 = vand.u32 2147483647, %v438
    %vm451 = vcmp.eq.f32.partialorder %v450, 8.507059e+37
    %v452 = vand.u32 %v438, 2147483648
    %v453 = vor.u32 1.1754944e-38, %v452
    %v454 = vsel %vm451, %v453, %v449
    %v455 = vmul.f32 1.0, %v454
    %v456 = vrcp.pop %v439
    %v457 = vmul.f32 %v439, %v456
    %v458 = vsub.f32 1.0, %v457
    %v459 = vmul.f32 %v456, %v458
    %v460 = vadd.f32 %v456, %v459
    %vm461 = vweird.f32 %v439
    %vm462 = vweird.f32 %v456
    %vm463 = vmor %vm461, %vm462
    %v464 = vsel %vm463, %v456, %v460
    %v465 = vand.u32 2147483647, %v439
    %vm466 = vcmp.eq.f32.partialorder %v465, 8.507059e+37
    %v467 = vand.u32 %v439, 2147483648
    %v468 = vor.u32 1.1754944e-38, %v467
    %v469 = vsel %vm466, %v468, %v464
    %v470 = vmul.f32 1.0, %v469
    %v471 = vrcp.pop %v440
    %v472 = vmul.f32 %v440, %v471
    %v473 = vsub.f32 1.0, %v472
    %v474 = vmul.f32 %v471, %v473
    %v475 = vadd.f32 %v471, %v474
    %vm476 = vweird.f32 %v440
    %vm477 = vweird.f32 %v471
    %vm478 = vmor %vm476, %vm477
    %v479 = vsel %vm478, %v471, %v475
    %v480 = vand.u32 2147483647, %v440
    %vm481 = vcmp.eq.f32.partialorder %v480, 8.507059e+37
    %v482 = vand.u32 %v440, 2147483648
    %v483 = vor.u32 1.1754944e-38, %v482
    %v484 = vsel %vm481, %v483, %v479
    %v485 = vmul.f32 1.0, %v484
    %v486 = vtanh.pop %v428
    %v487 = vmul.f32 %v470, %v361
    %v488 = vmul.f32 %v455, %v486
    %v489 = vadd.f32 %v487, %v488
    %v490 = vtanh.pop %v489
    %v491 = vmul.f32 %v485, %v490
    %v492 = vpack.c.bf16 %v491, %v491
    %s493 = scalar_lea.vmem %s4, 4
    %494 = vst [vmem:[%s493] sm:$0xf] %v492
    %s495 = scalar_lea.vmem %s0, 32
    %v496 = vld [vmem:[%s495] sm:$0xff]
    %v497 = vld [vmem:[%s495 + $0x8] sm:$0xff]
    %v498 = vunpack.c.l.bf16 %v496
    %v499 = vunpack.c.h.bf16 %v496
    %v500 = vunpack.c.l.bf16 %v497
    %v501 = vunpack.c.h.bf16 %v497
    %502 = vmatpush.bf16.msra.mxu0 %v209
    %503 = vmatpush.bf16.msra.mxu0 %v205
    %504 = vmatpush.bf16.msra.mxu0 %v201
    %505 = vmatpush.bf16.msra.mxu0 %v197
    %506 = vmatpush.bf16.msra.mxu0 %v193
    %507 = vmatpush.bf16.msra.mxu0 %v189
    %508 = vmatpush.bf16.msra.mxu0 %v185
    %509 = vmatpush.bf16.msra.mxu0 %v181
    %510 = vmatmul.bf16.gmra.mxu0 %v492
    %v511 = vpop.f32.mrf.mxu0
    %v512 = vadd.f32 0.0, %v511
    %v513 = vpop.f32.mrf.mxu0
    %514 = vdwg.mxu0
    %515 = vmatpush.bf16.msra.mxu0 %v210
    %516 = vmatpush.bf16.msra.mxu0 %v206
    %517 = vmatpush.bf16.msra.mxu0 %v202
    %518 = vmatpush.bf16.msra.mxu0 %v198
    %519 = vmatpush.bf16.msra.mxu0 %v194
    %520 = vmatpush.bf16.msra.mxu0 %v190
    %521 = vmatpush.bf16.msra.mxu0 %v186
    %522 = vmatpush.bf16.msra.mxu0 %v182
    %523 = vmatmul.bf16.gmra.mxu0 %v492
    %v524 = vpop.f32.mrf.mxu0
    %v525 = vadd.f32 0.0, %v524
    %v526 = vpop.f32.mrf.mxu0
    %527 = vdwg.mxu0
    %528 = vmatpush.bf16.msra.mxu0 %v211
    %529 = vmatpush.bf16.msra.mxu0 %v207
    %530 = vmatpush.bf16.msra.mxu0 %v203
    %531 = vmatpush.bf16.msra.mxu0 %v199
    %532 = vmatpush.bf16.msra.mxu0 %v195
    %533 = vmatpush.bf16.msra.mxu0 %v191
    %534 = vmatpush.bf16.msra.mxu0 %v187
    %535 = vmatpush.bf16.msra.mxu0 %v183
    %536 = vmatmul.bf16.gmra.mxu0 %v492
    %v537 = vpop.f32.mrf.mxu0
    %v538 = vadd.f32 0.0, %v537
    %v539 = vpop.f32.mrf.mxu0
    %540 = vdwg.mxu0
    %541 = vmatpush.bf16.msra.mxu0 %v212
    %542 = vmatpush.bf16.msra.mxu0 %v208
    %543 = vmatpush.bf16.msra.mxu0 %v204
    %544 = vmatpush.bf16.msra.mxu0 %v200
    %545 = vmatpush.bf16.msra.mxu0 %v196
    %546 = vmatpush.bf16.msra.mxu0 %v192
    %547 = vmatpush.bf16.msra.mxu0 %v188
    %548 = vmatpush.bf16.msra.mxu0 %v184
    %549 = vmatmul.bf16.gmra.mxu0 %v492
    %v550 = vpop.f32.mrf.mxu0
    %v551 = vadd.f32 0.0, %v550
    %v552 = vpop.f32.mrf.mxu0
    %553 = vdwg.mxu0
    %v554 = vadd.f32 %v498, %v512
    %v555 = vadd.f32 %v499, %v525
    %v556 = vadd.f32 %v500, %v538
    %v557 = vadd.f32 %v501, %v551
    %v558 = vxor.u32 %v554, 2147483648
    %v559 = vxor.u32 %v555, 2147483648
    %v560 = vxor.u32 %v556, 2147483648
    %v561 = vmul.f32 %v558, 1.442695
    %v562 = vpow.pop %v561
    %v563 = vmul.f32 %v559, 1.442695
    %v564 = vpow.pop %v563
    %v565 = vmul.f32 %v560, 1.442695
    %v566 = vpow.pop %v565
    %v567 = vadd.f32 %v562, 1.0
    %v568 = vadd.f32 %v564, 1.0
    %v569 = vadd.f32 %v566, 1.0
    %v570 = vrcp.pop %v567
    %v571 = vmul.f32 %v567, %v570
    %v572 = vsub.f32 1.0, %v571
    %v573 = vmul.f32 %v570, %v572
    %v574 = vadd.f32 %v570, %v573
    %vm575 = vweird.f32 %v567
    %vm576 = vweird.f32 %v570
    %vm577 = vmor %vm575, %vm576
    %v578 = vsel %vm577, %v570, %v574
    %v579 = vand.u32 2147483647, %v567
    %vm580 = vcmp.eq.f32.partialorder %v579, 8.507059e+37
    %v581 = vand.u32 %v567, 2147483648
    %v582 = vor.u32 1.1754944e-38, %v581
    %v583 = vsel %vm580, %v582, %v578
    %v584 = vmul.f32 1.0, %v583
    %v585 = vrcp.pop %v568
    %v586 = vmul.f32 %v568, %v585
    %v587 = vsub.f32 1.0, %v586
    %v588 = vmul.f32 %v585, %v587
    %v589 = vadd.f32 %v585, %v588
    %vm590 = vweird.f32 %v568
    %vm591 = vweird.f32 %v585
    %vm592 = vmor %vm590, %vm591
    %v593 = vsel %vm592, %v585, %v589
    %v594 = vand.u32 2147483647, %v568
    %vm595 = vcmp.eq.f32.partialorder %v594, 8.507059e+37
    %v596 = vand.u32 %v568, 2147483648
    %v597 = vor.u32 1.1754944e-38, %v596
    %v598 = vsel %vm595, %v597, %v593
    %v599 = vmul.f32 1.0, %v598
    %v600 = vrcp.pop %v569
    %v601 = vmul.f32 %v569, %v600
    %v602 = vsub.f32 1.0, %v601
    %v603 = vmul.f32 %v600, %v602
    %v604 = vadd.f32 %v600, %v603
    %vm605 = vweird.f32 %v569
    %vm606 = vweird.f32 %v600
    %vm607 = vmor %vm605, %vm606
    %v608 = vsel %vm607, %v600, %v604
    %v609 = vand.u32 2147483647, %v569
    %vm610 = vcmp.eq.f32.partialorder %v609, 8.507059e+37
    %v611 = vand.u32 %v569, 2147483648
    %v612 = vor.u32 1.1754944e-38, %v611
    %v613 = vsel %vm610, %v612, %v608
    %v614 = vmul.f32 1.0, %v613
    %v615 = vtanh.pop %v557
    %v616 = vmul.f32 %v599, %v489
    %v617 = vmul.f32 %v584, %v615
    %v618 = vadd.f32 %v616, %v617
    %v619 = vtanh.pop %v618
    %v620 = vmul.f32 %v614, %v619
    %v621 = vpack.c.bf16 %v620, %v620
    %s622 = scalar_lea.vmem %s4, 8
    %623 = vst [vmem:[%s622] sm:$0xf] %v621
    %s624 = scalar_lea.vmem %s0, 48
    %v625 = vld [vmem:[%s624] sm:$0xff]
    %v626 = vld [vmem:[%s624 + $0x8] sm:$0xff]
    %v627 = vunpack.c.l.bf16 %v625
    %v628 = vunpack.c.h.bf16 %v625
    %v629 = vunpack.c.l.bf16 %v626
    %v630 = vunpack.c.h.bf16 %v626
    %631 = vmatpush.bf16.msra.mxu0 %v209
    %632 = vmatpush.bf16.msra.mxu0 %v205
    %633 = vmatpush.bf16.msra.mxu0 %v201
    %634 = vmatpush.bf16.msra.mxu0 %v197
    %635 = vmatpush.bf16.msra.mxu0 %v193
    %636 = vmatpush.bf16.msra.mxu0 %v189
    %637 = vmatpush.bf16.msra.mxu0 %v185
    %638 = vmatpush.bf16.msra.mxu0 %v181
    %639 = vmatmul.bf16.gmra.mxu0 %v621
    %v640 = vpop.f32.mrf.mxu0
    %v641 = vadd.f32 0.0, %v640
    %v642 = vpop.f32.mrf.mxu0
    %643 = vdwg.mxu0
    %644 = vmatpush.bf16.msra.mxu0 %v210
    %645 = vmatpush.bf16.msra.mxu0 %v206
    %646 = vmatpush.bf16.msra.mxu0 %v202
    %647 = vmatpush.bf16.msra.mxu0 %v198
    %648 = vmatpush.bf16.msra.mxu0 %v194
    %649 = vmatpush.bf16.msra.mxu0 %v190
    %650 = vmatpush.bf16.msra.mxu0 %v186
    %651 = vmatpush.bf16.msra.mxu0 %v182
    %652 = vmatmul.bf16.gmra.mxu0 %v621
    %v653 = vpop.f32.mrf.mxu0
    %v654 = vadd.f32 0.0, %v653
    %v655 = vpop.f32.mrf.mxu0
    %656 = vdwg.mxu0
    %657 = vmatpush.bf16.msra.mxu0 %v211
    %658 = vmatpush.bf16.msra.mxu0 %v207
    %659 = vmatpush.bf16.msra.mxu0 %v203
    %660 = vmatpush.bf16.msra.mxu0 %v199
    %661 = vmatpush.bf16.msra.mxu0 %v195
    %662 = vmatpush.bf16.msra.mxu0 %v191
    %663 = vmatpush.bf16.msra.mxu0 %v187
    %664 = vmatpush.bf16.msra.mxu0 %v183
    %665 = vmatmul.bf16.gmra.mxu0 %v621
    %v666 = vpop.f32.mrf.mxu0
    %v667 = vadd.f32 0.0, %v666
    %v668 = vpop.f32.mrf.mxu0
    %669 = vdwg.mxu0
    %670 = vmatpush.bf16.msra.mxu0 %v212
    %671 = vmatpush.bf16.msra.mxu0 %v208
    %672 = vmatpush.bf16.msra.mxu0 %v204
    %673 = vmatpush.bf16.msra.mxu0 %v200
    %674 = vmatpush.bf16.msra.mxu0 %v196
    %675 = vmatpush.bf16.msra.mxu0 %v192
    %676 = vmatpush.bf16.msra.mxu0 %v188
    %677 = vmatpush.bf16.msra.mxu0 %v184
    %678 = vmatmul.bf16.gmra.mxu0 %v621
    %v679 = vpop.f32.mrf.mxu0
    %v680 = vadd.f32 0.0, %v679
    %v681 = vpop.f32.mrf.mxu0
    %682 = vdwg.mxu0
    %v683 = vadd.f32 %v627, %v641
    %v684 = vadd.f32 %v628, %v654
    %v685 = vadd.f32 %v629, %v667
    %v686 = vadd.f32 %v630, %v680
    %v687 = vxor.u32 %v683, 2147483648
    %v688 = vxor.u32 %v684, 2147483648
    %v689 = vxor.u32 %v685, 2147483648
    %v690 = vmul.f32 %v687, 1.442695
    %v691 = vpow.pop %v690
    %v692 = vmul.f32 %v688, 1.442695
    %v693 = vpow.pop %v692
    %v694 = vmul.f32 %v689, 1.442695
    %v695 = vpow.pop %v694
    %v696 = vadd.f32 %v691, 1.0
    %v697 = vadd.f32 %v693, 1.0
    %v698 = vadd.f32 %v695, 1.0
    %v699 = vrcp.pop %v696
    %v700 = vmul.f32 %v696, %v699
    %v701 = vsub.f32 1.0, %v700
    %v702 = vmul.f32 %v699, %v701
    %v703 = vadd.f32 %v699, %v702
    %vm704 = vweird.f32 %v696
    %vm705 = vweird.f32 %v699
    %vm706 = vmor %vm704, %vm705
    %v707 = vsel %vm706, %v699, %v703
    %v708 = vand.u32 2147483647, %v696
    %vm709 = vcmp.eq.f32.partialorder %v708, 8.507059e+37
    %v710 = vand.u32 %v696, 2147483648
    %v711 = vor.u32 1.1754944e-38, %v710
    %v712 = vsel %vm709, %v711, %v707
    %v713 = vmul.f32 1.0, %v712
    %v714 = vrcp.pop %v697
    %v715 = vmul.f32 %v697, %v714
    %v716 = vsub.f32 1.0, %v715
    %v717 = vmul.f32 %v714, %v716
    %v718 = vadd.f32 %v714, %v717
    %vm719 = vweird.f32 %v697
    %vm720 = vweird.f32 %v714
    %vm721 = vmor %vm719, %vm720
    %v722 = vsel %vm721, %v714, %v718
    %v723 = vand.u32 2147483647, %v697
    %vm724 = vcmp.eq.f32.partialorder %v723, 8.507059e+37
    %v725 = vand.u32 %v697, 2147483648
    %v726 = vor.u32 1.1754944e-38, %v725
    %v727 = vsel %vm724, %v726, %v722
    %v728 = vmul.f32 1.0, %v727
    %v729 = vrcp.pop %v698
    %v730 = vmul.f32 %v698, %v729
    %v731 = vsub.f32 1.0, %v730
    %v732 = vmul.f32 %v729, %v731
    %v733 = vadd.f32 %v729, %v732
    %vm734 = vweird.f32 %v698
    %vm735 = vweird.f32 %v729
    %vm736 = vmor %vm734, %vm735
    %v737 = vsel %vm736, %v729, %v733
    %v738 = vand.u32 2147483647, %v698
    %vm739 = vcmp.eq.f32.partialorder %v738, 8.507059e+37
    %v740 = vand.u32 %v698, 2147483648
    %v741 = vor.u32 1.1754944e-38, %v740
    %v742 = vsel %vm739, %v741, %v737
    %v743 = vmul.f32 1.0, %v742
    %v744 = vtanh.pop %v686
    %v745 = vmul.f32 %v728, %v618
    %v746 = vmul.f32 %v713, %v744
    %v747 = vadd.f32 %v745, %v746
    %v748 = vtanh.pop %v747
    %v749 = vmul.f32 %v743, %v748
    %v750 = vpack.c.bf16 %v749, %v749
    %s751 = scalar_lea.vmem %s4, 12
    %752 = vst [vmem:[%s751] sm:$0xf] %v750
    %s753 = scalar_lea.vmem %s0, 64
    %v754 = vld [vmem:[%s753] sm:$0xff]
    %v755 = vld [vmem:[%s753 + $0x8] sm:$0xff]
    %v756 = vunpack.c.l.bf16 %v754
    %v757 = vunpack.c.h.bf16 %v754
    %v758 = vunpack.c.l.bf16 %v755
    %v759 = vunpack.c.h.bf16 %v755
    %760 = vmatpush.bf16.msra.mxu0 %v209
    %761 = vmatpush.bf16.msra.mxu0 %v205
    %762 = vmatpush.bf16.msra.mxu0 %v201
    %763 = vmatpush.bf16.msra.mxu0 %v197
    %764 = vmatpush.bf16.msra.mxu0 %v193
    %765 = vmatpush.bf16.msra.mxu0 %v189
    %766 = vmatpush.bf16.msra.mxu0 %v185
    %767 = vmatpush.bf16.msra.mxu0 %v181
    %768 = vmatmul.bf16.gmra.mxu0 %v750
    %v769 = vpop.f32.mrf.mxu0
    %v770 = vadd.f32 0.0, %v769
    %v771 = vpop.f32.mrf.mxu0
    %772 = vdwg.mxu0
    %773 = vmatpush.bf16.msra.mxu0 %v210
    %774 = vmatpush.bf16.msra.mxu0 %v206
    %775 = vmatpush.bf16.msra.mxu0 %v202
    %776 = vmatpush.bf16.msra.mxu0 %v198
    %777 = vmatpush.bf16.msra.mxu0 %v194
    %778 = vmatpush.bf16.msra.mxu0 %v190
    %779 = vmatpush.bf16.msra.mxu0 %v186
    %780 = vmatpush.bf16.msra.mxu0 %v182
    %781 = vmatmul.bf16.gmra.mxu0 %v750
    %v782 = vpop.f32.mrf.mxu0
    %v783 = vadd.f32 0.0, %v782
    %v784 = vpop.f32.mrf.mxu0
    %785 = vdwg.mxu0
    %786 = vmatpush.bf16.msra.mxu0 %v211
    %787 = vmatpush.bf16.msra.mxu0 %v207
    %788 = vmatpush.bf16.msra.mxu0 %v203
    %789 = vmatpush.bf16.msra.mxu0 %v199
    %790 = vmatpush.bf16.msra.mxu0 %v195
    %791 = vmatpush.bf16.msra.mxu0 %v191
    %792 = vmatpush.bf16.msra.mxu0 %v187
    %793 = vmatpush.bf16.msra.mxu0 %v183
    %794 = vmatmul.bf16.gmra.mxu0 %v750
    %v795 = vpop.f32.mrf.mxu0
    %v796 = vadd.f32 0.0, %v795
    %v797 = vpop.f32.mrf.mxu0
    %798 = vdwg.mxu0
    %799 = vmatpush.bf16.msra.mxu0 %v212
    %800 = vmatpush.bf16.msra.mxu0 %v208
    %801 = vmatpush.bf16.msra.mxu0 %v204
    %802 = vmatpush.bf16.msra.mxu0 %v200
    %803 = vmatpush.bf16.msra.mxu0 %v196
    %804 = vmatpush.bf16.msra.mxu0 %v192
    %805 = vmatpush.bf16.msra.mxu0 %v188
    %806 = vmatpush.bf16.msra.mxu0 %v184
    %807 = vmatmul.bf16.gmra.mxu0 %v750
    %v808 = vpop.f32.mrf.mxu0
    %v809 = vadd.f32 0.0, %v808
    %v810 = vpop.f32.mrf.mxu0
    %811 = vdwg.mxu0
    %v812 = vadd.f32 %v756, %v770
    %v813 = vadd.f32 %v757, %v783
    %v814 = vadd.f32 %v758, %v796
    %v815 = vadd.f32 %v759, %v809
    %v816 = vxor.u32 %v812, 2147483648
    %v817 = vxor.u32 %v813, 2147483648
    %v818 = vxor.u32 %v814, 2147483648
    %v819 = vmul.f32 %v816, 1.442695
    %v820 = vpow.pop %v819
    %v821 = vmul.f32 %v817, 1.442695
    %v822 = vpow.pop %v821
    %v823 = vmul.f32 %v818, 1.442695
    %v824 = vpow.pop %v823
    %v825 = vadd.f32 %v820, 1.0
    %v826 = vadd.f32 %v822, 1.0
    %v827 = vadd.f32 %v824, 1.0
    %v828 = vrcp.pop %v825
    %v829 = vmul.f32 %v825, %v828
    %v830 = vsub.f32 1.0, %v829
    %v831 = vmul.f32 %v828, %v830
    %v832 = vadd.f32 %v828, %v831
    %vm833 = vweird.f32 %v825
    %vm834 = vweird.f32 %v828
    %vm835 = vmor %vm833, %vm834
    %v836 = vsel %vm835, %v828, %v832
    %v837 = vand.u32 2147483647, %v825
    %vm838 = vcmp.eq.f32.partialorder %v837, 8.507059e+37
    %v839 = vand.u32 %v825, 2147483648
    %v840 = vor.u32 1.1754944e-38, %v839
    %v841 = vsel %vm838, %v840, %v836
    %v842 = vmul.f32 1.0, %v841
    %v843 = vrcp.pop %v826
    %v844 = vmul.f32 %v826, %v843
    %v845 = vsub.f32 1.0, %v844
    %v846 = vmul.f32 %v843, %v845
    %v847 = vadd.f32 %v843, %v846
    %vm848 = vweird.f32 %v826
    %vm849 = vweird.f32 %v843
    %vm850 = vmor %vm848, %vm849
    %v851 = vsel %vm850, %v843, %v847
    %v852 = vand.u32 2147483647, %v826
    %vm853 = vcmp.eq.f32.partialorder %v852, 8.507059e+37
    %v854 = vand.u32 %v826, 2147483648
    %v855 = vor.u32 1.1754944e-38, %v854
    %v856 = vsel %vm853, %v855, %v851
    %v857 = vmul.f32 1.0, %v856
    %v858 = vrcp.pop %v827
    %v859 = vmul.f32 %v827, %v858
    %v860 = vsub.f32 1.0, %v859
    %v861 = vmul.f32 %v858, %v860
    %v862 = vadd.f32 %v858, %v861
    %vm863 = vweird.f32 %v827
    %vm864 = vweird.f32 %v858
    %vm865 = vmor %vm863, %vm864
    %v866 = vsel %vm865, %v858, %v862
    %v867 = vand.u32 2147483647, %v827
    %vm868 = vcmp.eq.f32.partialorder %v867, 8.507059e+37
    %v869 = vand.u32 %v827, 2147483648
    %v870 = vor.u32 1.1754944e-38, %v869
    %v871 = vsel %vm868, %v870, %v866
    %v872 = vmul.f32 1.0, %v871
    %v873 = vtanh.pop %v815
    %v874 = vmul.f32 %v857, %v747
    %v875 = vmul.f32 %v842, %v873
    %v876 = vadd.f32 %v874, %v875
    %v877 = vtanh.pop %v876
    %v878 = vmul.f32 %v872, %v877
    %v879 = vpack.c.bf16 %v878, %v878
    %s880 = scalar_lea.vmem %s4, 16
    %881 = vst [vmem:[%s880] sm:$0xf] %v879
    %s882 = scalar_lea.vmem %s0, 80
    %v883 = vld [vmem:[%s882] sm:$0xff]
    %v884 = vld [vmem:[%s882 + $0x8] sm:$0xff]
    %v885 = vunpack.c.l.bf16 %v883
    %v886 = vunpack.c.h.bf16 %v883
    %v887 = vunpack.c.l.bf16 %v884
    %v888 = vunpack.c.h.bf16 %v884
    %889 = vmatpush.bf16.msra.mxu0 %v209
    %890 = vmatpush.bf16.msra.mxu0 %v205
    %891 = vmatpush.bf16.msra.mxu0 %v201
    %892 = vmatpush.bf16.msra.mxu0 %v197
    %893 = vmatpush.bf16.msra.mxu0 %v193
    %894 = vmatpush.bf16.msra.mxu0 %v189
    %895 = vmatpush.bf16.msra.mxu0 %v185
    %896 = vmatpush.bf16.msra.mxu0 %v181
    %897 = vmatmul.bf16.gmra.mxu0 %v879
    %v898 = vpop.f32.mrf.mxu0
    %v899 = vadd.f32 0.0, %v898
    %v900 = vpop.f32.mrf.mxu0
    %901 = vdwg.mxu0
    %902 = vmatpush.bf16.msra.mxu0 %v210
    %903 = vmatpush.bf16.msra.mxu0 %v206
    %904 = vmatpush.bf16.msra.mxu0 %v202
    %905 = vmatpush.bf16.msra.mxu0 %v198
    %906 = vmatpush.bf16.msra.mxu0 %v194
    %907 = vmatpush.bf16.msra.mxu0 %v190
    %908 = vmatpush.bf16.msra.mxu0 %v186
    %909 = vmatpush.bf16.msra.mxu0 %v182
    %910 = vmatmul.bf16.gmra.mxu0 %v879
    %v911 = vpop.f32.mrf.mxu0
    %v912 = vadd.f32 0.0, %v911
    %v913 = vpop.f32.mrf.mxu0
    %914 = vdwg.mxu0
    %915 = vmatpush.bf16.msra.mxu0 %v211
    %916 = vmatpush.bf16.msra.mxu0 %v207
    %917 = vmatpush.bf16.msra.mxu0 %v203
    %918 = vmatpush.bf16.msra.mxu0 %v199
    %919 = vmatpush.bf16.msra.mxu0 %v195
    %920 = vmatpush.bf16.msra.mxu0 %v191
    %921 = vmatpush.bf16.msra.mxu0 %v187
    %922 = vmatpush.bf16.msra.mxu0 %v183
    %923 = vmatmul.bf16.gmra.mxu0 %v879
    %v924 = vpop.f32.mrf.mxu0
    %v925 = vadd.f32 0.0, %v924
    %v926 = vpop.f32.mrf.mxu0
    %927 = vdwg.mxu0
    %928 = vmatpush.bf16.msra.mxu0 %v212
    %929 = vmatpush.bf16.msra.mxu0 %v208
    %930 = vmatpush.bf16.msra.mxu0 %v204
    %931 = vmatpush.bf16.msra.mxu0 %v200
    %932 = vmatpush.bf16.msra.mxu0 %v196
    %933 = vmatpush.bf16.msra.mxu0 %v192
    %934 = vmatpush.bf16.msra.mxu0 %v188
    %935 = vmatpush.bf16.msra.mxu0 %v184
    %936 = vmatmul.bf16.gmra.mxu0 %v879
    %v937 = vpop.f32.mrf.mxu0
    %v938 = vadd.f32 0.0, %v937
    %v939 = vpop.f32.mrf.mxu0
    %940 = vdwg.mxu0
    %v941 = vadd.f32 %v885, %v899
    %v942 = vadd.f32 %v886, %v912
    %v943 = vadd.f32 %v887, %v925
    %v944 = vadd.f32 %v888, %v938
    %v945 = vxor.u32 %v941, 2147483648
    %v946 = vxor.u32 %v942, 2147483648
    %v947 = vxor.u32 %v943, 2147483648
    %v948 = vmul.f32 %v945, 1.442695
    %v949 = vpow.pop %v948
    %v950 = vmul.f32 %v946, 1.442695
    %v951 = vpow.pop %v950
    %v952 = vmul.f32 %v947, 1.442695
    %v953 = vpow.pop %v952
    %v954 = vadd.f32 %v949, 1.0
    %v955 = vadd.f32 %v951, 1.0
    %v956 = vadd.f32 %v953, 1.0
    %v957 = vrcp.pop %v954
    %v958 = vmul.f32 %v954, %v957
    %v959 = vsub.f32 1.0, %v958
    %v960 = vmul.f32 %v957, %v959
    %v961 = vadd.f32 %v957, %v960
    %vm962 = vweird.f32 %v954
    %vm963 = vweird.f32 %v957
    %vm964 = vmor %vm962, %vm963
    %v965 = vsel %vm964, %v957, %v961
    %v966 = vand.u32 2147483647, %v954
    %vm967 = vcmp.eq.f32.partialorder %v966, 8.507059e+37
    %v968 = vand.u32 %v954, 2147483648
    %v969 = vor.u32 1.1754944e-38, %v968
    %v970 = vsel %vm967, %v969, %v965
    %v971 = vmul.f32 1.0, %v970
    %v972 = vrcp.pop %v955
    %v973 = vmul.f32 %v955, %v972
    %v974 = vsub.f32 1.0, %v973
    %v975 = vmul.f32 %v972, %v974
    %v976 = vadd.f32 %v972, %v975
    %vm977 = vweird.f32 %v955
    %vm978 = vweird.f32 %v972
    %vm979 = vmor %vm977, %vm978
    %v980 = vsel %vm979, %v972, %v976
    %v981 = vand.u32 2147483647, %v955
    %vm982 = vcmp.eq.f32.partialorder %v981, 8.507059e+37
    %v983 = vand.u32 %v955, 2147483648
    %v984 = vor.u32 1.1754944e-38, %v983
    %v985 = vsel %vm982, %v984, %v980
    %v986 = vmul.f32 1.0, %v985
    %v987 = vrcp.pop %v956
    %v988 = vmul.f32 %v956, %v987
    %v989 = vsub.f32 1.0, %v988
    %v990 = vmul.f32 %v987, %v989
    %v991 = vadd.f32 %v987, %v990
    %vm992 = vweird.f32 %v956
    %vm993 = vweird.f32 %v987
    %vm994 = vmor %vm992, %vm993
    %v995 = vsel %vm994, %v987, %v991
    %v996 = vand.u32 2147483647, %v956
    %vm997 = vcmp.eq.f32.partialorder %v996, 8.507059e+37
    %v998 = vand.u32 %v956, 2147483648
    %v999 = vor.u32 1.1754944e-38, %v998
    %v1000 = vsel %vm997, %v999, %v995
    %v1001 = vmul.f32 1.0, %v1000
    %v1002 = vtanh.pop %v944
    %v1003 = vmul.f32 %v986, %v876
    %v1004 = vmul.f32 %v971, %v1002
    %v1005 = vadd.f32 %v1003, %v1004
    %v1006 = vtanh.pop %v1005
    %v1007 = vmul.f32 %v1001, %v1006
    %v1008 = vpack.c.bf16 %v1007, %v1007
    %s1009 = scalar_lea.vmem %s4, 20
    %1010 = vst [vmem:[%s1009] sm:$0xf] %v1008
    %s1011 = scalar_lea.vmem %s0, 96
    %v1012 = vld [vmem:[%s1011] sm:$0xff]
    %v1013 = vld [vmem:[%s1011 + $0x8] sm:$0xff]
    %v1014 = vunpack.c.l.bf16 %v1012
    %v1015 = vunpack.c.h.bf16 %v1012
    %v1016 = vunpack.c.l.bf16 %v1013
    %v1017 = vunpack.c.h.bf16 %v1013
    %1018 = vmatpush.bf16.msra.mxu0 %v209
    %1019 = vmatpush.bf16.msra.mxu0 %v205
    %1020 = vmatpush.bf16.msra.mxu0 %v201
    %1021 = vmatpush.bf16.msra.mxu0 %v197
    %1022 = vmatpush.bf16.msra.mxu0 %v193
    %1023 = vmatpush.bf16.msra.mxu0 %v189
    %1024 = vmatpush.bf16.msra.mxu0 %v185
    %1025 = vmatpush.bf16.msra.mxu0 %v181
    %1026 = vmatmul.bf16.gmra.mxu0 %v1008
    %v1027 = vpop.f32.mrf.mxu0
    %v1028 = vadd.f32 0.0, %v1027
    %v1029 = vpop.f32.mrf.mxu0
    %1030 = vdwg.mxu0
    %1031 = vmatpush.bf16.msra.mxu0 %v210
    %1032 = vmatpush.bf16.msra.mxu0 %v206
    %1033 = vmatpush.bf16.msra.mxu0 %v202
    %1034 = vmatpush.bf16.msra.mxu0 %v198
    %1035 = vmatpush.bf16.msra.mxu0 %v194
    %1036 = vmatpush.bf16.msra.mxu0 %v190
    %1037 = vmatpush.bf16.msra.mxu0 %v186
    %1038 = vmatpush.bf16.msra.mxu0 %v182
    %1039 = vmatmul.bf16.gmra.mxu0 %v1008
    %v1040 = vpop.f32.mrf.mxu0
    %v1041 = vadd.f32 0.0, %v1040
    %v1042 = vpop.f32.mrf.mxu0
    %1043 = vdwg.mxu0
    %1044 = vmatpush.bf16.msra.mxu0 %v211
    %1045 = vmatpush.bf16.msra.mxu0 %v207
    %1046 = vmatpush.bf16.msra.mxu0 %v203
    %1047 = vmatpush.bf16.msra.mxu0 %v199
    %1048 = vmatpush.bf16.msra.mxu0 %v195
    %1049 = vmatpush.bf16.msra.mxu0 %v191
    %1050 = vmatpush.bf16.msra.mxu0 %v187
    %1051 = vmatpush.bf16.msra.mxu0 %v183
    %1052 = vmatmul.bf16.gmra.mxu0 %v1008
    %v1053 = vpop.f32.mrf.mxu0
    %v1054 = vadd.f32 0.0, %v1053
    %v1055 = vpop.f32.mrf.mxu0
    %1056 = vdwg.mxu0
    %1057 = vmatpush.bf16.msra.mxu0 %v212
    %1058 = vmatpush.bf16.msra.mxu0 %v208
    %1059 = vmatpush.bf16.msra.mxu0 %v204
    %1060 = vmatpush.bf16.msra.mxu0 %v200
    %1061 = vmatpush.bf16.msra.mxu0 %v196
    %1062 = vmatpush.bf16.msra.mxu0 %v192
    %1063 = vmatpush.bf16.msra.mxu0 %v188
    %1064 = vmatpush.bf16.msra.mxu0 %v184
    %1065 = vmatmul.bf16.gmra.mxu0 %v1008
    %v1066 = vpop.f32.mrf.mxu0
    %v1067 = vadd.f32 0.0, %v1066
    %v1068 = vpop.f32.mrf.mxu0
    %1069 = vdwg.mxu0
    %v1070 = vadd.f32 %v1014, %v1028
    %v1071 = vadd.f32 %v1015, %v1041
    %v1072 = vadd.f32 %v1016, %v1054
    %v1073 = vadd.f32 %v1017, %v1067
    %v1074 = vxor.u32 %v1070, 2147483648
    %v1075 = vxor.u32 %v1071, 2147483648
    %v1076 = vxor.u32 %v1072, 2147483648
    %v1077 = vmul.f32 %v1074, 1.442695
    %v1078 = vpow.pop %v1077
    %v1079 = vmul.f32 %v1075, 1.442695
    %v1080 = vpow.pop %v1079
    %v1081 = vmul.f32 %v1076, 1.442695
    %v1082 = vpow.pop %v1081
    %v1083 = vadd.f32 %v1078, 1.0
    %v1084 = vadd.f32 %v1080, 1.0
    %v1085 = vadd.f32 %v1082, 1.0
    %v1086 = vrcp.pop %v1083
    %v1087 = vmul.f32 %v1083, %v1086
    %v1088 = vsub.f32 1.0, %v1087
    %v1089 = vmul.f32 %v1086, %v1088
    %v1090 = vadd.f32 %v1086, %v1089
    %vm1091 = vweird.f32 %v1083
    %vm1092 = vweird.f32 %v1086
    %vm1093 = vmor %vm1091, %vm1092
    %v1094 = vsel %vm1093, %v1086, %v1090
    %v1095 = vand.u32 2147483647, %v1083
    %vm1096 = vcmp.eq.f32.partialorder %v1095, 8.507059e+37
    %v1097 = vand.u32 %v1083, 2147483648
    %v1098 = vor.u32 1.1754944e-38, %v1097
    %v1099 = vsel %vm1096, %v1098, %v1094
    %v1100 = vmul.f32 1.0, %v1099
    %v1101 = vrcp.pop %v1084
    %v1102 = vmul.f32 %v1084, %v1101
    %v1103 = vsub.f32 1.0, %v1102
    %v1104 = vmul.f32 %v1101, %v1103
    %v1105 = vadd.f32 %v1101, %v1104
    %vm1106 = vweird.f32 %v1084
    %vm1107 = vweird.f32 %v1101
    %vm1108 = vmor %vm1106, %vm1107
    %v1109 = vsel %vm1108, %v1101, %v1105
    %v1110 = vand.u32 2147483647, %v1084
    %vm1111 = vcmp.eq.f32.partialorder %v1110, 8.507059e+37
    %v1112 = vand.u32 %v1084, 2147483648
    %v1113 = vor.u32 1.1754944e-38, %v1112
    %v1114 = vsel %vm1111, %v1113, %v1109
    %v1115 = vmul.f32 1.0, %v1114
    %v1116 = vrcp.pop %v1085
    %v1117 = vmul.f32 %v1085, %v1116
    %v1118 = vsub.f32 1.0, %v1117
    %v1119 = vmul.f32 %v1116, %v1118
    %v1120 = vadd.f32 %v1116, %v1119
    %vm1121 = vweird.f32 %v1085
    %vm1122 = vweird.f32 %v1116
    %vm1123 = vmor %vm1121, %vm1122
    %v1124 = vsel %vm1123, %v1116, %v1120
    %v1125 = vand.u32 2147483647, %v1085
    %vm1126 = vcmp.eq.f32.partialorder %v1125, 8.507059e+37
    %v1127 = vand.u32 %v1085, 2147483648
    %v1128 = vor.u32 1.1754944e-38, %v1127
    %v1129 = vsel %vm1126, %v1128, %v1124
    %v1130 = vmul.f32 1.0, %v1129
    %v1131 = vtanh.pop %v1073
    %v1132 = vmul.f32 %v1115, %v1005
    %v1133 = vmul.f32 %v1100, %v1131
    %v1134 = vadd.f32 %v1132, %v1133
    %v1135 = vtanh.pop %v1134
    %v1136 = vmul.f32 %v1130, %v1135
    %v1137 = vpack.c.bf16 %v1136, %v1136
    %s1138 = scalar_lea.vmem %s4, 24
    %1139 = vst [vmem:[%s1138] sm:$0xf] %v1137
    %s1140 = scalar_lea.vmem %s0, 112
    %v1141 = vld [vmem:[%s1140] sm:$0xff]
    %v1142 = vld [vmem:[%s1140 + $0x8] sm:$0xff]
    %v1143 = vunpack.c.l.bf16 %v1141
    %v1144 = vunpack.c.h.bf16 %v1141
    %v1145 = vunpack.c.l.bf16 %v1142
    %v1146 = vunpack.c.h.bf16 %v1142
    %1147 = vmatpush.bf16.msra.mxu0 %v209
    %1148 = vmatpush.bf16.msra.mxu0 %v205
    %1149 = vmatpush.bf16.msra.mxu0 %v201
    %1150 = vmatpush.bf16.msra.mxu0 %v197
    %1151 = vmatpush.bf16.msra.mxu0 %v193
    %1152 = vmatpush.bf16.msra.mxu0 %v189
    %1153 = vmatpush.bf16.msra.mxu0 %v185
    %1154 = vmatpush.bf16.msra.mxu0 %v181
    %1155 = vmatmul.bf16.gmra.mxu0 %v1137
    %v1156 = vpop.f32.mrf.mxu0
    %v1157 = vadd.f32 0.0, %v1156
    %v1158 = vpop.f32.mrf.mxu0
    %1159 = vdwg.mxu0
    %1160 = vmatpush.bf16.msra.mxu0 %v210
    %1161 = vmatpush.bf16.msra.mxu0 %v206
    %1162 = vmatpush.bf16.msra.mxu0 %v202
    %1163 = vmatpush.bf16.msra.mxu0 %v198
    %1164 = vmatpush.bf16.msra.mxu0 %v194
    %1165 = vmatpush.bf16.msra.mxu0 %v190
    %1166 = vmatpush.bf16.msra.mxu0 %v186
    %1167 = vmatpush.bf16.msra.mxu0 %v182
    %1168 = vmatmul.bf16.gmra.mxu0 %v1137
    %v1169 = vpop.f32.mrf.mxu0
    %v1170 = vadd.f32 0.0, %v1169
    %v1171 = vpop.f32.mrf.mxu0
    %1172 = vdwg.mxu0
    %1173 = vmatpush.bf16.msra.mxu0 %v211
    %1174 = vmatpush.bf16.msra.mxu0 %v207
    %1175 = vmatpush.bf16.msra.mxu0 %v203
    %1176 = vmatpush.bf16.msra.mxu0 %v199
    %1177 = vmatpush.bf16.msra.mxu0 %v195
    %1178 = vmatpush.bf16.msra.mxu0 %v191
    %1179 = vmatpush.bf16.msra.mxu0 %v187
    %1180 = vmatpush.bf16.msra.mxu0 %v183
    %1181 = vmatmul.bf16.gmra.mxu0 %v1137
    %v1182 = vpop.f32.mrf.mxu0
    %v1183 = vadd.f32 0.0, %v1182
    %v1184 = vpop.f32.mrf.mxu0
    %1185 = vdwg.mxu0
    %1186 = vmatpush.bf16.msra.mxu0 %v212
    %1187 = vmatpush.bf16.msra.mxu0 %v208
    %1188 = vmatpush.bf16.msra.mxu0 %v204
    %1189 = vmatpush.bf16.msra.mxu0 %v200
    %1190 = vmatpush.bf16.msra.mxu0 %v196
    %1191 = vmatpush.bf16.msra.mxu0 %v192
    %1192 = vmatpush.bf16.msra.mxu0 %v188
    %1193 = vmatpush.bf16.msra.mxu0 %v184
    %1194 = vmatmul.bf16.gmra.mxu0 %v1137
    %v1195 = vpop.f32.mrf.mxu0
    %v1196 = vadd.f32 0.0, %v1195
    %v1197 = vpop.f32.mrf.mxu0
    %1198 = vdwg.mxu0
    %v1199 = vadd.f32 %v1143, %v1157
    %v1200 = vadd.f32 %v1144, %v1170
    %v1201 = vadd.f32 %v1145, %v1183
    %v1202 = vadd.f32 %v1146, %v1196
    %v1203 = vxor.u32 %v1199, 2147483648
    %v1204 = vxor.u32 %v1200, 2147483648
    %v1205 = vxor.u32 %v1201, 2147483648
    %v1206 = vmul.f32 %v1203, 1.442695
    %v1207 = vpow.pop %v1206
    %v1208 = vmul.f32 %v1204, 1.442695
    %v1209 = vpow.pop %v1208
    %v1210 = vmul.f32 %v1205, 1.442695
    %v1211 = vpow.pop %v1210
    %v1212 = vadd.f32 %v1207, 1.0
    %v1213 = vadd.f32 %v1209, 1.0
    %v1214 = vadd.f32 %v1211, 1.0
    %v1215 = vrcp.pop %v1212
    %v1216 = vmul.f32 %v1212, %v1215
    %v1217 = vsub.f32 1.0, %v1216
    %v1218 = vmul.f32 %v1215, %v1217
    %v1219 = vadd.f32 %v1215, %v1218
    %vm1220 = vweird.f32 %v1212
    %vm1221 = vweird.f32 %v1215
    %vm1222 = vmor %vm1220, %vm1221
    %v1223 = vsel %vm1222, %v1215, %v1219
    %v1224 = vand.u32 2147483647, %v1212
    %vm1225 = vcmp.eq.f32.partialorder %v1224, 8.507059e+37
    %v1226 = vand.u32 %v1212, 2147483648
    %v1227 = vor.u32 1.1754944e-38, %v1226
    %v1228 = vsel %vm1225, %v1227, %v1223
    %v1229 = vmul.f32 1.0, %v1228
    %v1230 = vrcp.pop %v1213
    %v1231 = vmul.f32 %v1213, %v1230
    %v1232 = vsub.f32 1.0, %v1231
    %v1233 = vmul.f32 %v1230, %v1232
    %v1234 = vadd.f32 %v1230, %v1233
    %vm1235 = vweird.f32 %v1213
    %vm1236 = vweird.f32 %v1230
    %vm1237 = vmor %vm1235, %vm1236
    %v1238 = vsel %vm1237, %v1230, %v1234
    %v1239 = vand.u32 2147483647, %v1213
    %vm1240 = vcmp.eq.f32.partialorder %v1239, 8.507059e+37
    %v1241 = vand.u32 %v1213, 2147483648
    %v1242 = vor.u32 1.1754944e-38, %v1241
    %v1243 = vsel %vm1240, %v1242, %v1238
    %v1244 = vmul.f32 1.0, %v1243
    %v1245 = vrcp.pop %v1214
    %v1246 = vmul.f32 %v1214, %v1245
    %v1247 = vsub.f32 1.0, %v1246
    %v1248 = vmul.f32 %v1245, %v1247
    %v1249 = vadd.f32 %v1245, %v1248
    %vm1250 = vweird.f32 %v1214
    %vm1251 = vweird.f32 %v1245
    %vm1252 = vmor %vm1250, %vm1251
    %v1253 = vsel %vm1252, %v1245, %v1249
    %v1254 = vand.u32 2147483647, %v1214
    %vm1255 = vcmp.eq.f32.partialorder %v1254, 8.507059e+37
    %v1256 = vand.u32 %v1214, 2147483648
    %v1257 = vor.u32 1.1754944e-38, %v1256
    %v1258 = vsel %vm1255, %v1257, %v1253
    %v1259 = vmul.f32 1.0, %v1258
    %v1260 = vtanh.pop %v1202
    %v1261 = vmul.f32 %v1244, %v1134
    %v1262 = vmul.f32 %v1229, %v1260
    %v1263 = vadd.f32 %v1261, %v1262
    %v1264 = vtanh.pop %v1263
    %v1265 = vmul.f32 %v1259, %v1264
    %v1266 = vpack.c.bf16 %v1265, %v1265
    %s1267 = scalar_lea.vmem %s4, 28
    %1268 = vst [vmem:[%s1267] sm:$0xf] %v1266
    %1269 = vst [vmem:[#allocation2] sm:$0xff] %v1265
    %1270 = vst [vmem:[#allocation3] sm:$0xff] %v1263
    // Predicated region
    $region26: #{lstm_forward.5} parent=1 // pred_check
      %p1271 = pneg %p36
    $region27: #{lstm_forward.5} parent=1 // pred_check_branch
      %1273 = sbr.rel (%p1271) target = $region29
    $region28: #{lstm_forward.5} parent=1 // pred_region
      %1274 = vst [vmem:[%s5] sm:$0xff] %v1265
      %1275 = vst [vmem:[%s6] sm:$0xff] %v1263
    $region29: #{lstm_forward.5} parent=1 // pred_fallthru
      _
    // Predicated region
    $region30: #{lstm_forward.5} parent=1 // pred_check
      _
    $region31: #{lstm_forward.5} parent=1 // pred_check_branch
      %1277 = sbr.rel (0) target = $region33
    $region32: #{lstm_forward.5} parent=1 // pred_region
      _
    $region33: #{lstm_forward.5} parent=1 // pred_fallthru
      _
    // Predicated region
    $region34: #{lstm_forward.5} parent=1 // pred_check
      _
    $region35: #{lstm_forward.5} parent=1 // pred_check_branch
      %1279 = sbr.rel (0) target = $region37
    $region36: #{lstm_forward.5} parent=1 // pred_region
      _
    $region37: #{lstm_forward.5} parent=1 // pred_fallthru
      _
    // Predicated region
    $region38: #{lstm_forward.5} parent=1 // pred_check
      _
    $region39: #{lstm_forward.5} parent=1 // pred_check_branch
      %1281 = sbr.rel (0) target = $region41
    $region40: #{lstm_forward.5} parent=1 // pred_region
      _
    $region41: #{lstm_forward.5} parent=1 // pred_fallthru
      _
    // Predicated region
    $region42: #{lstm_forward.5} parent=1 // pred_check
      _
    $region43: #{lstm_forward.5} parent=1 // pred_check_branch
      %1283 = sbr.rel (0) target = $region45
    $region44: #{lstm_forward.5} parent=1 // pred_region
      _
    $region45: #{lstm_forward.5} parent=1 // pred_fallthru
      _
    // Predicated region
    $region46: #{lstm_forward.5} parent=1 // pred_check
      _
    $region47: #{lstm_forward.5} parent=1 // pred_check_branch
      %1285 = sbr.rel (0) target = $region49
    $region48: #{lstm_forward.5} parent=1 // pred_region
      _
    $region49: #{lstm_forward.5} parent=1 // pred_fallthru
      _
    // Predicated region
    $region50: #{lstm_forward.5} parent=1 // pred_check
      _
    $region51: #{lstm_forward.5} parent=1 // pred_check_branch
      %1287 = sbr.rel (0) target = $region53
    $region52: #{lstm_forward.5} parent=1 // pred_region
      _
    $region53: #{lstm_forward.5} parent=1 // pred_fallthru
      _
    %1288 = vsyncpa [#allocation5], 1

</llo_original>
